<compile_context>
chip_gen: v7x
topology: tpu7x:2x2x1
jax: 0.10.0
libtpu: 0.0.40
codegen_flags: <defaults>
</compile_context>

<pallas_src>
import math

import jax
import jax.numpy as jnp
from jax.experimental import pallas as pl
from jax.experimental.pallas import tpu as pltpu


# ----------------------------------------------------------------------------
# helpers
# ----------------------------------------------------------------------------
def _rup(x, m):
    return ((x + m - 1) // m) * m


def _buf_bytes(shape, itemsize):
    """VMEM footprint of one buffer with (8, 128) sublane/lane padding."""
    dims = list(shape)
    dims[-1] = _rup(dims[-1], 128)
    if len(dims) >= 2:
        dims[-2] = _rup(dims[-2], 8)
    n = 1
    for d in dims:
        n *= d
    return n * itemsize


def _lane_roll(x, shift):
    """jnp.roll semantics along the last axis: out[..., c] = x[..., (c - shift) % W]."""
    width = x.shape[-1]
    shift = shift % width
    if shift == 0:
        return x
    if width % 128 == 0:
        # XLU lane rotation: free slot relative to the VPU work of the RoPE math.
        return pltpu.roll(x, shift, axis=-1)
    # Fallback for lane widths not a multiple of 128 (tiny test shapes): same
    # permutation as two static full-slab slices + one concat.
    return jnp.concatenate([x[..., width - shift:], x[..., :width - shift]], axis=-1)


def rope_tables(S, hd, nh, fraction, base):
    """Head-tiled RoPE tables over the full Q = nh*hd axis.

    Returns cos_q, sin_a, sin_b of shape [S, Q] such that for head-major q/k
        rope(x) = x * cos_q + roll(x, -hd//2) * sin_a + roll(x, +hd//2) * sin_b
    equals the standard rotate-half RoPE applied per head (the per-head sign /
    zero structure is baked into the tables; no iota/select in the kernel).
    """
    assert fraction == 1  # TODO(synk): partial rotary (rope_fraction != 1) not implemented.
    inv_freq = 1.0 / (base ** (jnp.arange(0, hd, 2, dtype=jnp.float32) / hd))
    pos = jnp.arange(S, dtype=jnp.float32)
    freqs = pos[:, None] * inv_freq[None, :]                    # [S, hd/2]
    cos_h, sin_h = jnp.cos(freqs), jnp.sin(freqs)
    zeros = jnp.zeros_like(sin_h)
    cos_head = jnp.concatenate([cos_h, cos_h], axis=-1)         # [S, hd]
    sin_a_head = jnp.concatenate([-sin_h, zeros], axis=-1)      # first half: -sin
    sin_b_head = jnp.concatenate([zeros, sin_h], axis=-1)       # second half: +sin
    tile = lambda t: jnp.tile(t, (1, nh))                       # [S, Q]
    return tile(cos_head), tile(sin_a_head), tile(sin_b_head)


# ----------------------------------------------------------------------------
# Encoder forward factory (builds the three per-layer Pallas kernels)
# ----------------------------------------------------------------------------
def make_encoder_forward(cfg, S):
    H = cfg["hidden_size"]
    L = cfg["num_layers"]
    Zl = cfg["z_size"] // L
    hd = cfg["attention_head_size"]
    nh = cfg["num_attention_heads"]
    Q = hd * nh
    M = cfg["mlp_size"]
    R = 8 if cfg["num_registers"] == 0 else cfg["num_registers"]
    n_iaf = cfg["num_iaf_attention_heads"]
    eps = cfg["norm_eps"]
    sp_shift = math.log(math.e - 1.0)
    attn_scale = 1.0 / math.sqrt(hd)

    assert hd % 2 == 0
    Ts = min(S, 256)            # seq tile (projection / MLP kernels)
    Tq = min(S, 256)            # query tile
    Tk = min(S, 256)            # kv tile (worth sweeping 128 on v5e / v7x)
    assert S % Ts == 0 and S % Tq == 0 and S % Tk == 0, "S must divide the tiles"

    # VMEM budget: 75% of physical capacity, never the full 64 MiB of a v7x TC.
    try:
        vmem_cap = int(0.75 * pltpu.get_tpu_info().vmem_capacity_bytes)
    except Exception:
        vmem_cap = 48 << 20

    def _vmem_limit(per_step_bytes):
        need = 2 * per_step_bytes + (8 << 20)      # double buffering + slack
        return int(min(vmem_cap, max(need, 16 << 20)))

    proj_bytes = (
        _buf_bytes((Ts, H), 4) + 2 * _buf_bytes((Ts, Zl), 4) + 3 * _buf_bytes((Ts, Q), 4)
        + 2 * _buf_bytes((1, H), 4)
        + _buf_bytes((H, 2 * Zl), 2) + _buf_bytes((H + 2 * Zl, 3 * Q), 2)
        + 3 * _buf_bytes((Ts, Q), 2) + _buf_bytes((Ts, H + Zl), 2) + _buf_bytes((Ts, 3 * Zl), 4)
        + _buf_bytes((Ts, 3 * Q), 4) + _buf_bytes((Ts, H + 2 * Zl), 2))
    attn_bytes = (
        _buf_bytes((Tq, Q), 2) + 2 * _buf_bytes((Tk, Q), 2)
        + 2 * _buf_bytes((nh, R, hd), 2) + _buf_bytes((Tq, Q), 2)
        + nh * (2 * _buf_bytes((Tq, 1), 4) + _buf_bytes((Tq, hd), 4))   # scratch (lane padded)
        + 4 * _buf_bytes((Tq, Tk), 4))
    mlp_bytes = (
        _buf_bytes((Ts, H + Zl), 2) + _buf_bytes((Ts, Q), 2) + 2 * _buf_bytes((Ts, H), 4)
        + _buf_bytes((H + Zl + Q, 2 * M), 2) + _buf_bytes((Zl + Q + M, H), 2)
        + _buf_bytes((Ts, 2 * M), 4) + 2 * _buf_bytes((Ts, M), 4)
        + _buf_bytes((Ts, Zl + Q + M), 2))

    # ------------------------------------------------------------------ #
    # Kernel 1: LayerNorm + latent (mu/sigma/z) + fused QKV + full-slab RoPE
    # ------------------------------------------------------------------ #
    def proj_kernel(hid_ref, noise_ref, nnoise_ref, cos_ref, sa_ref, sb_ref,
                    ln_w_ref, ln_b_ref, wz_ref, wqkv_ref,
                    q_ref, k_ref, v_ref, xnz_ref, zms_ref):
        h = hid_ref[0]                                     # [Ts, H] f32

        # --- ReZeroIO.enter: LayerNorm (f32 statistics) ---
        mean = jnp.mean(h, axis=-1, keepdims=True)
        cen = h - mean
        var = jnp.mean(cen * cen, axis=-1, keepdims=True)
        xn = cen * jax.lax.rsqrt(var + eps) * ln_w_ref[...] + ln_b_ref[...]

        # --- latent branch: mu / sigma / z (z_scale folded into w_z) ---
        xn_bf = xn.astype(jnp.bfloat16)
        zp = jnp.dot(xn_bf, wz_ref[...], preferred_element_type=jnp.float32)
        mu = zp[:, :Zl]
        ls = zp[:, Zl:] + sp_shift
        sigma = jnp.where(ls > 20.0, ls,
                          jnp.log(1.0 + jnp.exp(jnp.minimum(ls, 20.0))))   # stable softplus
        z = mu + sigma * noise_ref[0]

        # --- fused QKV: ONE stacked matmul on [xn | z | next_noise] ---
        xin = jnp.concatenate(
            [xn_bf, z.astype(jnp.bfloat16), nnoise_ref[0].astype(jnp.bfloat16)],
            axis=-1)                                       # [Ts, H+2Zl] bf16
        qkv = jnp.dot(xin, wqkv_ref[...],
                      preferred_element_type=jnp.float32)  # [Ts, 3Q] f32
        q2d = qkv[:, :Q]
        k2d = qkv[:, Q:2 * Q]
        v2d = qkv[:, 2 * Q:]

        # --- full-slab rotate-half RoPE (no per-head loop, no per-head stores) ---
        cos = cos_ref[...]
        sa = sa_ref[...]
        sb = sb_ref[...]

        def rope(x):
            return x * cos + _lane_roll(x, -(hd // 2)) * sa + _lane_roll(x, hd // 2) * sb

        q_ref[0] = rope(q2d).astype(jnp.bfloat16)          # lane-dense [Ts, Q] stores
        k_ref[0] = rope(k2d).astype(jnp.bfloat16)
        v_ref[0] = v2d.astype(jnp.bfloat16)

        # TODO(synk): H+Zl / 3*Zl are not padded to lane multiples; padding them
        # (with zero weight rows) would make these stores unmasked for odd configs.
        xnz_ref[0] = jnp.concatenate([xn, z], axis=-1).astype(jnp.bfloat16)
        zms_ref[0] = jnp.concatenate([z, mu, sigma], axis=-1)

    def proj_call(hidden, noise_i, nnoise_i, cos_q, sin_a, sin_b, p):
        B = hidden.shape[0]
        return pl.pallas_call(
            proj_kernel,
            out_shape=(
                jax.ShapeDtypeStruct((B, S, Q), jnp.bfloat16),        # q (RoPE'd)
                jax.ShapeDtypeStruct((B, S, Q), jnp.bfloat16),        # k (RoPE'd)
                jax.ShapeDtypeStruct((B, S, Q), jnp.bfloat16),        # v
                jax.ShapeDtypeStruct((B, S, H + Zl), jnp.bfloat16),   # [xn | z]
                jax.ShapeDtypeStruct((B, S, 3 * Zl), jnp.float32),    # [z | mu | sigma]
            ),
            grid=(B, S // Ts),
            in_specs=[
                pl.BlockSpec((1, Ts, H), lambda b, s: (b, s, 0)),
                pl.BlockSpec((1, Ts, Zl), lambda b, s: (b, s, 0)),
                pl.BlockSpec((1, Ts, Zl), lambda b, s: (b, s, 0)),
                pl.BlockSpec((Ts, Q), lambda b, s: (s, 0)),
                pl.BlockSpec((Ts, Q), lambda b, s: (s, 0)),
                pl.BlockSpec((Ts, Q), lambda b, s: (s, 0)),
                pl.BlockSpec((1, H), lambda b, s: (0, 0)),
                pl.BlockSpec((1, H), lambda b, s: (0, 0)),
                pl.BlockSpec((H, 2 * Zl), lambda b, s: (0, 0)),
                pl.BlockSpec((H + 2 * Zl, 3 * Q), lambda b, s: (0, 0)),
            ],
            out_specs=(
                pl.BlockSpec((1, Ts, Q), lambda b, s: (b, s, 0)),
                pl.BlockSpec((1, Ts, Q), lambda b, s: (b, s, 0)),
                pl.BlockSpec((1, Ts, Q), lambda b, s: (b, s, 0)),
                pl.BlockSpec((1, Ts, H + Zl), lambda b, s: (b, s, 0)),
                pl.BlockSpec((1, Ts, 3 * Zl), lambda b, s: (b, s, 0)),
            ),
            compiler_params=pltpu.CompilerParams(
                dimension_semantics=("parallel", "parallel"),
                vmem_limit_bytes=_vmem_limit(proj_bytes)),
        )(hidden, noise_i, nnoise_i, cos_q, sin_a, sin_b,
          p["ln_w"], p["ln_b"], p["w_z"], p["w_qkv"])

    # ------------------------------------------------------------------ #
    # Kernel 2: flash-style attention over lane-dense [B, S, Q] q/k/v     #
    # ------------------------------------------------------------------ #
    def attn_kernel(q_ref, k_ref, v_ref, kreg_ref, vreg_ref, attn_ref,
                    m_sc, l_sc, acc_sc):
        qi = pl.program_id(1)
        ki = pl.program_id(2)

        q2d = q_ref[0]                                      # [Tq, Q] bf16
        k2d = k_ref[0]                                      # [Tk, Q] bf16
        v2d = v_ref[0]                                      # [Tk, Q] bf16

        @pl.when(ki == 0)
        def _init():
            # Register tokens: never masked, no RoPE; fold into the softmax init.
            # TODO(synk): could be concatenated onto the first KV tile instead.
            for hh in range(nh):
                qh = q2d[:, hh * hd:(hh + 1) * hd]
                s_reg = jax.lax.dot_general(
                    qh, kreg_ref[hh], (((1,), (1,)), ((), ())),
                    preferred_element_type=jnp.float32) * attn_scale    # [Tq, R]
                m0 = jnp.max(s_reg, axis=-1, keepdims=True)
                e0 = jnp.exp(s_reg - m0)
                m_sc[hh] = m0
                l_sc[hh] = jnp.sum(e0, axis=-1, keepdims=True)
                acc_sc[hh] = jnp.dot(e0.astype(jnp.bfloat16), vreg_ref[hh],
                                     preferred_element_type=jnp.float32)

        # ONE 2-D IAF mask shared by the IAF heads; bidirectional heads get no
        # mask work at all (static head index).  For KV tiles fully in the past
        # the mask is all-False so the select is a data no-op.
        if n_iaf > 0:
            row = jax.lax.broadcasted_iota(jnp.int32, (Tq, Tk), 0) + qi * Tq
            col = jax.lax.broadcasted_iota(jnp.int32, (Tq, Tk), 1) + ki * Tk
            iaf_mask = col >= row            # IAF heads cannot attend to self/future

        for hh in range(nh):                  # static unroll; hd-wide lane slices
            qh = q2d[:, hh * hd:(hh + 1) * hd]
            kh = k2d[:, hh * hd:(hh + 1) * hd]
            vh = v2d[:, hh * hd:(hh + 1) * hd]

            s = jax.lax.dot_general(
                qh, kh, (((1,), (1,)), ((), ())),
                preferred_element_type=jnp.float32) * attn_scale        # [Tq, Tk]
            if hh < n_iaf:
                s = jnp.where(iaf_mask, -1e30, s)

            m_prev = m_sc[hh]
            m_new = jnp.maximum(m_prev, jnp.max(s, axis=-1, keepdims=True))
            alpha = jnp.exp(m_prev - m_new)
            prob = jnp.exp(s - m_new)
            l_sc[hh] = alpha * l_sc[hh] + jnp.sum(prob, axis=-1, keepdims=True)
            acc_sc[hh] = alpha * acc_sc[hh] + jnp.dot(
                prob.astype(jnp.bfloat16), vh, preferred_element_type=jnp.float32)
            m_sc[hh] = m_new

        @pl.when(ki == pl.num_programs(2) - 1)
        def _finalize():
            outs = [acc_sc[hh] * pl.reciprocal(l_sc[hh], approx=True)
                    for hh in range(nh)]
            attn_ref[0] = jnp.concatenate(outs, axis=-1).astype(attn_ref.dtype)

    def attn_call(q, k, v, p):
        B = q.shape[0]
        return pl.pallas_call(
            attn_kernel,
            out_shape=jax.ShapeDtypeStruct((B, S, Q), jnp.bfloat16),
            grid=(B, S // Tq, S // Tk),
            in_specs=[
                pl.BlockSpec((1, Tq, Q), lambda b, qi, ki: (b, qi, 0)),
                pl.BlockSpec((1, Tk, Q), lambda b, qi, ki: (b, ki, 0)),
                pl.BlockSpec((1, Tk, Q), lambda b, qi, ki: (b, ki, 0)),
                pl.BlockSpec((nh, R, hd), lambda b, qi, ki: (0, 0, 0)),
                pl.BlockSpec((nh, R, hd), lambda b, qi, ki: (0, 0, 0)),
            ],
            out_specs=pl.BlockSpec((1, Tq, Q), lambda b, qi, ki: (b, qi, 0)),
            scratch_shapes=[
                pltpu.VMEM((nh, Tq, 1), jnp.float32),   # running max
                pltpu.VMEM((nh, Tq, 1), jnp.float32),   # running denom
                pltpu.VMEM((nh, Tq, hd), jnp.float32),  # running numerator
            ],
            compiler_params=pltpu.CompilerParams(
                dimension_semantics=("parallel", "parallel", "arbitrary"),
                vmem_limit_bytes=_vmem_limit(attn_bytes)),
        )(q, k, v, p["k_reg"], p["v_reg"])

    # ------------------------------------------------------------------ #
    # Kernel 3: GLU MLP + down proj + ReZero residual                     #
    # (separate so w_mlp/w_down are not resident during the KV loop)      #
    # ------------------------------------------------------------------ #
    def mlp_kernel(xnz_ref, attn_ref, hid_ref, wmlp_ref, wdown_ref, out_ref):
        xnz = xnz_ref[0]                                    # [Ts, H+Zl] bf16
        a = attn_ref[0]                                     # [Ts, Q]    bf16

        # GLU MLP: ONE stacked matmul on [xn | z | attn_out].
        mlp_in = jnp.concatenate([xnz, a], axis=-1)
        gv = jnp.dot(mlp_in, wmlp_ref[...], preferred_element_type=jnp.float32)
        gate = gv[:, :M]
        val = gv[:, M:]
        mlp = (gate * jax.nn.sigmoid(gate)) * val           # silu(gate) * value

        # Down proj on [z | attn_out | mlp_out]; ReZero gate folded into w_down.
        down_in = jnp.concatenate(
            [xnz[:, H:], a, mlp.astype(jnp.bfloat16)], axis=-1)
        down = jnp.dot(down_in, wdown_ref[...], preferred_element_type=jnp.float32)
        out_ref[0] = hid_ref[0] + down

    def mlp_call(xnz, attn, hidden, p):
        B = hidden.shape[0]
        return pl.pallas_call(
            mlp_kernel,
            out_shape=jax.ShapeDtypeStruct((B, S, H), jnp.float32),
            grid=(B, S // Ts),
            in_specs=[
                pl.BlockSpec((1, Ts, H + Zl), lambda b, s: (b, s, 0)),
                pl.BlockSpec((1, Ts, Q), lambda b, s: (b, s, 0)),
                pl.BlockSpec((1, Ts, H), lambda b, s: (b, s, 0)),
                pl.BlockSpec((H + Zl + Q, 2 * M), lambda b, s: (0, 0)),
                pl.BlockSpec((Zl + Q + M, H), lambda b, s: (0, 0)),
            ],
            out_specs=pl.BlockSpec((1, Ts, H), lambda b, s: (b, s, 0)),
            compiler_params=pltpu.CompilerParams(
                dimension_semantics=("parallel", "parallel"),
                vmem_limit_bytes=_vmem_limit(mlp_bytes)),
        )(xnz, attn, hidden, p["w_mlp"], p["w_down"])

    # ------------------------------------------------------------------ #
    # Full encoder forward                                                #
    # ------------------------------------------------------------------ #
    def forward(params, input_ids, noise):
        hidden = jnp.take(params["emb"], input_ids, axis=0)          # [B, S, H]
        cos_q, sin_a, sin_b = rope_tables(S, hd, nh, cfg["rope_fraction"],
                                          cfg["rope_base"])
        padded_noise = jnp.concatenate(
            [noise, jnp.zeros_like(noise[:, :, -1:])], axis=2)

        zs, mus, sigmas = [], [], []
        for i in range(L):
            p = params["layers"][i]
            q, k, v, xnz, zms = proj_call(
                hidden, noise[:, :, i], padded_noise[:, :, i + 1],
                cos_q, sin_a, sin_b, p)
            attn = attn_call(q, k, v, p)
            hidden = mlp_call(xnz, attn, hidden, p)
            zs.append(zms[..., :Zl])
            mus.append(zms[..., Zl:2 * Zl])
            sigmas.append(zms[..., 2 * Zl:])
        return (jnp.stack(zs, axis=2), jnp.stack(mus, axis=2),
                jnp.stack(sigmas, axis=2))

    return jax.jit(forward)


# ----------------------------------------------------------------------------
# Parameter init (deterministic, synthetic) — weights pre-stacked / pre-scaled
# ----------------------------------------------------------------------------
def init_params(key, cfg, vocab_size):
    H = cfg["hidden_size"]
    L = cfg["num_layers"]
    Zl = cfg["z_size"] // L
    hd = cfg["attention_head_size"]
    nh = cfg["num_attention_heads"]
    Q = hd * nh
    M = cfg["mlp_size"]
    R = 8 if cfg["num_registers"] == 0 else cfg["num_registers"]
    n_iaf = cfg["num_iaf_attention_heads"]
    n_bid = nh - n_iaf
    z_scale = math.sqrt(1.0 / cfg["z_size"])       # uses FULL z_size (as in PyTorch)

    keys = iter(jax.random.split(key, 1 + L * 16))

    def lin(k, fan_in, fan_out):
        return jax.random.normal(k, (fan_in, fan_out), jnp.float32) / math.sqrt(fan_in)

    emb = jax.random.normal(next(keys), (vocab_size, H), jnp.float32) * 0.02

    # FusedLinear noise-input mask (transposed to [Zl, 3Q]):
    # q columns blocked, k/v columns allowed only for IAF heads (first n_iaf heads).
    row = jnp.concatenate([
        jnp.zeros((Q,), jnp.float32),
        jnp.ones((n_iaf * hd,), jnp.float32), jnp.zeros((n_bid * hd,), jnp.float32),
        jnp.ones((n_iaf * hd,), jnp.float32), jnp.zeros((n_bid * hd,), jnp.float32),
    ])
    noise_mask_T = jnp.broadcast_to(row[None, :], (Zl, 3 * Q))

    layers = []
    for _ in range(L):
        rezero_gate = 0.1   # nonzero so the residual path is exercised
        w_qkv = jnp.concatenate(
            [lin(next(keys), H, 3 * Q),
             lin(next(keys), Zl, 3 * Q),
             lin(next(keys), Zl, 3 * Q) * noise_mask_T], axis=0)      # [(H+2Zl), 3Q]
        w_mlp = jnp.concatenate(
            [lin(next(keys), H, 2 * M),
             lin(next(keys), Zl, 2 * M),
             lin(next(keys), Q, 2 * M)], axis=0)                      # [(H+Zl+Q), 2M]
        w_down = jnp.concatenate(
            [lin(next(keys), Zl, H),
             lin(next(keys), Q, H),
             lin(next(keys), M, H)], axis=0)                          # [(Zl+Q+M), H]
        p = dict(
            ln_w=jnp.ones((1, H), jnp.float32),
            ln_b=jnp.zeros((1, H), jnp.float32),
            w_z=(z_scale * lin(next(keys), H, 2 * Zl)).astype(jnp.bfloat16),
            w_qkv=w_qkv.astype(jnp.bfloat16),
            w_mlp=w_mlp.astype(jnp.bfloat16),
            w_down=(rezero_gate * w_down).astype(jnp.bfloat16),   # ReZero gate folded
            k_reg=(jax.random.normal(next(keys), (nh, R, hd), jnp.float32)
                   * 0.02).astype(jnp.bfloat16),
            v_reg=(jax.random.normal(next(keys), (nh, R, hd), jnp.float32)
                   * 0.02).astype(jnp.bfloat16),
        )
        layers.append(p)
    return dict(emb=emb, layers=layers)


if __name__ == "__main__":
    cfg = dict(hidden_size=32, mlp_size=64, attention_head_size=16,
               num_attention_heads=4, num_iaf_attention_heads=2,
               num_registers=4, num_layers=2, hidden_act="silu",
               norm_eps=1e-5, rope_fraction=1, rope_base=10000.0, z_size=16)
    vocab, bs, S = 64, 2, 8
    Zl = cfg["z_size"] // cfg["num_layers"]

    kp, ki, kn = jax.random.split(jax.random.PRNGKey(0), 3)
    params = init_params(kp, cfg, vocab)
    input_ids = jax.random.randint(ki, (bs, S), 0, vocab)
    noise = jax.random.normal(kn, (bs, S, cfg["num_layers"], Zl), dtype=jnp.float32)

    forward = make_encoder_forward(cfg, S)
    zs, mus, sigmas = forward(params, input_ids, noise)
    jax.block_until_ready((zs, mus, sigmas))

    assert zs.shape == (bs, S, cfg["num_layers"], Zl)
    assert mus.shape == zs.shape and sigmas.shape == zs.shape
    assert bool(jnp.all(jnp.isfinite(zs)))
    assert bool(jnp.all(jnp.isfinite(mus)))
    assert bool(jnp.all(jnp.isfinite(sigmas)))
    print("KERNEL_OK")
</pallas_src>

<mosaic_0001>
module attributes {stable_mosaic.version = 11 : i64} {
  func.func @attn_kernel(%arg0: i32, %arg1: i32, %arg2: i32, %arg3: memref<1x8x64xbf16, #tpu.memory_space<vmem>>, %arg4: memref<1x8x64xbf16, #tpu.memory_space<vmem>>, %arg5: memref<1x8x64xbf16, #tpu.memory_space<vmem>>, %arg6: memref<4x4x16xbf16, #tpu.memory_space<vmem>>, %arg7: memref<4x4x16xbf16, #tpu.memory_space<vmem>>, %arg8: memref<1x8x64xbf16, #tpu.memory_space<vmem>>, %arg9: memref<4x8x1xf32, #tpu.memory_space<vmem>>, %arg10: memref<4x8x1xf32, #tpu.memory_space<vmem>>, %arg11: memref<4x8x16xf32, #tpu.memory_space<vmem>>) attributes {dimension_semantics = [#tpu.dimension_semantics<parallel>, #tpu.dimension_semantics<parallel>, #tpu.dimension_semantics<arbitrary>], iteration_bounds = array<i64: 2, 1, 1>, scalar_prefetch = 0 : i64, scratch_operands = 3 : i64, tpu.core_type = #tpu.core_type<tc>, window_params = [{transform_indices = @transform_0, window_bounds = array<i64: 1, 8, 64>}, {transform_indices = @transform_1, window_bounds = array<i64: 1, 8, 64>}, {transform_indices = @transform_2, window_bounds = array<i64: 1, 8, 64>}, {pipeline_mode = #tpu.pipeline_mode<synchronous>, transform_indices = @transform_3, window_bounds = array<i64: 4, 4, 16>}, {pipeline_mode = #tpu.pipeline_mode<synchronous>, transform_indices = @transform_4, window_bounds = array<i64: 4, 4, 16>}, {transform_indices = @transform_5, window_bounds = array<i64: 1, 8, 64>}]} {
    %c0 = arith.constant 0 : index
    %c0_0 = arith.constant 0 : index
    %c0_1 = arith.constant 0 : index
    %0 = vector.load %arg3[%c0, %c0_0, %c0_1] : memref<1x8x64xbf16, #tpu.memory_space<vmem>>, vector<1x8x64xbf16>
    %1 = vector.shape_cast %0 : vector<1x8x64xbf16> to vector<8x64xbf16>
    %c0_2 = arith.constant 0 : index
    %c0_3 = arith.constant 0 : index
    %c0_4 = arith.constant 0 : index
    %2 = vector.load %arg4[%c0_2, %c0_3, %c0_4] : memref<1x8x64xbf16, #tpu.memory_space<vmem>>, vector<1x8x64xbf16>
    %3 = vector.shape_cast %2 : vector<1x8x64xbf16> to vector<8x64xbf16>
    %c0_5 = arith.constant 0 : index
    %c0_6 = arith.constant 0 : index
    %c0_7 = arith.constant 0 : index
    %4 = vector.load %arg5[%c0_5, %c0_6, %c0_7] : memref<1x8x64xbf16, #tpu.memory_space<vmem>>, vector<1x8x64xbf16>
    %5 = vector.shape_cast %4 : vector<1x8x64xbf16> to vector<8x64xbf16>
    %c0_i32 = arith.constant 0 : i32
    %6 = arith.cmpi eq, %arg2, %c0_i32 : i32
    %7 = arith.extui %6 : i1 to i32
    %c0_i32_8 = arith.constant 0 : i32
    %8 = arith.cmpi ne, %7, %c0_i32_8 : i32
    scf.if %8 {
      %177 = vector.extract_strided_slice %1 {offsets = [0, 0], sizes = [8, 16], strides = [1, 1]} : vector<8x64xbf16> to vector<8x16xbf16>
      %c0_102 = arith.constant 0 : index
      %c0_103 = arith.constant 0 : index
      %c0_104 = arith.constant 0 : index
      %178 = vector.load %arg6[%c0_102, %c0_103, %c0_104] : memref<4x4x16xbf16, #tpu.memory_space<vmem>>, vector<1x4x16xbf16>
      %179 = vector.shape_cast %178 : vector<1x4x16xbf16> to vector<4x16xbf16>
      %cst_105 = arith.constant dense<0.000000e+00> : vector<8x4xf32>
      %180 = tpu.matmul %177, %179, %cst_105 {dimension_numbers = #tpu.dot_dimension_numbers<[1], [1], [0], [0], [0, 0, 1, 0], [], []>} : vector<8x16xbf16>, vector<4x16xbf16>, vector<8x4xf32> -> vector<8x4xf32>
      %cst_106 = arith.constant 2.500000e-01 : f32
      %181 = vector.broadcast %cst_106 : f32 to vector<8x4xf32>
      %182 = arith.mulf %180, %181 : vector<8x4xf32>
      %cst_107 = arith.constant dense<0xFF800000> : vector<8xf32>
      %183 = vector.multi_reduction <maximumf>, %182, %cst_107 [1] : vector<8x4xf32> to vector<8xf32>
      %184 = vector.shape_cast %183 : vector<8xf32> to vector<8x1xf32>
      %185 = vector.broadcast %184 : vector<8x1xf32> to vector<8x4xf32>
      %186 = arith.subf %182, %185 : vector<8x4xf32>
      %187 = math.exp %186 : vector<8x4xf32>
      %c0_108 = arith.constant 0 : index
      %c0_109 = arith.constant 0 : index
      %c0_110 = arith.constant 0 : index
      %188 = vector.load %arg9[%c0_108, %c0_109, %c0_110] : memref<4x8x1xf32, #tpu.memory_space<vmem>>, vector<1x8x1xf32>
      %189 = vector.shape_cast %188 : vector<1x8x1xf32> to vector<8x1xf32>
      %190 = vector.shape_cast %184 : vector<8x1xf32> to vector<1x8x1xf32>
      tpu.vector_store %arg9[%c0_108, %c0_109, %c0_110], %190 {strides = array<i32>} : memref<4x8x1xf32, #tpu.memory_space<vmem>>, vector<1x8x1xf32>,
      %cst_111 = arith.constant dense<0.000000e+00> : vector<8xf32>
      %191 = vector.multi_reduction <add>, %187, %cst_111 [1] : vector<8x4xf32> to vector<8xf32>
      %192 = vector.shape_cast %191 : vector<8xf32> to vector<8x1xf32>
      %c0_112 = arith.constant 0 : index
      %c0_113 = arith.constant 0 : index
      %c0_114 = arith.constant 0 : index
      %193 = vector.load %arg10[%c0_112, %c0_113, %c0_114] : memref<4x8x1xf32, #tpu.memory_space<vmem>>, vector<1x8x1xf32>
      %194 = vector.shape_cast %193 : vector<1x8x1xf32> to vector<8x1xf32>
      %195 = vector.shape_cast %192 : vector<8x1xf32> to vector<1x8x1xf32>
      tpu.vector_store %arg10[%c0_112, %c0_113, %c0_114], %195 {strides = array<i32>} : memref<4x8x1xf32, #tpu.memory_space<vmem>>, vector<1x8x1xf32>,
      %196 = arith.truncf %187 : vector<8x4xf32> to vector<8x4xbf16>
      %c0_115 = arith.constant 0 : index
      %c0_116 = arith.constant 0 : index
      %c0_117 = arith.constant 0 : index
      %197 = vector.load %arg7[%c0_115, %c0_116, %c0_117] : memref<4x4x16xbf16, #tpu.memory_space<vmem>>, vector<1x4x16xbf16>
      %198 = vector.shape_cast %197 : vector<1x4x16xbf16> to vector<4x16xbf16>
      %cst_118 = arith.constant dense<0.000000e+00> : vector<8x16xf32>
      %199 = tpu.matmul %196, %198, %cst_118 {dimension_numbers = #tpu.dot_dimension_numbers<[1], [0], [0], [1], [0, 0, 1, 1], [], []>} : vector<8x4xbf16>, vector<4x16xbf16>, vector<8x16xf32> -> vector<8x16xf32>
      %c0_119 = arith.constant 0 : index
      %c0_120 = arith.constant 0 : index
      %c0_121 = arith.constant 0 : index
      %200 = vector.load %arg11[%c0_119, %c0_120, %c0_121] : memref<4x8x16xf32, #tpu.memory_space<vmem>>, vector<1x8x16xf32>
      %201 = vector.shape_cast %200 : vector<1x8x16xf32> to vector<8x16xf32>
      %202 = vector.shape_cast %199 : vector<8x16xf32> to vector<1x8x16xf32>
      tpu.vector_store %arg11[%c0_119, %c0_120, %c0_121], %202 {strides = array<i32>} : memref<4x8x16xf32, #tpu.memory_space<vmem>>, vector<1x8x16xf32>,
      %203 = vector.extract_strided_slice %1 {offsets = [0, 16], sizes = [8, 16], strides = [1, 1]} : vector<8x64xbf16> to vector<8x16xbf16>
      %c1_122 = arith.constant 1 : index
      %c0_123 = arith.constant 0 : index
      %c0_124 = arith.constant 0 : index
      %204 = vector.load %arg6[%c1_122, %c0_123, %c0_124] : memref<4x4x16xbf16, #tpu.memory_space<vmem>>, vector<1x4x16xbf16>
      %205 = vector.shape_cast %204 : vector<1x4x16xbf16> to vector<4x16xbf16>
      %cst_125 = arith.constant dense<0.000000e+00> : vector<8x4xf32>
      %206 = tpu.matmul %203, %205, %cst_125 {dimension_numbers = #tpu.dot_dimension_numbers<[1], [1], [0], [0], [0, 0, 1, 0], [], []>} : vector<8x16xbf16>, vector<4x16xbf16>, vector<8x4xf32> -> vector<8x4xf32>
      %cst_126 = arith.constant 2.500000e-01 : f32
      %207 = vector.broadcast %cst_126 : f32 to vector<8x4xf32>
      %208 = arith.mulf %206, %207 : vector<8x4xf32>
      %cst_127 = arith.constant dense<0xFF800000> : vector<8xf32>
      %209 = vector.multi_reduction <maximumf>, %208, %cst_127 [1] : vector<8x4xf32> to vector<8xf32>
      %210 = vector.shape_cast %209 : vector<8xf32> to vector<8x1xf32>
      %211 = vector.broadcast %210 : vector<8x1xf32> to vector<8x4xf32>
      %212 = arith.subf %208, %211 : vector<8x4xf32>
      %213 = math.exp %212 : vector<8x4xf32>
      %c1_128 = arith.constant 1 : index
      %c0_129 = arith.constant 0 : index
      %c0_130 = arith.constant 0 : index
      %214 = vector.load %arg9[%c1_128, %c0_129, %c0_130] : memref<4x8x1xf32, #tpu.memory_space<vmem>>, vector<1x8x1xf32>
      %215 = vector.shape_cast %214 : vector<1x8x1xf32> to vector<8x1xf32>
      %216 = vector.shape_cast %210 : vector<8x1xf32> to vector<1x8x1xf32>
      tpu.vector_store %arg9[%c1_128, %c0_129, %c0_130], %216 {strides = array<i32>} : memref<4x8x1xf32, #tpu.memory_space<vmem>>, vector<1x8x1xf32>,
      %cst_131 = arith.constant dense<0.000000e+00> : vector<8xf32>
      %217 = vector.multi_reduction <add>, %213, %cst_131 [1] : vector<8x4xf32> to vector<8xf32>
      %218 = vector.shape_cast %217 : vector<8xf32> to vector<8x1xf32>
      %c1_132 = arith.constant 1 : index
      %c0_133 = arith.constant 0 : index
      %c0_134 = arith.constant 0 : index
      %219 = vector.load %arg10[%c1_132, %c0_133, %c0_134] : memref<4x8x1xf32, #tpu.memory_space<vmem>>, vector<1x8x1xf32>
      %220 = vector.shape_cast %219 : vector<1x8x1xf32> to vector<8x1xf32>
      %221 = vector.shape_cast %218 : vector<8x1xf32> to vector<1x8x1xf32>
      tpu.vector_store %arg10[%c1_132, %c0_133, %c0_134], %221 {strides = array<i32>} : memref<4x8x1xf32, #tpu.memory_space<vmem>>, vector<1x8x1xf32>,
      %222 = arith.truncf %213 : vector<8x4xf32> to vector<8x4xbf16>
      %c1_135 = arith.constant 1 : index
      %c0_136 = arith.constant 0 : index
      %c0_137 = arith.constant 0 : index
      %223 = vector.load %arg7[%c1_135, %c0_136, %c0_137] : memref<4x4x16xbf16, #tpu.memory_space<vmem>>, vector<1x4x16xbf16>
      %224 = vector.shape_cast %223 : vector<1x4x16xbf16> to vector<4x16xbf16>
      %cst_138 = arith.constant dense<0.000000e+00> : vector<8x16xf32>
      %225 = tpu.matmul %222, %224, %cst_138 {dimension_numbers = #tpu.dot_dimension_numbers<[1], [0], [0], [1], [0, 0, 1, 1], [], []>} : vector<8x4xbf16>, vector<4x16xbf16>, vector<8x16xf32> -> vector<8x16xf32>
      %c1_139 = arith.constant 1 : index
      %c0_140 = arith.constant 0 : index
      %c0_141 = arith.constant 0 : index
      %226 = vector.load %arg11[%c1_139, %c0_140, %c0_141] : memref<4x8x16xf32, #tpu.memory_space<vmem>>, vector<1x8x16xf32>
      %227 = vector.shape_cast %226 : vector<1x8x16xf32> to vector<8x16xf32>
      %228 = vector.shape_cast %225 : vector<8x16xf32> to vector<1x8x16xf32>
      tpu.vector_store %arg11[%c1_139, %c0_140, %c0_141], %228 {strides = array<i32>} : memref<4x8x16xf32, #tpu.memory_space<vmem>>, vector<1x8x16xf32>,
      %229 = vector.extract_strided_slice %1 {offsets = [0, 32], sizes = [8, 16], strides = [1, 1]} : vector<8x64xbf16> to vector<8x16xbf16>
      %c2_142 = arith.constant 2 : index
      %c0_143 = arith.constant 0 : index
      %c0_144 = arith.constant 0 : index
      %230 = vector.load %arg6[%c2_142, %c0_143, %c0_144] : memref<4x4x16xbf16, #tpu.memory_space<vmem>>, vector<1x4x16xbf16>
      %231 = vector.shape_cast %230 : vector<1x4x16xbf16> to vector<4x16xbf16>
      %cst_145 = arith.constant dense<0.000000e+00> : vector<8x4xf32>
      %232 = tpu.matmul %229, %231, %cst_145 {dimension_numbers = #tpu.dot_dimension_numbers<[1], [1], [0], [0], [0, 0, 1, 0], [], []>} : vector<8x16xbf16>, vector<4x16xbf16>, vector<8x4xf32> -> vector<8x4xf32>
      %cst_146 = arith.constant 2.500000e-01 : f32
      %233 = vector.broadcast %cst_146 : f32 to vector<8x4xf32>
      %234 = arith.mulf %232, %233 : vector<8x4xf32>
      %cst_147 = arith.constant dense<0xFF800000> : vector<8xf32>
      %235 = vector.multi_reduction <maximumf>, %234, %cst_147 [1] : vector<8x4xf32> to vector<8xf32>
      %236 = vector.shape_cast %235 : vector<8xf32> to vector<8x1xf32>
      %237 = vector.broadcast %236 : vector<8x1xf32> to vector<8x4xf32>
      %238 = arith.subf %234, %237 : vector<8x4xf32>
      %239 = math.exp %238 : vector<8x4xf32>
      %c2_148 = arith.constant 2 : index
      %c0_149 = arith.constant 0 : index
      %c0_150 = arith.constant 0 : index
      %240 = vector.load %arg9[%c2_148, %c0_149, %c0_150] : memref<4x8x1xf32, #tpu.memory_space<vmem>>, vector<1x8x1xf32>
      %241 = vector.shape_cast %240 : vector<1x8x1xf32> to vector<8x1xf32>
      %242 = vector.shape_cast %236 : vector<8x1xf32> to vector<1x8x1xf32>
      tpu.vector_store %arg9[%c2_148, %c0_149, %c0_150], %242 {strides = array<i32>} : memref<4x8x1xf32, #tpu.memory_space<vmem>>, vector<1x8x1xf32>,
      %cst_151 = arith.constant dense<0.000000e+00> : vector<8xf32>
      %243 = vector.multi_reduction <add>, %239, %cst_151 [1] : vector<8x4xf32> to vector<8xf32>
      %244 = vector.shape_cast %243 : vector<8xf32> to vector<8x1xf32>
      %c2_152 = arith.constant 2 : index
      %c0_153 = arith.constant 0 : index
      %c0_154 = arith.constant 0 : index
      %245 = vector.load %arg10[%c2_152, %c0_153, %c0_154] : memref<4x8x1xf32, #tpu.memory_space<vmem>>, vector<1x8x1xf32>
      %246 = vector.shape_cast %245 : vector<1x8x1xf32> to vector<8x1xf32>
      %247 = vector.shape_cast %244 : vector<8x1xf32> to vector<1x8x1xf32>
      tpu.vector_store %arg10[%c2_152, %c0_153, %c0_154], %247 {strides = array<i32>} : memref<4x8x1xf32, #tpu.memory_space<vmem>>, vector<1x8x1xf32>,
      %248 = arith.truncf %239 : vector<8x4xf32> to vector<8x4xbf16>
      %c2_155 = arith.constant 2 : index
      %c0_156 = arith.constant 0 : index
      %c0_157 = arith.constant 0 : index
      %249 = vector.load %arg7[%c2_155, %c0_156, %c0_157] : memref<4x4x16xbf16, #tpu.memory_space<vmem>>, vector<1x4x16xbf16>
      %250 = vector.shape_cast %249 : vector<1x4x16xbf16> to vector<4x16xbf16>
      %cst_158 = arith.constant dense<0.000000e+00> : vector<8x16xf32>
      %251 = tpu.matmul %248, %250, %cst_158 {dimension_numbers = #tpu.dot_dimension_numbers<[1], [0], [0], [1], [0, 0, 1, 1], [], []>} : vector<8x4xbf16>, vector<4x16xbf16>, vector<8x16xf32> -> vector<8x16xf32>
      %c2_159 = arith.constant 2 : index
      %c0_160 = arith.constant 0 : index
      %c0_161 = arith.constant 0 : index
      %252 = vector.load %arg11[%c2_159, %c0_160, %c0_161] : memref<4x8x16xf32, #tpu.memory_space<vmem>>, vector<1x8x16xf32>
      %253 = vector.shape_cast %252 : vector<1x8x16xf32> to vector<8x16xf32>
      %254 = vector.shape_cast %251 : vector<8x16xf32> to vector<1x8x16xf32>
      tpu.vector_store %arg11[%c2_159, %c0_160, %c0_161], %254 {strides = array<i32>} : memref<4x8x16xf32, #tpu.memory_space<vmem>>, vector<1x8x16xf32>,
      %255 = vector.extract_strided_slice %1 {offsets = [0, 48], sizes = [8, 16], strides = [1, 1]} : vector<8x64xbf16> to vector<8x16xbf16>
      %c3_162 = arith.constant 3 : index
      %c0_163 = arith.constant 0 : index
      %c0_164 = arith.constant 0 : index
      %256 = vector.load %arg6[%c3_162, %c0_163, %c0_164] : memref<4x4x16xbf16, #tpu.memory_space<vmem>>, vector<1x4x16xbf16>
      %257 = vector.shape_cast %256 : vector<1x4x16xbf16> to vector<4x16xbf16>
      %cst_165 = arith.constant dense<0.000000e+00> : vector<8x4xf32>
      %258 = tpu.matmul %255, %257, %cst_165 {dimension_numbers = #tpu.dot_dimension_numbers<[1], [1], [0], [0], [0, 0, 1, 0], [], []>} : vector<8x16xbf16>, vector<4x16xbf16>, vector<8x4xf32> -> vector<8x4xf32>
      %cst_166 = arith.constant 2.500000e-01 : f32
      %259 = vector.broadcast %cst_166 : f32 to vector<8x4xf32>
      %260 = arith.mulf %258, %259 : vector<8x4xf32>
      %cst_167 = arith.constant dense<0xFF800000> : vector<8xf32>
      %261 = vector.multi_reduction <maximumf>, %260, %cst_167 [1] : vector<8x4xf32> to vector<8xf32>
      %262 = vector.shape_cast %261 : vector<8xf32> to vector<8x1xf32>
      %263 = vector.broadcast %262 : vector<8x1xf32> to vector<8x4xf32>
      %264 = arith.subf %260, %263 : vector<8x4xf32>
      %265 = math.exp %264 : vector<8x4xf32>
      %c3_168 = arith.constant 3 : index
      %c0_169 = arith.constant 0 : index
      %c0_170 = arith.constant 0 : index
      %266 = vector.load %arg9[%c3_168, %c0_169, %c0_170] : memref<4x8x1xf32, #tpu.memory_space<vmem>>, vector<1x8x1xf32>
      %267 = vector.shape_cast %266 : vector<1x8x1xf32> to vector<8x1xf32>
      %268 = vector.shape_cast %262 : vector<8x1xf32> to vector<1x8x1xf32>
      tpu.vector_store %arg9[%c3_168, %c0_169, %c0_170], %268 {strides = array<i32>} : memref<4x8x1xf32, #tpu.memory_space<vmem>>, vector<1x8x1xf32>,
      %cst_171 = arith.constant dense<0.000000e+00> : vector<8xf32>
      %269 = vector.multi_reduction <add>, %265, %cst_171 [1] : vector<8x4xf32> to vector<8xf32>
      %270 = vector.shape_cast %269 : vector<8xf32> to vector<8x1xf32>
      %c3_172 = arith.constant 3 : index
      %c0_173 = arith.constant 0 : index
      %c0_174 = arith.constant 0 : index
      %271 = vector.load %arg10[%c3_172, %c0_173, %c0_174] : memref<4x8x1xf32, #tpu.memory_space<vmem>>, vector<1x8x1xf32>
      %272 = vector.shape_cast %271 : vector<1x8x1xf32> to vector<8x1xf32>
      %273 = vector.shape_cast %270 : vector<8x1xf32> to vector<1x8x1xf32>
      tpu.vector_store %arg10[%c3_172, %c0_173, %c0_174], %273 {strides = array<i32>} : memref<4x8x1xf32, #tpu.memory_space<vmem>>, vector<1x8x1xf32>,
      %274 = arith.truncf %265 : vector<8x4xf32> to vector<8x4xbf16>
      %c3_175 = arith.constant 3 : index
      %c0_176 = arith.constant 0 : index
      %c0_177 = arith.constant 0 : index
      %275 = vector.load %arg7[%c3_175, %c0_176, %c0_177] : memref<4x4x16xbf16, #tpu.memory_space<vmem>>, vector<1x4x16xbf16>
      %276 = vector.shape_cast %275 : vector<1x4x16xbf16> to vector<4x16xbf16>
      %cst_178 = arith.constant dense<0.000000e+00> : vector<8x16xf32>
      %277 = tpu.matmul %274, %276, %cst_178 {dimension_numbers = #tpu.dot_dimension_numbers<[1], [0], [0], [1], [0, 0, 1, 1], [], []>} : vector<8x4xbf16>, vector<4x16xbf16>, vector<8x16xf32> -> vector<8x16xf32>
      %c3_179 = arith.constant 3 : index
      %c0_180 = arith.constant 0 : index
      %c0_181 = arith.constant 0 : index
      %278 = vector.load %arg11[%c3_179, %c0_180, %c0_181] : memref<4x8x16xf32, #tpu.memory_space<vmem>>, vector<1x8x16xf32>
      %279 = vector.shape_cast %278 : vector<1x8x16xf32> to vector<8x16xf32>
      %280 = vector.shape_cast %277 : vector<8x16xf32> to vector<1x8x16xf32>
      tpu.vector_store %arg11[%c3_179, %c0_180, %c0_181], %280 {strides = array<i32>} : memref<4x8x16xf32, #tpu.memory_space<vmem>>, vector<1x8x16xf32>,
    } else {
    }
    %9 = tpu.iota {dimensions = array<i32: 0>} : vector<8x8xi32>
    %c8_i32 = arith.constant 8 : i32
    %10 = arith.muli %arg1, %c8_i32 : i32
    %11 = vector.broadcast %10 : i32 to vector<8x8xi32>
    %12 = arith.addi %9, %11 : vector<8x8xi32>
    %13 = tpu.iota {dimensions = array<i32: 1>} : vector<8x8xi32>
    %c8_i32_9 = arith.constant 8 : i32
    %14 = arith.muli %arg2, %c8_i32_9 : i32
    %15 = vector.broadcast %14 : i32 to vector<8x8xi32>
    %16 = arith.addi %13, %15 : vector<8x8xi32>
    %17 = arith.cmpi sge, %16, %12 : vector<8x8xi32>
    %18 = vector.extract_strided_slice %1 {offsets = [0, 0], sizes = [8, 16], strides = [1, 1]} : vector<8x64xbf16> to vector<8x16xbf16>
    %19 = vector.extract_strided_slice %3 {offsets = [0, 0], sizes = [8, 16], strides = [1, 1]} : vector<8x64xbf16> to vector<8x16xbf16>
    %20 = vector.extract_strided_slice %5 {offsets = [0, 0], sizes = [8, 16], strides = [1, 1]} : vector<8x64xbf16> to vector<8x16xbf16>
    %cst = arith.constant dense<0.000000e+00> : vector<8x8xf32>
    %21 = tpu.matmul %18, %19, %cst {dimension_numbers = #tpu.dot_dimension_numbers<[1], [1], [0], [0], [0, 0, 1, 0], [], []>} : vector<8x16xbf16>, vector<8x16xbf16>, vector<8x8xf32> -> vector<8x8xf32>
    %cst_10 = arith.constant 2.500000e-01 : f32
    %22 = vector.broadcast %cst_10 : f32 to vector<8x8xf32>
    %23 = arith.mulf %21, %22 : vector<8x8xf32>
    %cst_11 = arith.constant -1.000000e+30 : f32
    %24 = vector.broadcast %cst_11 : f32 to vector<8x8xf32>
    %25 = arith.select %17, %24, %23 : vector<8x8xi1>, vector<8x8xf32>
    %c0_12 = arith.constant 0 : index
    %c0_13 = arith.constant 0 : index
    %c0_14 = arith.constant 0 : index
    %26 = vector.load %arg9[%c0_12, %c0_13, %c0_14] : memref<4x8x1xf32, #tpu.memory_space<vmem>>, vector<1x8x1xf32>
    %27 = vector.shape_cast %26 : vector<1x8x1xf32> to vector<8x1xf32>
    %cst_15 = arith.constant dense<0xFF800000> : vector<8xf32>
    %28 = vector.multi_reduction <maximumf>, %25, %cst_15 [1] : vector<8x8xf32> to vector<8xf32>
    %29 = vector.shape_cast %28 : vector<8xf32> to vector<8x1xf32>
    %30 = arith.maximumf %27, %29 : vector<8x1xf32>
    %31 = arith.subf %27, %30 : vector<8x1xf32>
    %32 = math.exp %31 : vector<8x1xf32>
    %33 = vector.broadcast %30 : vector<8x1xf32> to vector<8x8xf32>
    %34 = arith.subf %25, %33 : vector<8x8xf32>
    %35 = math.exp %34 : vector<8x8xf32>
    %c0_16 = arith.constant 0 : index
    %c0_17 = arith.constant 0 : index
    %c0_18 = arith.constant 0 : index
    %36 = vector.load %arg10[%c0_16, %c0_17, %c0_18] : memref<4x8x1xf32, #tpu.memory_space<vmem>>, vector<1x8x1xf32>
    %37 = vector.shape_cast %36 : vector<1x8x1xf32> to vector<8x1xf32>
    %38 = arith.mulf %32, %37 : vector<8x1xf32>
    %cst_19 = arith.constant dense<0.000000e+00> : vector<8xf32>
    %39 = vector.multi_reduction <add>, %35, %cst_19 [1] : vector<8x8xf32> to vector<8xf32>
    %40 = vector.shape_cast %39 : vector<8xf32> to vector<8x1xf32>
    %41 = arith.addf %38, %40 : vector<8x1xf32>
    %c0_20 = arith.constant 0 : index
    %c0_21 = arith.constant 0 : index
    %c0_22 = arith.constant 0 : index
    %42 = vector.load %arg10[%c0_20, %c0_21, %c0_22] : memref<4x8x1xf32, #tpu.memory_space<vmem>>, vector<1x8x1xf32>
    %43 = vector.shape_cast %42 : vector<1x8x1xf32> to vector<8x1xf32>
    %44 = vector.shape_cast %41 : vector<8x1xf32> to vector<1x8x1xf32>
    tpu.vector_store %arg10[%c0_20, %c0_21, %c0_22], %44 {strides = array<i32>} : memref<4x8x1xf32, #tpu.memory_space<vmem>>, vector<1x8x1xf32>,
    %c0_23 = arith.constant 0 : index
    %c0_24 = arith.constant 0 : index
    %c0_25 = arith.constant 0 : index
    %45 = vector.load %arg11[%c0_23, %c0_24, %c0_25] : memref<4x8x16xf32, #tpu.memory_space<vmem>>, vector<1x8x16xf32>
    %46 = vector.shape_cast %45 : vector<1x8x16xf32> to vector<8x16xf32>
    %47 = vector.broadcast %32 : vector<8x1xf32> to vector<8x16xf32>
    %48 = arith.mulf %47, %46 : vector<8x16xf32>
    %49 = arith.truncf %35 : vector<8x8xf32> to vector<8x8xbf16>
    %cst_26 = arith.constant dense<0.000000e+00> : vector<8x16xf32>
    %50 = tpu.matmul %49, %20, %cst_26 {dimension_numbers = #tpu.dot_dimension_numbers<[1], [0], [0], [1], [0, 0, 1, 1], [], []>} : vector<8x8xbf16>, vector<8x16xbf16>, vector<8x16xf32> -> vector<8x16xf32>
    %51 = arith.addf %48, %50 : vector<8x16xf32>
    %c0_27 = arith.constant 0 : index
    %c0_28 = arith.constant 0 : index
    %c0_29 = arith.constant 0 : index
    %52 = vector.load %arg11[%c0_27, %c0_28, %c0_29] : memref<4x8x16xf32, #tpu.memory_space<vmem>>, vector<1x8x16xf32>
    %53 = vector.shape_cast %52 : vector<1x8x16xf32> to vector<8x16xf32>
    %54 = vector.shape_cast %51 : vector<8x16xf32> to vector<1x8x16xf32>
    tpu.vector_store %arg11[%c0_27, %c0_28, %c0_29], %54 {strides = array<i32>} : memref<4x8x16xf32, #tpu.memory_space<vmem>>, vector<1x8x16xf32>,
    %c0_30 = arith.constant 0 : index
    %c0_31 = arith.constant 0 : index
    %c0_32 = arith.constant 0 : index
    %55 = vector.load %arg9[%c0_30, %c0_31, %c0_32] : memref<4x8x1xf32, #tpu.memory_space<vmem>>, vector<1x8x1xf32>
    %56 = vector.shape_cast %55 : vector<1x8x1xf32> to vector<8x1xf32>
    %57 = vector.shape_cast %30 : vector<8x1xf32> to vector<1x8x1xf32>
    tpu.vector_store %arg9[%c0_30, %c0_31, %c0_32], %57 {strides = array<i32>} : memref<4x8x1xf32, #tpu.memory_space<vmem>>, vector<1x8x1xf32>,
    %58 = vector.extract_strided_slice %1 {offsets = [0, 16], sizes = [8, 16], strides = [1, 1]} : vector<8x64xbf16> to vector<8x16xbf16>
    %59 = vector.extract_strided_slice %3 {offsets = [0, 16], sizes = [8, 16], strides = [1, 1]} : vector<8x64xbf16> to vector<8x16xbf16>
    %60 = vector.extract_strided_slice %5 {offsets = [0, 16], sizes = [8, 16], strides = [1, 1]} : vector<8x64xbf16> to vector<8x16xbf16>
    %cst_33 = arith.constant dense<0.000000e+00> : vector<8x8xf32>
    %61 = tpu.matmul %58, %59, %cst_33 {dimension_numbers = #tpu.dot_dimension_numbers<[1], [1], [0], [0], [0, 0, 1, 0], [], []>} : vector<8x16xbf16>, vector<8x16xbf16>, vector<8x8xf32> -> vector<8x8xf32>
    %cst_34 = arith.constant 2.500000e-01 : f32
    %62 = vector.broadcast %cst_34 : f32 to vector<8x8xf32>
    %63 = arith.mulf %61, %62 : vector<8x8xf32>
    %cst_35 = arith.constant -1.000000e+30 : f32
    %64 = vector.broadcast %cst_35 : f32 to vector<8x8xf32>
    %65 = arith.select %17, %64, %63 : vector<8x8xi1>, vector<8x8xf32>
    %c1 = arith.constant 1 : index
    %c0_36 = arith.constant 0 : index
    %c0_37 = arith.constant 0 : index
    %66 = vector.load %arg9[%c1, %c0_36, %c0_37] : memref<4x8x1xf32, #tpu.memory_space<vmem>>, vector<1x8x1xf32>
    %67 = vector.shape_cast %66 : vector<1x8x1xf32> to vector<8x1xf32>
    %cst_38 = arith.constant dense<0xFF800000> : vector<8xf32>
    %68 = vector.multi_reduction <maximumf>, %65, %cst_38 [1] : vector<8x8xf32> to vector<8xf32>
    %69 = vector.shape_cast %68 : vector<8xf32> to vector<8x1xf32>
    %70 = arith.maximumf %67, %69 : vector<8x1xf32>
    %71 = arith.subf %67, %70 : vector<8x1xf32>
    %72 = math.exp %71 : vector<8x1xf32>
    %73 = vector.broadcast %70 : vector<8x1xf32> to vector<8x8xf32>
    %74 = arith.subf %65, %73 : vector<8x8xf32>
    %75 = math.exp %74 : vector<8x8xf32>
    %c1_39 = arith.constant 1 : index
    %c0_40 = arith.constant 0 : index
    %c0_41 = arith.constant 0 : index
    %76 = vector.load %arg10[%c1_39, %c0_40, %c0_41] : memref<4x8x1xf32, #tpu.memory_space<vmem>>, vector<1x8x1xf32>
    %77 = vector.shape_cast %76 : vector<1x8x1xf32> to vector<8x1xf32>
    %78 = arith.mulf %72, %77 : vector<8x1xf32>
    %cst_42 = arith.constant dense<0.000000e+00> : vector<8xf32>
    %79 = vector.multi_reduction <add>, %75, %cst_42 [1] : vector<8x8xf32> to vector<8xf32>
    %80 = vector.shape_cast %79 : vector<8xf32> to vector<8x1xf32>
    %81 = arith.addf %78, %80 : vector<8x1xf32>
    %c1_43 = arith.constant 1 : index
    %c0_44 = arith.constant 0 : index
    %c0_45 = arith.constant 0 : index
    %82 = vector.load %arg10[%c1_43, %c0_44, %c0_45] : memref<4x8x1xf32, #tpu.memory_space<vmem>>, vector<1x8x1xf32>
    %83 = vector.shape_cast %82 : vector<1x8x1xf32> to vector<8x1xf32>
    %84 = vector.shape_cast %81 : vector<8x1xf32> to vector<1x8x1xf32>
    tpu.vector_store %arg10[%c1_43, %c0_44, %c0_45], %84 {strides = array<i32>} : memref<4x8x1xf32, #tpu.memory_space<vmem>>, vector<1x8x1xf32>,
    %c1_46 = arith.constant 1 : index
    %c0_47 = arith.constant 0 : index
    %c0_48 = arith.constant 0 : index
    %85 = vector.load %arg11[%c1_46, %c0_47, %c0_48] : memref<4x8x16xf32, #tpu.memory_space<vmem>>, vector<1x8x16xf32>
    %86 = vector.shape_cast %85 : vector<1x8x16xf32> to vector<8x16xf32>
    %87 = vector.broadcast %72 : vector<8x1xf32> to vector<8x16xf32>
    %88 = arith.mulf %87, %86 : vector<8x16xf32>
    %89 = arith.truncf %75 : vector<8x8xf32> to vector<8x8xbf16>
    %cst_49 = arith.constant dense<0.000000e+00> : vector<8x16xf32>
    %90 = tpu.matmul %89, %60, %cst_49 {dimension_numbers = #tpu.dot_dimension_numbers<[1], [0], [0], [1], [0, 0, 1, 1], [], []>} : vector<8x8xbf16>, vector<8x16xbf16>, vector<8x16xf32> -> vector<8x16xf32>
    %91 = arith.addf %88, %90 : vector<8x16xf32>
    %c1_50 = arith.constant 1 : index
    %c0_51 = arith.constant 0 : index
    %c0_52 = arith.constant 0 : index
    %92 = vector.load %arg11[%c1_50, %c0_51, %c0_52] : memref<4x8x16xf32, #tpu.memory_space<vmem>>, vector<1x8x16xf32>
    %93 = vector.shape_cast %92 : vector<1x8x16xf32> to vector<8x16xf32>
    %94 = vector.shape_cast %91 : vector<8x16xf32> to vector<1x8x16xf32>
    tpu.vector_store %arg11[%c1_50, %c0_51, %c0_52], %94 {strides = array<i32>} : memref<4x8x16xf32, #tpu.memory_space<vmem>>, vector<1x8x16xf32>,
    %c1_53 = arith.constant 1 : index
    %c0_54 = arith.constant 0 : index
    %c0_55 = arith.constant 0 : index
    %95 = vector.load %arg9[%c1_53, %c0_54, %c0_55] : memref<4x8x1xf32, #tpu.memory_space<vmem>>, vector<1x8x1xf32>
    %96 = vector.shape_cast %95 : vector<1x8x1xf32> to vector<8x1xf32>
    %97 = vector.shape_cast %70 : vector<8x1xf32> to vector<1x8x1xf32>
    tpu.vector_store %arg9[%c1_53, %c0_54, %c0_55], %97 {strides = array<i32>} : memref<4x8x1xf32, #tpu.memory_space<vmem>>, vector<1x8x1xf32>,
    %98 = vector.extract_strided_slice %1 {offsets = [0, 32], sizes = [8, 16], strides = [1, 1]} : vector<8x64xbf16> to vector<8x16xbf16>
    %99 = vector.extract_strided_slice %3 {offsets = [0, 32], sizes = [8, 16], strides = [1, 1]} : vector<8x64xbf16> to vector<8x16xbf16>
    %100 = vector.extract_strided_slice %5 {offsets = [0, 32], sizes = [8, 16], strides = [1, 1]} : vector<8x64xbf16> to vector<8x16xbf16>
    %cst_56 = arith.constant dense<0.000000e+00> : vector<8x8xf32>
    %101 = tpu.matmul %98, %99, %cst_56 {dimension_numbers = #tpu.dot_dimension_numbers<[1], [1], [0], [0], [0, 0, 1, 0], [], []>} : vector<8x16xbf16>, vector<8x16xbf16>, vector<8x8xf32> -> vector<8x8xf32>
    %cst_57 = arith.constant 2.500000e-01 : f32
    %102 = vector.broadcast %cst_57 : f32 to vector<8x8xf32>
    %103 = arith.mulf %101, %102 : vector<8x8xf32>
    %c2 = arith.constant 2 : index
    %c0_58 = arith.constant 0 : index
    %c0_59 = arith.constant 0 : index
    %104 = vector.load %arg9[%c2, %c0_58, %c0_59] : memref<4x8x1xf32, #tpu.memory_space<vmem>>, vector<1x8x1xf32>
    %105 = vector.shape_cast %104 : vector<1x8x1xf32> to vector<8x1xf32>
    %cst_60 = arith.constant dense<0xFF800000> : vector<8xf32>
    %106 = vector.multi_reduction <maximumf>, %103, %cst_60 [1] : vector<8x8xf32> to vector<8xf32>
    %107 = vector.shape_cast %106 : vector<8xf32> to vector<8x1xf32>
    %108 = arith.maximumf %105, %107 : vector<8x1xf32>
    %109 = arith.subf %105, %108 : vector<8x1xf32>
    %110 = math.exp %109 : vector<8x1xf32>
    %111 = vector.broadcast %108 : vector<8x1xf32> to vector<8x8xf32>
    %112 = arith.subf %103, %111 : vector<8x8xf32>
    %113 = math.exp %112 : vector<8x8xf32>
    %c2_61 = arith.constant 2 : index
    %c0_62 = arith.constant 0 : index
    %c0_63 = arith.constant 0 : index
    %114 = vector.load %arg10[%c2_61, %c0_62, %c0_63] : memref<4x8x1xf32, #tpu.memory_space<vmem>>, vector<1x8x1xf32>
    %115 = vector.shape_cast %114 : vector<1x8x1xf32> to vector<8x1xf32>
    %116 = arith.mulf %110, %115 : vector<8x1xf32>
    %cst_64 = arith.constant dense<0.000000e+00> : vector<8xf32>
    %117 = vector.multi_reduction <add>, %113, %cst_64 [1] : vector<8x8xf32> to vector<8xf32>
    %118 = vector.shape_cast %117 : vector<8xf32> to vector<8x1xf32>
    %119 = arith.addf %116, %118 : vector<8x1xf32>
    %c2_65 = arith.constant 2 : index
    %c0_66 = arith.constant 0 : index
    %c0_67 = arith.constant 0 : index
    %120 = vector.load %arg10[%c2_65, %c0_66, %c0_67] : memref<4x8x1xf32, #tpu.memory_space<vmem>>, vector<1x8x1xf32>
    %121 = vector.shape_cast %120 : vector<1x8x1xf32> to vector<8x1xf32>
    %122 = vector.shape_cast %119 : vector<8x1xf32> to vector<1x8x1xf32>
    tpu.vector_store %arg10[%c2_65, %c0_66, %c0_67], %122 {strides = array<i32>} : memref<4x8x1xf32, #tpu.memory_space<vmem>>, vector<1x8x1xf32>,
    %c2_68 = arith.constant 2 : index
    %c0_69 = arith.constant 0 : index
    %c0_70 = arith.constant 0 : index
    %123 = vector.load %arg11[%c2_68, %c0_69, %c0_70] : memref<4x8x16xf32, #tpu.memory_space<vmem>>, vector<1x8x16xf32>
    %124 = vector.shape_cast %123 : vector<1x8x16xf32> to vector<8x16xf32>
    %125 = vector.broadcast %110 : vector<8x1xf32> to vector<8x16xf32>
    %126 = arith.mulf %125, %124 : vector<8x16xf32>
    %127 = arith.truncf %113 : vector<8x8xf32> to vector<8x8xbf16>
    %cst_71 = arith.constant dense<0.000000e+00> : vector<8x16xf32>
    %128 = tpu.matmul %127, %100, %cst_71 {dimension_numbers = #tpu.dot_dimension_numbers<[1], [0], [0], [1], [0, 0, 1, 1], [], []>} : vector<8x8xbf16>, vector<8x16xbf16>, vector<8x16xf32> -> vector<8x16xf32>
    %129 = arith.addf %126, %128 : vector<8x16xf32>
    %c2_72 = arith.constant 2 : index
    %c0_73 = arith.constant 0 : index
    %c0_74 = arith.constant 0 : index
    %130 = vector.load %arg11[%c2_72, %c0_73, %c0_74] : memref<4x8x16xf32, #tpu.memory_space<vmem>>, vector<1x8x16xf32>
    %131 = vector.shape_cast %130 : vector<1x8x16xf32> to vector<8x16xf32>
    %132 = vector.shape_cast %129 : vector<8x16xf32> to vector<1x8x16xf32>
    tpu.vector_store %arg11[%c2_72, %c0_73, %c0_74], %132 {strides = array<i32>} : memref<4x8x16xf32, #tpu.memory_space<vmem>>, vector<1x8x16xf32>,
    %c2_75 = arith.constant 2 : index
    %c0_76 = arith.constant 0 : index
    %c0_77 = arith.constant 0 : index
    %133 = vector.load %arg9[%c2_75, %c0_76, %c0_77] : memref<4x8x1xf32, #tpu.memory_space<vmem>>, vector<1x8x1xf32>
    %134 = vector.shape_cast %133 : vector<1x8x1xf32> to vector<8x1xf32>
    %135 = vector.shape_cast %108 : vector<8x1xf32> to vector<1x8x1xf32>
    tpu.vector_store %arg9[%c2_75, %c0_76, %c0_77], %135 {strides = array<i32>} : memref<4x8x1xf32, #tpu.memory_space<vmem>>, vector<1x8x1xf32>,
    %136 = vector.extract_strided_slice %1 {offsets = [0, 48], sizes = [8, 16], strides = [1, 1]} : vector<8x64xbf16> to vector<8x16xbf16>
    %137 = vector.extract_strided_slice %3 {offsets = [0, 48], sizes = [8, 16], strides = [1, 1]} : vector<8x64xbf16> to vector<8x16xbf16>
    %138 = vector.extract_strided_slice %5 {offsets = [0, 48], sizes = [8, 16], strides = [1, 1]} : vector<8x64xbf16> to vector<8x16xbf16>
    %cst_78 = arith.constant dense<0.000000e+00> : vector<8x8xf32>
    %139 = tpu.matmul %136, %137, %cst_78 {dimension_numbers = #tpu.dot_dimension_numbers<[1], [1], [0], [0], [0, 0, 1, 0], [], []>} : vector<8x16xbf16>, vector<8x16xbf16>, vector<8x8xf32> -> vector<8x8xf32>
    %cst_79 = arith.constant 2.500000e-01 : f32
    %140 = vector.broadcast %cst_79 : f32 to vector<8x8xf32>
    %141 = arith.mulf %139, %140 : vector<8x8xf32>
    %c3 = arith.constant 3 : index
    %c0_80 = arith.constant 0 : index
    %c0_81 = arith.constant 0 : index
    %142 = vector.load %arg9[%c3, %c0_80, %c0_81] : memref<4x8x1xf32, #tpu.memory_space<vmem>>, vector<1x8x1xf32>
    %143 = vector.shape_cast %142 : vector<1x8x1xf32> to vector<8x1xf32>
    %cst_82 = arith.constant dense<0xFF800000> : vector<8xf32>
    %144 = vector.multi_reduction <maximumf>, %141, %cst_82 [1] : vector<8x8xf32> to vector<8xf32>
    %145 = vector.shape_cast %144 : vector<8xf32> to vector<8x1xf32>
    %146 = arith.maximumf %143, %145 : vector<8x1xf32>
    %147 = arith.subf %143, %146 : vector<8x1xf32>
    %148 = math.exp %147 : vector<8x1xf32>
    %149 = vector.broadcast %146 : vector<8x1xf32> to vector<8x8xf32>
    %150 = arith.subf %141, %149 : vector<8x8xf32>
    %151 = math.exp %150 : vector<8x8xf32>
    %c3_83 = arith.constant 3 : index
    %c0_84 = arith.constant 0 : index
    %c0_85 = arith.constant 0 : index
    %152 = vector.load %arg10[%c3_83, %c0_84, %c0_85] : memref<4x8x1xf32, #tpu.memory_space<vmem>>, vector<1x8x1xf32>
    %153 = vector.shape_cast %152 : vector<1x8x1xf32> to vector<8x1xf32>
    %154 = arith.mulf %148, %153 : vector<8x1xf32>
    %cst_86 = arith.constant dense<0.000000e+00> : vector<8xf32>
    %155 = vector.multi_reduction <add>, %151, %cst_86 [1] : vector<8x8xf32> to vector<8xf32>
    %156 = vector.shape_cast %155 : vector<8xf32> to vector<8x1xf32>
    %157 = arith.addf %154, %156 : vector<8x1xf32>
    %c3_87 = arith.constant 3 : index
    %c0_88 = arith.constant 0 : index
    %c0_89 = arith.constant 0 : index
    %158 = vector.load %arg10[%c3_87, %c0_88, %c0_89] : memref<4x8x1xf32, #tpu.memory_space<vmem>>, vector<1x8x1xf32>
    %159 = vector.shape_cast %158 : vector<1x8x1xf32> to vector<8x1xf32>
    %160 = vector.shape_cast %157 : vector<8x1xf32> to vector<1x8x1xf32>
    tpu.vector_store %arg10[%c3_87, %c0_88, %c0_89], %160 {strides = array<i32>} : memref<4x8x1xf32, #tpu.memory_space<vmem>>, vector<1x8x1xf32>,
    %c3_90 = arith.constant 3 : index
    %c0_91 = arith.constant 0 : index
    %c0_92 = arith.constant 0 : index
    %161 = vector.load %arg11[%c3_90, %c0_91, %c0_92] : memref<4x8x16xf32, #tpu.memory_space<vmem>>, vector<1x8x16xf32>
    %162 = vector.shape_cast %161 : vector<1x8x16xf32> to vector<8x16xf32>
    %163 = vector.broadcast %148 : vector<8x1xf32> to vector<8x16xf32>
    %164 = arith.mulf %163, %162 : vector<8x16xf32>
    %165 = arith.truncf %151 : vector<8x8xf32> to vector<8x8xbf16>
    %cst_93 = arith.constant dense<0.000000e+00> : vector<8x16xf32>
    %166 = tpu.matmul %165, %138, %cst_93 {dimension_numbers = #tpu.dot_dimension_numbers<[1], [0], [0], [1], [0, 0, 1, 1], [], []>} : vector<8x8xbf16>, vector<8x16xbf16>, vector<8x16xf32> -> vector<8x16xf32>
    %167 = arith.addf %164, %166 : vector<8x16xf32>
    %c3_94 = arith.constant 3 : index
    %c0_95 = arith.constant 0 : index
    %c0_96 = arith.constant 0 : index
    %168 = vector.load %arg11[%c3_94, %c0_95, %c0_96] : memref<4x8x16xf32, #tpu.memory_space<vmem>>, vector<1x8x16xf32>
    %169 = vector.shape_cast %168 : vector<1x8x16xf32> to vector<8x16xf32>
    %170 = vector.shape_cast %167 : vector<8x16xf32> to vector<1x8x16xf32>
    tpu.vector_store %arg11[%c3_94, %c0_95, %c0_96], %170 {strides = array<i32>} : memref<4x8x16xf32, #tpu.memory_space<vmem>>, vector<1x8x16xf32>,
    %c3_97 = arith.constant 3 : index
    %c0_98 = arith.constant 0 : index
    %c0_99 = arith.constant 0 : index
    %171 = vector.load %arg9[%c3_97, %c0_98, %c0_99] : memref<4x8x1xf32, #tpu.memory_space<vmem>>, vector<1x8x1xf32>
    %172 = vector.shape_cast %171 : vector<1x8x1xf32> to vector<8x1xf32>
    %173 = vector.shape_cast %146 : vector<8x1xf32> to vector<1x8x1xf32>
    tpu.vector_store %arg9[%c3_97, %c0_98, %c0_99], %173 {strides = array<i32>} : memref<4x8x1xf32, #tpu.memory_space<vmem>>, vector<1x8x1xf32>,
    %c0_i32_100 = arith.constant 0 : i32
    %174 = arith.cmpi eq, %arg2, %c0_i32_100 : i32
    %175 = arith.extui %174 : i1 to i32
    %c0_i32_101 = arith.constant 0 : i32
    %176 = arith.cmpi ne, %175, %c0_i32_101 : i32
    scf.if %176 {
      %c0_102 = arith.constant 0 : index
      %c0_103 = arith.constant 0 : index
      %c0_104 = arith.constant 0 : index
      %177 = vector.load %arg11[%c0_102, %c0_103, %c0_104] : memref<4x8x16xf32, #tpu.memory_space<vmem>>, vector<1x8x16xf32>
      %178 = vector.shape_cast %177 : vector<1x8x16xf32> to vector<8x16xf32>
      %c0_105 = arith.constant 0 : index
      %c0_106 = arith.constant 0 : index
      %c0_107 = arith.constant 0 : index
      %179 = vector.load %arg10[%c0_105, %c0_106, %c0_107] : memref<4x8x1xf32, #tpu.memory_space<vmem>>, vector<1x8x1xf32>
      %180 = vector.shape_cast %179 : vector<1x8x1xf32> to vector<8x1xf32>
      %181 = tpu.reciprocal %180 {approx = true} : vector<8x1xf32> -> vector<8x1xf32>
      %182 = vector.broadcast %181 : vector<8x1xf32> to vector<8x16xf32>
      %183 = arith.mulf %178, %182 : vector<8x16xf32>
      %c1_108 = arith.constant 1 : index
      %c0_109 = arith.constant 0 : index
      %c0_110 = arith.constant 0 : index
      %184 = vector.load %arg11[%c1_108, %c0_109, %c0_110] : memref<4x8x16xf32, #tpu.memory_space<vmem>>, vector<1x8x16xf32>
      %185 = vector.shape_cast %184 : vector<1x8x16xf32> to vector<8x16xf32>
      %c1_111 = arith.constant 1 : index
      %c0_112 = arith.constant 0 : index
      %c0_113 = arith.constant 0 : index
      %186 = vector.load %arg10[%c1_111, %c0_112, %c0_113] : memref<4x8x1xf32, #tpu.memory_space<vmem>>, vector<1x8x1xf32>
      %187 = vector.shape_cast %186 : vector<1x8x1xf32> to vector<8x1xf32>
      %188 = tpu.reciprocal %187 {approx = true} : vector<8x1xf32> -> vector<8x1xf32>
      %189 = vector.broadcast %188 : vector<8x1xf32> to vector<8x16xf32>
      %190 = arith.mulf %185, %189 : vector<8x16xf32>
      %c2_114 = arith.constant 2 : index
      %c0_115 = arith.constant 0 : index
      %c0_116 = arith.constant 0 : index
      %191 = vector.load %arg11[%c2_114, %c0_115, %c0_116] : memref<4x8x16xf32, #tpu.memory_space<vmem>>, vector<1x8x16xf32>
      %192 = vector.shape_cast %191 : vector<1x8x16xf32> to vector<8x16xf32>
      %c2_117 = arith.constant 2 : index
      %c0_118 = arith.constant 0 : index
      %c0_119 = arith.constant 0 : index
      %193 = vector.load %arg10[%c2_117, %c0_118, %c0_119] : memref<4x8x1xf32, #tpu.memory_space<vmem>>, vector<1x8x1xf32>
      %194 = vector.shape_cast %193 : vector<1x8x1xf32> to vector<8x1xf32>
      %195 = tpu.reciprocal %194 {approx = true} : vector<8x1xf32> -> vector<8x1xf32>
      %196 = vector.broadcast %195 : vector<8x1xf32> to vector<8x16xf32>
      %197 = arith.mulf %192, %196 : vector<8x16xf32>
      %c3_120 = arith.constant 3 : index
      %c0_121 = arith.constant 0 : index
      %c0_122 = arith.constant 0 : index
      %198 = vector.load %arg11[%c3_120, %c0_121, %c0_122] : memref<4x8x16xf32, #tpu.memory_space<vmem>>, vector<1x8x16xf32>
      %199 = vector.shape_cast %198 : vector<1x8x16xf32> to vector<8x16xf32>
      %c3_123 = arith.constant 3 : index
      %c0_124 = arith.constant 0 : index
      %c0_125 = arith.constant 0 : index
      %200 = vector.load %arg10[%c3_123, %c0_124, %c0_125] : memref<4x8x1xf32, #tpu.memory_space<vmem>>, vector<1x8x1xf32>
      %201 = vector.shape_cast %200 : vector<1x8x1xf32> to vector<8x1xf32>
      %202 = tpu.reciprocal %201 {approx = true} : vector<8x1xf32> -> vector<8x1xf32>
      %203 = vector.broadcast %202 : vector<8x1xf32> to vector<8x16xf32>
      %204 = arith.mulf %199, %203 : vector<8x16xf32>
      %205 = tpu.concatenate %183, %190, %197, %204 in 1 : vector<8x16xf32>, vector<8x16xf32>, vector<8x16xf32>, vector<8x16xf32> -> vector<8x64xf32>
      %206 = arith.truncf %205 : vector<8x64xf32> to vector<8x64xbf16>
      %c0_126 = arith.constant 0 : index
      %c0_127 = arith.constant 0 : index
      %c0_128 = arith.constant 0 : index
      %207 = vector.load %arg8[%c0_126, %c0_127, %c0_128] : memref<1x8x64xbf16, #tpu.memory_space<vmem>>, vector<1x8x64xbf16>
      %208 = vector.shape_cast %207 : vector<1x8x64xbf16> to vector<8x64xbf16>
      %209 = vector.shape_cast %206 : vector<8x64xbf16> to vector<1x8x64xbf16>
      tpu.vector_store %arg8[%c0_126, %c0_127, %c0_128], %209 {strides = array<i32>} : memref<1x8x64xbf16, #tpu.memory_space<vmem>>, vector<1x8x64xbf16>,
    } else {
    }
    return
  }
  func.func @transform_0(%arg0: i32, %arg1: i32, %arg2: i32) -> (i32, i32, i32) {
    %c0_i32 = arith.constant 0 : i32
    %c0_i32_0 = arith.constant 0 : i32
    return %arg0, %arg1, %c0_i32 : i32, i32, i32
  }
  func.func @transform_1(%arg0: i32, %arg1: i32, %arg2: i32) -> (i32, i32, i32) {
    %c0_i32 = arith.constant 0 : i32
    %c0_i32_0 = arith.constant 0 : i32
    return %arg0, %arg2, %c0_i32 : i32, i32, i32
  }
  func.func @transform_2(%arg0: i32, %arg1: i32, %arg2: i32) -> (i32, i32, i32) {
    %c0_i32 = arith.constant 0 : i32
    %c0_i32_0 = arith.constant 0 : i32
    return %arg0, %arg2, %c0_i32 : i32, i32, i32
  }
  func.func @transform_3(%arg0: i32, %arg1: i32, %arg2: i32) -> (i32, i32, i32) {
    %c0_i32 = arith.constant 0 : i32
    %c0_i32_0 = arith.constant 0 : i32
    %c0_i32_1 = arith.constant 0 : i32
    %c0_i32_2 = arith.constant 0 : i32
    return %c0_i32, %c0_i32_0, %c0_i32_1 : i32, i32, i32
  }
  func.func @transform_4(%arg0: i32, %arg1: i32, %arg2: i32) -> (i32, i32, i32) {
    %c0_i32 = arith.constant 0 : i32
    %c0_i32_0 = arith.constant 0 : i32
    %c0_i32_1 = arith.constant 0 : i32
    %c0_i32_2 = arith.constant 0 : i32
    return %c0_i32, %c0_i32_0, %c0_i32_1 : i32, i32, i32
  }
  func.func @transform_5(%arg0: i32, %arg1: i32, %arg2: i32) -> (i32, i32, i32) {
    %c0_i32 = arith.constant 0 : i32
    %c0_i32_0 = arith.constant 0 : i32
    return %arg0, %arg1, %c0_i32 : i32, i32, i32
  }
}

module attributes {stable_mosaic.version = 11 : i64} {
  func.func @proj_kernel(%arg0: i32, %arg1: i32, %arg2: memref<1x8x32xf32, #tpu.memory_space<vmem>>, %arg3: memref<1x8x8xf32, #tpu.memory_space<vmem>>, %arg4: memref<1x8x8xf32, #tpu.memory_space<vmem>>, %arg5: memref<8x64xf32, #tpu.memory_space<vmem>>, %arg6: memref<8x64xf32, #tpu.memory_space<vmem>>, %arg7: memref<8x64xf32, #tpu.memory_space<vmem>>, %arg8: memref<1x32xf32, #tpu.memory_space<vmem>>, %arg9: memref<1x32xf32, #tpu.memory_space<vmem>>, %arg10: memref<32x16xbf16, #tpu.memory_space<vmem>>, %arg11: memref<48x192xbf16, #tpu.memory_space<vmem>>, %arg12: memref<1x8x64xbf16, #tpu.memory_space<vmem>>, %arg13: memref<1x8x64xbf16, #tpu.memory_space<vmem>>, %arg14: memref<1x8x64xbf16, #tpu.memory_space<vmem>>, %arg15: memref<1x8x40xbf16, #tpu.memory_space<vmem>>, %arg16: memref<1x8x24xf32, #tpu.memory_space<vmem>>) attributes {dimension_semantics = [#tpu.dimension_semantics<parallel>, #tpu.dimension_semantics<parallel>], iteration_bounds = array<i64: 2, 1>, scalar_prefetch = 0 : i64, scratch_operands = 0 : i64, tpu.core_type = #tpu.core_type<tc>, window_params = [{transform_indices = @transform_0, window_bounds = array<i64: 1, 8, 32>}, {transform_indices = @transform_1, window_bounds = array<i64: 1, 8, 8>}, {transform_indices = @transform_2, window_bounds = array<i64: 1, 8, 8>}, {transform_indices = @transform_3, window_bounds = array<i64: 8, 64>}, {transform_indices = @transform_4, window_bounds = array<i64: 8, 64>}, {transform_indices = @transform_5, window_bounds = array<i64: 8, 64>}, {pipeline_mode = #tpu.pipeline_mode<synchronous>, transform_indices = @transform_6, window_bounds = array<i64: 1, 32>}, {pipeline_mode = #tpu.pipeline_mode<synchronous>, transform_indices = @transform_7, window_bounds = array<i64: 1, 32>}, {pipeline_mode = #tpu.pipeline_mode<synchronous>, transform_indices = @transform_8, window_bounds = array<i64: 32, 16>}, {pipeline_mode = #tpu.pipeline_mode<synchronous>, transform_indices = @transform_9, window_bounds = array<i64: 48, 192>}, {transform_indices = @transform_10, window_bounds = array<i64: 1, 8, 64>}, {transform_indices = @transform_11, window_bounds = array<i64: 1, 8, 64>}, {transform_indices = @transform_12, window_bounds = array<i64: 1, 8, 64>}, {transform_indices = @transform_13, window_bounds = array<i64: 1, 8, 40>}, {transform_indices = @transform_14, window_bounds = array<i64: 1, 8, 24>}]} {
    %c0 = arith.constant 0 : index
    %c0_0 = arith.constant 0 : index
    %c0_1 = arith.constant 0 : index
    %0 = vector.load %arg2[%c0, %c0_0, %c0_1] : memref<1x8x32xf32, #tpu.memory_space<vmem>>, vector<1x8x32xf32>
    %1 = vector.shape_cast %0 : vector<1x8x32xf32> to vector<8x32xf32>
    %cst = arith.constant dense<0.000000e+00> : vector<8xf32>
    %2 = vector.multi_reduction <add>, %1, %cst [1] : vector<8x32xf32> to vector<8xf32>
    %3 = vector.shape_cast %2 : vector<8xf32> to vector<8x1xf32>
    %cst_2 = arith.constant 3.200000e+01 : f32
    %4 = vector.broadcast %cst_2 : f32 to vector<8x1xf32>
    %5 = arith.divf %3, %4 : vector<8x1xf32>
    %6 = vector.broadcast %5 : vector<8x1xf32> to vector<8x32xf32>
    %7 = arith.subf %1, %6 : vector<8x32xf32>
    %8 = arith.mulf %7, %7 : vector<8x32xf32>
    %cst_3 = arith.constant dense<0.000000e+00> : vector<8xf32>
    %9 = vector.multi_reduction <add>, %8, %cst_3 [1] : vector<8x32xf32> to vector<8xf32>
    %10 = vector.shape_cast %9 : vector<8xf32> to vector<8x1xf32>
    %cst_4 = arith.constant 3.200000e+01 : f32
    %11 = vector.broadcast %cst_4 : f32 to vector<8x1xf32>
    %12 = arith.divf %10, %11 : vector<8x1xf32>
    %cst_5 = arith.constant 9.99999974E-6 : f32
    %13 = vector.broadcast %cst_5 : f32 to vector<8x1xf32>
    %14 = arith.addf %12, %13 : vector<8x1xf32>
    %15 = math.rsqrt %14 : vector<8x1xf32>
    %16 = vector.broadcast %15 : vector<8x1xf32> to vector<8x32xf32>
    %17 = arith.mulf %7, %16 : vector<8x32xf32>
    %c0_6 = arith.constant 0 : index
    %c0_7 = arith.constant 0 : index
    %18 = vector.load %arg8[%c0_6, %c0_7] : memref<1x32xf32, #tpu.memory_space<vmem>>, vector<1x32xf32>
    %19 = vector.broadcast %18 : vector<1x32xf32> to vector<8x32xf32>
    %20 = arith.mulf %17, %19 : vector<8x32xf32>
    %c0_8 = arith.constant 0 : index
    %c0_9 = arith.constant 0 : index
    %21 = vector.load %arg9[%c0_8, %c0_9] : memref<1x32xf32, #tpu.memory_space<vmem>>, vector<1x32xf32>
    %22 = vector.broadcast %21 : vector<1x32xf32> to vector<8x32xf32>
    %23 = arith.addf %20, %22 : vector<8x32xf32>
    %24 = arith.truncf %23 : vector<8x32xf32> to vector<8x32xbf16>
    %c0_10 = arith.constant 0 : index
    %c0_11 = arith.constant 0 : index
    %25 = vector.load %arg10[%c0_10, %c0_11] : memref<32x16xbf16, #tpu.memory_space<vmem>>, vector<32x16xbf16>
    %cst_12 = arith.constant dense<0.000000e+00> : vector<8x16xf32>
    %26 = tpu.matmul %24, %25, %cst_12 {dimension_numbers = #tpu.dot_dimension_numbers<[1], [0], [0], [1], [0, 0, 1, 1], [], []>} : vector<8x32xbf16>, vector<32x16xbf16>, vector<8x16xf32> -> vector<8x16xf32>
    %27 = vector.extract_strided_slice %26 {offsets = [0, 0], sizes = [8, 8], strides = [1, 1]} : vector<8x16xf32> to vector<8x8xf32>
    %28 = vector.extract_strided_slice %26 {offsets = [0, 8], sizes = [8, 8], strides = [1, 1]} : vector<8x16xf32> to vector<8x8xf32>
    %cst_13 = arith.constant 0.541324854 : f32
    %29 = vector.broadcast %cst_13 : f32 to vector<8x8xf32>
    %30 = arith.addf %28, %29 : vector<8x8xf32>
    %cst_14 = arith.constant 2.000000e+01 : f32
    %31 = vector.broadcast %cst_14 : f32 to vector<8x8xf32>
    %32 = arith.cmpf ogt, %30, %31 : vector<8x8xf32>
    %cst_15 = arith.constant 2.000000e+01 : f32
    %33 = vector.broadcast %cst_15 : f32 to vector<8x8xf32>
    %34 = arith.minimumf %30, %33 : vector<8x8xf32>
    %35 = math.exp %34 : vector<8x8xf32>
    %cst_16 = arith.constant 1.000000e+00 : f32
    %36 = vector.broadcast %cst_16 : f32 to vector<8x8xf32>
    %37 = arith.addf %36, %35 : vector<8x8xf32>
    %38 = math.log %37 : vector<8x8xf32>
    %39 = arith.select %32, %30, %38 : vector<8x8xi1>, vector<8x8xf32>
    %c0_17 = arith.constant 0 : index
    %c0_18 = arith.constant 0 : index
    %c0_19 = arith.constant 0 : index
    %40 = vector.load %arg3[%c0_17, %c0_18, %c0_19] : memref<1x8x8xf32, #tpu.memory_space<vmem>>, vector<1x8x8xf32>
    %41 = vector.shape_cast %40 : vector<1x8x8xf32> to vector<8x8xf32>
    %42 = arith.mulf %39, %41 : vector<8x8xf32>
    %43 = arith.addf %27, %42 : vector<8x8xf32>
    %44 = arith.truncf %43 : vector<8x8xf32> to vector<8x8xbf16>
    %c0_20 = arith.constant 0 : index
    %c0_21 = arith.constant 0 : index
    %c0_22 = arith.constant 0 : index
    %45 = vector.load %arg4[%c0_20, %c0_21, %c0_22] : memref<1x8x8xf32, #tpu.memory_space<vmem>>, vector<1x8x8xf32>
    %46 = vector.shape_cast %45 : vector<1x8x8xf32> to vector<8x8xf32>
    %47 = arith.truncf %46 : vector<8x8xf32> to vector<8x8xbf16>
    %48 = tpu.concatenate %24, %44, %47 in 1 : vector<8x32xbf16>, vector<8x8xbf16>, vector<8x8xbf16> -> vector<8x48xbf16>
    %c0_23 = arith.constant 0 : index
    %c0_24 = arith.constant 0 : index
    %49 = vector.load %arg11[%c0_23, %c0_24] : memref<48x192xbf16, #tpu.memory_space<vmem>>, vector<48x192xbf16>
    %cst_25 = arith.constant dense<0.000000e+00> : vector<8x192xf32>
    %50 = tpu.matmul %48, %49, %cst_25 {dimension_numbers = #tpu.dot_dimension_numbers<[1], [0], [0], [1], [0, 0, 1, 1], [], []>} : vector<8x48xbf16>, vector<48x192xbf16>, vector<8x192xf32> -> vector<8x192xf32>
    %51 = vector.extract_strided_slice %50 {offsets = [0, 0], sizes = [8, 64], strides = [1, 1]} : vector<8x192xf32> to vector<8x64xf32>
    %52 = vector.extract_strided_slice %50 {offsets = [0, 64], sizes = [8, 64], strides = [1, 1]} : vector<8x192xf32> to vector<8x64xf32>
    %53 = vector.extract_strided_slice %50 {offsets = [0, 128], sizes = [8, 64], strides = [1, 1]} : vector<8x192xf32> to vector<8x64xf32>
    %c0_26 = arith.constant 0 : index
    %c0_27 = arith.constant 0 : index
    %54 = vector.load %arg5[%c0_26, %c0_27] : memref<8x64xf32, #tpu.memory_space<vmem>>, vector<8x64xf32>
    %c0_28 = arith.constant 0 : index
    %c0_29 = arith.constant 0 : index
    %55 = vector.load %arg6[%c0_28, %c0_29] : memref<8x64xf32, #tpu.memory_space<vmem>>, vector<8x64xf32>
    %c0_30 = arith.constant 0 : index
    %c0_31 = arith.constant 0 : index
    %56 = vector.load %arg7[%c0_30, %c0_31] : memref<8x64xf32, #tpu.memory_space<vmem>>, vector<8x64xf32>
    %57 = arith.mulf %51, %54 : vector<8x64xf32>
    %58 = vector.extract_strided_slice %51 {offsets = [0, 8], sizes = [8, 56], strides = [1, 1]} : vector<8x64xf32> to vector<8x56xf32>
    %59 = vector.extract_strided_slice %51 {offsets = [0, 0], sizes = [8, 8], strides = [1, 1]} : vector<8x64xf32> to vector<8x8xf32>
    %60 = tpu.concatenate %58, %59 in 1 : vector<8x56xf32>, vector<8x8xf32> -> vector<8x64xf32>
    %61 = arith.mulf %60, %55 : vector<8x64xf32>
    %62 = arith.addf %57, %61 : vector<8x64xf32>
    %63 = vector.extract_strided_slice %51 {offsets = [0, 56], sizes = [8, 8], strides = [1, 1]} : vector<8x64xf32> to vector<8x8xf32>
    %64 = vector.extract_strided_slice %51 {offsets = [0, 0], sizes = [8, 56], strides = [1, 1]} : vector<8x64xf32> to vector<8x56xf32>
    %65 = tpu.concatenate %63, %64 in 1 : vector<8x8xf32>, vector<8x56xf32> -> vector<8x64xf32>
    %66 = arith.mulf %65, %56 : vector<8x64xf32>
    %67 = arith.addf %62, %66 : vector<8x64xf32>
    %68 = arith.truncf %67 : vector<8x64xf32> to vector<8x64xbf16>
    %c0_32 = arith.constant 0 : index
    %c0_33 = arith.constant 0 : index
    %c0_34 = arith.constant 0 : index
    %69 = vector.load %arg12[%c0_32, %c0_33, %c0_34] : memref<1x8x64xbf16, #tpu.memory_space<vmem>>, vector<1x8x64xbf16>
    %70 = vector.shape_cast %69 : vector<1x8x64xbf16> to vector<8x64xbf16>
    %71 = vector.shape_cast %68 : vector<8x64xbf16> to vector<1x8x64xbf16>
    tpu.vector_store %arg12[%c0_32, %c0_33, %c0_34], %71 {strides = array<i32>} : memref<1x8x64xbf16, #tpu.memory_space<vmem>>, vector<1x8x64xbf16>,
    %72 = arith.mulf %52, %54 : vector<8x64xf32>
    %73 = vector.extract_strided_slice %52 {offsets = [0, 8], sizes = [8, 56], strides = [1, 1]} : vector<8x64xf32> to vector<8x56xf32>
    %74 = vector.extract_strided_slice %52 {offsets = [0, 0], sizes = [8, 8], strides = [1, 1]} : vector<8x64xf32> to vector<8x8xf32>
    %75 = tpu.concatenate %73, %74 in 1 : vector<8x56xf32>, vector<8x8xf32> -> vector<8x64xf32>
    %76 = arith.mulf %75, %55 : vector<8x64xf32>
    %77 = arith.addf %72, %76 : vector<8x64xf32>
    %78 = vector.extract_strided_slice %52 {offsets = [0, 56], sizes = [8, 8], strides = [1, 1]} : vector<8x64xf32> to vector<8x8xf32>
    %79 = vector.extract_strided_slice %52 {offsets = [0, 0], sizes = [8, 56], strides = [1, 1]} : vector<8x64xf32> to vector<8x56xf32>
    %80 = tpu.concatenate %78, %79 in 1 : vector<8x8xf32>, vector<8x56xf32> -> vector<8x64xf32>
    %81 = arith.mulf %80, %56 : vector<8x64xf32>
    %82 = arith.addf %77, %81 : vector<8x64xf32>
    %83 = arith.truncf %82 : vector<8x64xf32> to vector<8x64xbf16>
    %c0_35 = arith.constant 0 : index
    %c0_36 = arith.constant 0 : index
    %c0_37 = arith.constant 0 : index
    %84 = vector.load %arg13[%c0_35, %c0_36, %c0_37] : memref<1x8x64xbf16, #tpu.memory_space<vmem>>, vector<1x8x64xbf16>
    %85 = vector.shape_cast %84 : vector<1x8x64xbf16> to vector<8x64xbf16>
    %86 = vector.shape_cast %83 : vector<8x64xbf16> to vector<1x8x64xbf16>
    tpu.vector_store %arg13[%c0_35, %c0_36, %c0_37], %86 {strides = array<i32>} : memref<1x8x64xbf16, #tpu.memory_space<vmem>>, vector<1x8x64xbf16>,
    %87 = arith.truncf %53 : vector<8x64xf32> to vector<8x64xbf16>
    %c0_38 = arith.constant 0 : index
    %c0_39 = arith.constant 0 : index
    %c0_40 = arith.constant 0 : index
    %88 = vector.load %arg14[%c0_38, %c0_39, %c0_40] : memref<1x8x64xbf16, #tpu.memory_space<vmem>>, vector<1x8x64xbf16>
    %89 = vector.shape_cast %88 : vector<1x8x64xbf16> to vector<8x64xbf16>
    %90 = vector.shape_cast %87 : vector<8x64xbf16> to vector<1x8x64xbf16>
    tpu.vector_store %arg14[%c0_38, %c0_39, %c0_40], %90 {strides = array<i32>} : memref<1x8x64xbf16, #tpu.memory_space<vmem>>, vector<1x8x64xbf16>,
    %91 = tpu.concatenate %23, %43 in 1 : vector<8x32xf32>, vector<8x8xf32> -> vector<8x40xf32>
    %92 = arith.truncf %91 : vector<8x40xf32> to vector<8x40xbf16>
    %c0_41 = arith.constant 0 : index
    %c0_42 = arith.constant 0 : index
    %c0_43 = arith.constant 0 : index
    %93 = vector.load %arg15[%c0_41, %c0_42, %c0_43] : memref<1x8x40xbf16, #tpu.memory_space<vmem>>, vector<1x8x40xbf16>
    %94 = vector.shape_cast %93 : vector<1x8x40xbf16> to vector<8x40xbf16>
    %95 = vector.shape_cast %92 : vector<8x40xbf16> to vector<1x8x40xbf16>
    tpu.vector_store %arg15[%c0_41, %c0_42, %c0_43], %95 {strides = array<i32>} : memref<1x8x40xbf16, #tpu.memory_space<vmem>>, vector<1x8x40xbf16>,
    %96 = tpu.concatenate %43, %27, %39 in 1 : vector<8x8xf32>, vector<8x8xf32>, vector<8x8xf32> -> vector<8x24xf32>
    %c0_44 = arith.constant 0 : index
    %c0_45 = arith.constant 0 : index
    %c0_46 = arith.constant 0 : index
    %97 = vector.load %arg16[%c0_44, %c0_45, %c0_46] : memref<1x8x24xf32, #tpu.memory_space<vmem>>, vector<1x8x24xf32>
    %98 = vector.shape_cast %97 : vector<1x8x24xf32> to vector<8x24xf32>
    %99 = vector.shape_cast %96 : vector<8x24xf32> to vector<1x8x24xf32>
    tpu.vector_store %arg16[%c0_44, %c0_45, %c0_46], %99 {strides = array<i32>} : memref<1x8x24xf32, #tpu.memory_space<vmem>>, vector<1x8x24xf32>,
    return
  }
  func.func @transform_0(%arg0: i32, %arg1: i32) -> (i32, i32, i32) {
    %c0_i32 = arith.constant 0 : i32
    %c0_i32_0 = arith.constant 0 : i32
    return %arg0, %arg1, %c0_i32 : i32, i32, i32
  }
  func.func @transform_1(%arg0: i32, %arg1: i32) -> (i32, i32, i32) {
    %c0_i32 = arith.constant 0 : i32
    %c0_i32_0 = arith.constant 0 : i32
    return %arg0, %arg1, %c0_i32 : i32, i32, i32
  }
  func.func @transform_2(%arg0: i32, %arg1: i32) -> (i32, i32, i32) {
    %c0_i32 = arith.constant 0 : i32
    %c0_i32_0 = arith.constant 0 : i32
    return %arg0, %arg1, %c0_i32 : i32, i32, i32
  }
  func.func @transform_3(%arg0: i32, %arg1: i32) -> (i32, i32) {
    %c0_i32 = arith.constant 0 : i32
    %c0_i32_0 = arith.constant 0 : i32
    return %arg1, %c0_i32 : i32, i32
  }
  func.func @transform_4(%arg0: i32, %arg1: i32) -> (i32, i32) {
    %c0_i32 = arith.constant 0 : i32
    %c0_i32_0 = arith.constant 0 : i32
    return %arg1, %c0_i32 : i32, i32
  }
  func.func @transform_5(%arg0: i32, %arg1: i32) -> (i32, i32) {
    %c0_i32 = arith.constant 0 : i32
    %c0_i32_0 = arith.constant 0 : i32
    return %arg1, %c0_i32 : i32, i32
  }
  func.func @transform_6(%arg0: i32, %arg1: i32) -> (i32, i32) {
    %c0_i32 = arith.constant 0 : i32
    %c0_i32_0 = arith.constant 0 : i32
    %c0_i32_1 = arith.constant 0 : i32
    return %c0_i32, %c0_i32_0 : i32, i32
  }
  func.func @transform_7(%arg0: i32, %arg1: i32) -> (i32, i32) {
    %c0_i32 = arith.constant 0 : i32
    %c0_i32_0 = arith.constant 0 : i32
    %c0_i32_1 = arith.constant 0 : i32
    return %c0_i32, %c0_i32_0 : i32, i32
  }
  func.func @transform_8(%arg0: i32, %arg1: i32) -> (i32, i32) {
    %c0_i32 = arith.constant 0 : i32
    %c0_i32_0 = arith.constant 0 : i32
    %c0_i32_1 = arith.constant 0 : i32
    return %c0_i32, %c0_i32_0 : i32, i32
  }
  func.func @transform_9(%arg0: i32, %arg1: i32) -> (i32, i32) {
    %c0_i32 = arith.constant 0 : i32
    %c0_i32_0 = arith.constant 0 : i32
    %c0_i32_1 = arith.constant 0 : i32
    return %c0_i32, %c0_i32_0 : i32, i32
  }
  func.func @transform_10(%arg0: i32, %arg1: i32) -> (i32, i32, i32) {
    %c0_i32 = arith.constant 0 : i32
    %c0_i32_0 = arith.constant 0 : i32
    return %arg0, %arg1, %c0_i32 : i32, i32, i32
  }
  func.func @transform_11(%arg0: i32, %arg1: i32) -> (i32, i32, i32) {
    %c0_i32 = arith.constant 0 : i32
    %c0_i32_0 = arith.constant 0 : i32
    return %arg0, %arg1, %c0_i32 : i32, i32, i32
  }
  func.func @transform_12(%arg0: i32, %arg1: i32) -> (i32, i32, i32) {
    %c0_i32 = arith.constant 0 : i32
    %c0_i32_0 = arith.constant 0 : i32
    return %arg0, %arg1, %c0_i32 : i32, i32, i32
  }
  func.func @transform_13(%arg0: i32, %arg1: i32) -> (i32, i32, i32) {
    %c0_i32 = arith.constant 0 : i32
    %c0_i32_0 = arith.constant 0 : i32
    return %arg0, %arg1, %c0_i32 : i32, i32, i32
  }
  func.func @transform_14(%arg0: i32, %arg1: i32) -> (i32, i32, i32) {
    %c0_i32 = arith.constant 0 : i32
    %c0_i32_0 = arith.constant 0 : i32
    return %arg0, %arg1, %c0_i32 : i32, i32, i32
  }
}

module attributes {stable_mosaic.version = 11 : i64} {
  func.func @mlp_kernel(%arg0: i32, %arg1: i32, %arg2: memref<1x8x40xbf16, #tpu.memory_space<vmem>>, %arg3: memref<1x8x64xbf16, #tpu.memory_space<vmem>>, %arg4: memref<1x8x32xf32, #tpu.memory_space<vmem>>, %arg5: memref<104x128xbf16, #tpu.memory_space<vmem>>, %arg6: memref<136x32xbf16, #tpu.memory_space<vmem>>, %arg7: memref<1x8x32xf32, #tpu.memory_space<vmem>>) attributes {dimension_semantics = [#tpu.dimension_semantics<parallel>, #tpu.dimension_semantics<parallel>], iteration_bounds = array<i64: 2, 1>, scalar_prefetch = 0 : i64, scratch_operands = 0 : i64, tpu.core_type = #tpu.core_type<tc>, window_params = [{transform_indices = @transform_0, window_bounds = array<i64: 1, 8, 40>}, {transform_indices = @transform_1, window_bounds = array<i64: 1, 8, 64>}, {transform_indices = @transform_2, window_bounds = array<i64: 1, 8, 32>}, {pipeline_mode = #tpu.pipeline_mode<synchronous>, transform_indices = @transform_3, window_bounds = array<i64: 104, 128>}, {pipeline_mode = #tpu.pipeline_mode<synchronous>, transform_indices = @transform_4, window_bounds = array<i64: 136, 32>}, {transform_indices = @transform_5, window_bounds = array<i64: 1, 8, 32>}]} {
    %c0 = arith.constant 0 : index
    %c0_0 = arith.constant 0 : index
    %c0_1 = arith.constant 0 : index
    %0 = vector.load %arg2[%c0, %c0_0, %c0_1] : memref<1x8x40xbf16, #tpu.memory_space<vmem>>, vector<1x8x40xbf16>
    %1 = vector.shape_cast %0 : vector<1x8x40xbf16> to vector<8x40xbf16>
    %c0_2 = arith.constant 0 : index
    %c0_3 = arith.constant 0 : index
    %c0_4 = arith.constant 0 : index
    %2 = vector.load %arg3[%c0_2, %c0_3, %c0_4] : memref<1x8x64xbf16, #tpu.memory_space<vmem>>, vector<1x8x64xbf16>
    %3 = vector.shape_cast %2 : vector<1x8x64xbf16> to vector<8x64xbf16>
    %4 = tpu.concatenate %1, %3 in 1 : vector<8x40xbf16>, vector<8x64xbf16> -> vector<8x104xbf16>
    %c0_5 = arith.constant 0 : index
    %c0_6 = arith.constant 0 : index
    %5 = vector.load %arg5[%c0_5, %c0_6] : memref<104x128xbf16, #tpu.memory_space<vmem>>, vector<104x128xbf16>
    %cst = arith.constant dense<0.000000e+00> : vector<8x128xf32>
    %6 = tpu.matmul %4, %5, %cst {dimension_numbers = #tpu.dot_dimension_numbers<[1], [0], [0], [1], [0, 0, 1, 1], [], []>} : vector<8x104xbf16>, vector<104x128xbf16>, vector<8x128xf32> -> vector<8x128xf32>
    %7 = vector.extract_strided_slice %6 {offsets = [0, 0], sizes = [8, 64], strides = [1, 1]} : vector<8x128xf32> to vector<8x64xf32>
    %8 = vector.extract_strided_slice %6 {offsets = [0, 64], sizes = [8, 64], strides = [1, 1]} : vector<8x128xf32> to vector<8x64xf32>
    %9 = arith.negf %7 : vector<8x64xf32>
    %10 = math.exp %9 : vector<8x64xf32>
    %cst_7 = arith.constant 1.000000e+00 : f32
    %11 = vector.broadcast %cst_7 : f32 to vector<8x64xf32>
    %12 = arith.addf %11, %10 : vector<8x64xf32>
    %13 = arith.divf %11, %12 : vector<8x64xf32>
    %14 = arith.mulf %7, %13 : vector<8x64xf32>
    %15 = arith.mulf %14, %8 : vector<8x64xf32>
    %16 = vector.extract_strided_slice %1 {offsets = [0, 32], sizes = [8, 8], strides = [1, 1]} : vector<8x40xbf16> to vector<8x8xbf16>
    %17 = arith.truncf %15 : vector<8x64xf32> to vector<8x64xbf16>
    %18 = tpu.concatenate %16, %3, %17 in 1 : vector<8x8xbf16>, vector<8x64xbf16>, vector<8x64xbf16> -> vector<8x136xbf16>
    %c0_8 = arith.constant 0 : index
    %c0_9 = arith.constant 0 : index
    %19 = vector.load %arg6[%c0_8, %c0_9] : memref<136x32xbf16, #tpu.memory_space<vmem>>, vector<136x32xbf16>
    %cst_10 = arith.constant dense<0.000000e+00> : vector<8x32xf32>
    %20 = tpu.matmul %18, %19, %cst_10 {dimension_numbers = #tpu.dot_dimension_numbers<[1], [0], [0], [1], [0, 0, 1, 1], [], []>} : vector<8x136xbf16>, vector<136x32xbf16>, vector<8x32xf32> -> vector<8x32xf32>
    %c0_11 = arith.constant 0 : index
    %c0_12 = arith.constant 0 : index
    %c0_13 = arith.constant 0 : index
    %21 = vector.load %arg4[%c0_11, %c0_12, %c0_13] : memref<1x8x32xf32, #tpu.memory_space<vmem>>, vector<1x8x32xf32>
    %22 = vector.shape_cast %21 : vector<1x8x32xf32> to vector<8x32xf32>
    %23 = arith.addf %22, %20 : vector<8x32xf32>
    %c0_14 = arith.constant 0 : index
    %c0_15 = arith.constant 0 : index
    %c0_16 = arith.constant 0 : index
    %24 = vector.load %arg7[%c0_14, %c0_15, %c0_16] : memref<1x8x32xf32, #tpu.memory_space<vmem>>, vector<1x8x32xf32>
    %25 = vector.shape_cast %24 : vector<1x8x32xf32> to vector<8x32xf32>
    %26 = vector.shape_cast %23 : vector<8x32xf32> to vector<1x8x32xf32>
    tpu.vector_store %arg7[%c0_14, %c0_15, %c0_16], %26 {strides = array<i32>} : memref<1x8x32xf32, #tpu.memory_space<vmem>>, vector<1x8x32xf32>,
    return
  }
  func.func @transform_0(%arg0: i32, %arg1: i32) -> (i32, i32, i32) {
    %c0_i32 = arith.constant 0 : i32
    %c0_i32_0 = arith.constant 0 : i32
    return %arg0, %arg1, %c0_i32 : i32, i32, i32
  }
  func.func @transform_1(%arg0: i32, %arg1: i32) -> (i32, i32, i32) {
    %c0_i32 = arith.constant 0 : i32
    %c0_i32_0 = arith.constant 0 : i32
    return %arg0, %arg1, %c0_i32 : i32, i32, i32
  }
  func.func @transform_2(%arg0: i32, %arg1: i32) -> (i32, i32, i32) {
    %c0_i32 = arith.constant 0 : i32
    %c0_i32_0 = arith.constant 0 : i32
    return %arg0, %arg1, %c0_i32 : i32, i32, i32
  }
  func.func @transform_3(%arg0: i32, %arg1: i32) -> (i32, i32) {
    %c0_i32 = arith.constant 0 : i32
    %c0_i32_0 = arith.constant 0 : i32
    %c0_i32_1 = arith.constant 0 : i32
    return %c0_i32, %c0_i32_0 : i32, i32
  }
  func.func @transform_4(%arg0: i32, %arg1: i32) -> (i32, i32) {
    %c0_i32 = arith.constant 0 : i32
    %c0_i32_0 = arith.constant 0 : i32
    %c0_i32_1 = arith.constant 0 : i32
    return %c0_i32, %c0_i32_0 : i32, i32
  }
  func.func @transform_5(%arg0: i32, %arg1: i32) -> (i32, i32, i32) {
    %c0_i32 = arith.constant 0 : i32
    %c0_i32_0 = arith.constant 0 : i32
    return %arg0, %arg1, %c0_i32 : i32, i32, i32
  }
}

module attributes {stable_mosaic.version = 11 : i64} {
  func.func @proj_kernel(%arg0: i32, %arg1: i32, %arg2: memref<1x8x32xf32, #tpu.memory_space<vmem>>, %arg3: memref<1x8x8xf32, #tpu.memory_space<vmem>>, %arg4: memref<1x8x8xf32, #tpu.memory_space<vmem>>, %arg5: memref<8x64xf32, #tpu.memory_space<vmem>>, %arg6: memref<8x64xf32, #tpu.memory_space<vmem>>, %arg7: memref<8x64xf32, #tpu.memory_space<vmem>>, %arg8: memref<1x32xf32, #tpu.memory_space<vmem>>, %arg9: memref<1x32xf32, #tpu.memory_space<vmem>>, %arg10: memref<32x16xbf16, #tpu.memory_space<vmem>>, %arg11: memref<48x192xbf16, #tpu.memory_space<vmem>>, %arg12: memref<1x8x64xbf16, #tpu.memory_space<vmem>>, %arg13: memref<1x8x64xbf16, #tpu.memory_space<vmem>>, %arg14: memref<1x8x64xbf16, #tpu.memory_space<vmem>>, %arg15: memref<1x8x40xbf16, #tpu.memory_space<vmem>>, %arg16: memref<1x8x24xf32, #tpu.memory_space<vmem>>) attributes {dimension_semantics = [#tpu.dimension_semantics<parallel>, #tpu.dimension_semantics<parallel>], iteration_bounds = array<i64: 2, 1>, scalar_prefetch = 0 : i64, scratch_operands = 0 : i64, tpu.core_type = #tpu.core_type<tc>, window_params = [{transform_indices = @transform_0, window_bounds = array<i64: 1, 8, 32>}, {transform_indices = @transform_1, window_bounds = array<i64: 1, 8, 8>}, {transform_indices = @transform_2, window_bounds = array<i64: 1, 8, 8>}, {transform_indices = @transform_3, window_bounds = array<i64: 8, 64>}, {transform_indices = @transform_4, window_bounds = array<i64: 8, 64>}, {transform_indices = @transform_5, window_bounds = array<i64: 8, 64>}, {pipeline_mode = #tpu.pipeline_mode<synchronous>, transform_indices = @transform_6, window_bounds = array<i64: 1, 32>}, {pipeline_mode = #tpu.pipeline_mode<synchronous>, transform_indices = @transform_7, window_bounds = array<i64: 1, 32>}, {pipeline_mode = #tpu.pipeline_mode<synchronous>, transform_indices = @transform_8, window_bounds = array<i64: 32, 16>}, {pipeline_mode = #tpu.pipeline_mode<synchronous>, transform_indices = @transform_9, window_bounds = array<i64: 48, 192>}, {transform_indices = @transform_10, window_bounds = array<i64: 1, 8, 64>}, {transform_indices = @transform_11, window_bounds = array<i64: 1, 8, 64>}, {transform_indices = @transform_12, window_bounds = array<i64: 1, 8, 64>}, {transform_indices = @transform_13, window_bounds = array<i64: 1, 8, 40>}, {transform_indices = @transform_14, window_bounds = array<i64: 1, 8, 24>}]} {
    %c0 = arith.constant 0 : index
    %c0_0 = arith.constant 0 : index
    %c0_1 = arith.constant 0 : index
    %0 = vector.load %arg2[%c0, %c0_0, %c0_1] : memref<1x8x32xf32, #tpu.memory_space<vmem>>, vector<1x8x32xf32>
    %1 = vector.shape_cast %0 : vector<1x8x32xf32> to vector<8x32xf32>
    %cst = arith.constant dense<0.000000e+00> : vector<8xf32>
    %2 = vector.multi_reduction <add>, %1, %cst [1] : vector<8x32xf32> to vector<8xf32>
    %3 = vector.shape_cast %2 : vector<8xf32> to vector<8x1xf32>
    %cst_2 = arith.constant 3.200000e+01 : f32
    %4 = vector.broadcast %cst_2 : f32 to vector<8x1xf32>
    %5 = arith.divf %3, %4 : vector<8x1xf32>
    %6 = vector.broadcast %5 : vector<8x1xf32> to vector<8x32xf32>
    %7 = arith.subf %1, %6 : vector<8x32xf32>
    %8 = arith.mulf %7, %7 : vector<8x32xf32>
    %cst_3 = arith.constant dense<0.000000e+00> : vector<8xf32>
    %9 = vector.multi_reduction <add>, %8, %cst_3 [1] : vector<8x32xf32> to vector<8xf32>
    %10 = vector.shape_cast %9 : vector<8xf32> to vector<8x1xf32>
    %cst_4 = arith.constant 3.200000e+01 : f32
    %11 = vector.broadcast %cst_4 : f32 to vector<8x1xf32>
    %12 = arith.divf %10, %11 : vector<8x1xf32>
    %cst_5 = arith.constant 9.99999974E-6 : f32
    %13 = vector.broadcast %cst_5 : f32 to vector<8x1xf32>
    %14 = arith.addf %12, %13 : vector<8x1xf32>
    %15 = math.rsqrt %14 : vector<8x1xf32>
    %16 = vector.broadcast %15 : vector<8x1xf32> to vector<8x32xf32>
    %17 = arith.mulf %7, %16 : vector<8x32xf32>
    %c0_6 = arith.constant 0 : index
    %c0_7 = arith.constant 0 : index
    %18 = vector.load %arg8[%c0_6, %c0_7] : memref<1x32xf32, #tpu.memory_space<vmem>>, vector<1x32xf32>
    %19 = vector.broadcast %18 : vector<1x32xf32> to vector<8x32xf32>
    %20 = arith.mulf %17, %19 : vector<8x32xf32>
    %c0_8 = arith.constant 0 : index
    %c0_9 = arith.constant 0 : index
    %21 = vector.load %arg9[%c0_8, %c0_9] : memref<1x32xf32, #tpu.memory_space<vmem>>, vector<1x32xf32>
    %22 = vector.broadcast %21 : vector<1x32xf32> to vector<8x32xf32>
    %23 = arith.addf %20, %22 : vector<8x32xf32>
    %24 = arith.truncf %23 : vector<8x32xf32> to vector<8x32xbf16>
    %c0_10 = arith.constant 0 : index
    %c0_11 = arith.constant 0 : index
    %25 = vector.load %arg10[%c0_10, %c0_11] : memref<32x16xbf16, #tpu.memory_space<vmem>>, vector<32x16xbf16>
    %cst_12 = arith.constant dense<0.000000e+00> : vector<8x16xf32>
    %26 = tpu.matmul %24, %25, %cst_12 {dimension_numbers = #tpu.dot_dimension_numbers<[1], [0], [0], [1], [0, 0, 1, 1], [], []>} : vector<8x32xbf16>, vector<32x16xbf16>, vector<8x16xf32> -> vector<8x16xf32>
    %27 = vector.extract_strided_slice %26 {offsets = [0, 0], sizes = [8, 8], strides = [1, 1]} : vector<8x16xf32> to vector<8x8xf32>
    %28 = vector.extract_strided_slice %26 {offsets = [0, 8], sizes = [8, 8], strides = [1, 1]} : vector<8x16xf32> to vector<8x8xf32>
    %cst_13 = arith.constant 0.541324854 : f32
    %29 = vector.broadcast %cst_13 : f32 to vector<8x8xf32>
    %30 = arith.addf %28, %29 : vector<8x8xf32>
    %cst_14 = arith.constant 2.000000e+01 : f32
    %31 = vector.broadcast %cst_14 : f32 to vector<8x8xf32>
    %32 = arith.cmpf ogt, %30, %31 : vector<8x8xf32>
    %cst_15 = arith.constant 2.000000e+01 : f32
    %33 = vector.broadcast %cst_15 : f32 to vector<8x8xf32>
    %34 = arith.minimumf %30, %33 : vector<8x8xf32>
    %35 = math.exp %34 : vector<8x8xf32>
    %cst_16 = arith.constant 1.000000e+00 : f32
    %36 = vector.broadcast %cst_16 : f32 to vector<8x8xf32>
    %37 = arith.addf %36, %35 : vector<8x8xf32>
    %38 = math.log %37 : vector<8x8xf32>
    %39 = arith.select %32, %30, %38 : vector<8x8xi1>, vector<8x8xf32>
    %c0_17 = arith.constant 0 : index
    %c0_18 = arith.constant 0 : index
    %c0_19 = arith.constant 0 : index
    %40 = vector.load %arg3[%c0_17, %c0_18, %c0_19] : memref<1x8x8xf32, #tpu.memory_space<vmem>>, vector<1x8x8xf32>
    %41 = vector.shape_cast %40 : vector<1x8x8xf32> to vector<8x8xf32>
    %42 = arith.mulf %39, %41 : vector<8x8xf32>
    %43 = arith.addf %27, %42 : vector<8x8xf32>
    %44 = arith.truncf %43 : vector<8x8xf32> to vector<8x8xbf16>
    %c0_20 = arith.constant 0 : index
    %c0_21 = arith.constant 0 : index
    %c0_22 = arith.constant 0 : index
    %45 = vector.load %arg4[%c0_20, %c0_21, %c0_22] : memref<1x8x8xf32, #tpu.memory_space<vmem>>, vector<1x8x8xf32>
    %46 = vector.shape_cast %45 : vector<1x8x8xf32> to vector<8x8xf32>
    %47 = arith.truncf %46 : vector<8x8xf32> to vector<8x8xbf16>
    %48 = tpu.concatenate %24, %44, %47 in 1 : vector<8x32xbf16>, vector<8x8xbf16>, vector<8x8xbf16> -> vector<8x48xbf16>
    %c0_23 = arith.constant 0 : index
    %c0_24 = arith.constant 0 : index
    %49 = vector.load %arg11[%c0_23, %c0_24] : memref<48x192xbf16, #tpu.memory_space<vmem>>, vector<48x192xbf16>
    %cst_25 = arith.constant dense<0.000000e+00> : vector<8x192xf32>
    %50 = tpu.matmul %48, %49, %cst_25 {dimension_numbers = #tpu.dot_dimension_numbers<[1], [0], [0], [1], [0, 0, 1, 1], [], []>} : vector<8x48xbf16>, vector<48x192xbf16>, vector<8x192xf32> -> vector<8x192xf32>
    %51 = vector.extract_strided_slice %50 {offsets = [0, 0], sizes = [8, 64], strides = [1, 1]} : vector<8x192xf32> to vector<8x64xf32>
    %52 = vector.extract_strided_slice %50 {offsets = [0, 64], sizes = [8, 64], strides = [1, 1]} : vector<8x192xf32> to vector<8x64xf32>
    %53 = vector.extract_strided_slice %50 {offsets = [0, 128], sizes = [8, 64], strides = [1, 1]} : vector<8x192xf32> to vector<8x64xf32>
    %c0_26 = arith.constant 0 : index
    %c0_27 = arith.constant 0 : index
    %54 = vector.load %arg5[%c0_26, %c0_27] : memref<8x64xf32, #tpu.memory_space<vmem>>, vector<8x64xf32>
    %c0_28 = arith.constant 0 : index
    %c0_29 = arith.constant 0 : index
    %55 = vector.load %arg6[%c0_28, %c0_29] : memref<8x64xf32, #tpu.memory_space<vmem>>, vector<8x64xf32>
    %c0_30 = arith.constant 0 : index
    %c0_31 = arith.constant 0 : index
    %56 = vector.load %arg7[%c0_30, %c0_31] : memref<8x64xf32, #tpu.memory_space<vmem>>, vector<8x64xf32>
    %57 = arith.mulf %51, %54 : vector<8x64xf32>
    %58 = vector.extract_strided_slice %51 {offsets = [0, 8], sizes = [8, 56], strides = [1, 1]} : vector<8x64xf32> to vector<8x56xf32>
    %59 = vector.extract_strided_slice %51 {offsets = [0, 0], sizes = [8, 8], strides = [1, 1]} : vector<8x64xf32> to vector<8x8xf32>
    %60 = tpu.concatenate %58, %59 in 1 : vector<8x56xf32>, vector<8x8xf32> -> vector<8x64xf32>
    %61 = arith.mulf %60, %55 : vector<8x64xf32>
    %62 = arith.addf %57, %61 : vector<8x64xf32>
    %63 = vector.extract_strided_slice %51 {offsets = [0, 56], sizes = [8, 8], strides = [1, 1]} : vector<8x64xf32> to vector<8x8xf32>
    %64 = vector.extract_strided_slice %51 {offsets = [0, 0], sizes = [8, 56], strides = [1, 1]} : vector<8x64xf32> to vector<8x56xf32>
    %65 = tpu.concatenate %63, %64 in 1 : vector<8x8xf32>, vector<8x56xf32> -> vector<8x64xf32>
    %66 = arith.mulf %65, %56 : vector<8x64xf32>
    %67 = arith.addf %62, %66 : vector<8x64xf32>
    %68 = arith.truncf %67 : vector<8x64xf32> to vector<8x64xbf16>
    %c0_32 = arith.constant 0 : index
    %c0_33 = arith.constant 0 : index
    %c0_34 = arith.constant 0 : index
    %69 = vector.load %arg12[%c0_32, %c0_33, %c0_34] : memref<1x8x64xbf16, #tpu.memory_space<vmem>>, vector<1x8x64xbf16>
    %70 = vector.shape_cast %69 : vector<1x8x64xbf16> to vector<8x64xbf16>
    %71 = vector.shape_cast %68 : vector<8x64xbf16> to vector<1x8x64xbf16>
    tpu.vector_store %arg12[%c0_32, %c0_33, %c0_34], %71 {strides = array<i32>} : memref<1x8x64xbf16, #tpu.memory_space<vmem>>, vector<1x8x64xbf16>,
    %72 = arith.mulf %52, %54 : vector<8x64xf32>
    %73 = vector.extract_strided_slice %52 {offsets = [0, 8], sizes = [8, 56], strides = [1, 1]} : vector<8x64xf32> to vector<8x56xf32>
    %74 = vector.extract_strided_slice %52 {offsets = [0, 0], sizes = [8, 8], strides = [1, 1]} : vector<8x64xf32> to vector<8x8xf32>
    %75 = tpu.concatenate %73, %74 in 1 : vector<8x56xf32>, vector<8x8xf32> -> vector<8x64xf32>
    %76 = arith.mulf %75, %55 : vector<8x64xf32>
    %77 = arith.addf %72, %76 : vector<8x64xf32>
    %78 = vector.extract_strided_slice %52 {offsets = [0, 56], sizes = [8, 8], strides = [1, 1]} : vector<8x64xf32> to vector<8x8xf32>
    %79 = vector.extract_strided_slice %52 {offsets = [0, 0], sizes = [8, 56], strides = [1, 1]} : vector<8x64xf32> to vector<8x56xf32>
    %80 = tpu.concatenate %78, %79 in 1 : vector<8x8xf32>, vector<8x56xf32> -> vector<8x64xf32>
    %81 = arith.mulf %80, %56 : vector<8x64xf32>
    %82 = arith.addf %77, %81 : vector<8x64xf32>
    %83 = arith.truncf %82 : vector<8x64xf32> to vector<8x64xbf16>
    %c0_35 = arith.constant 0 : index
    %c0_36 = arith.constant 0 : index
    %c0_37 = arith.constant 0 : index
    %84 = vector.load %arg13[%c0_35, %c0_36, %c0_37] : memref<1x8x64xbf16, #tpu.memory_space<vmem>>, vector<1x8x64xbf16>
    %85 = vector.shape_cast %84 : vector<1x8x64xbf16> to vector<8x64xbf16>
    %86 = vector.shape_cast %83 : vector<8x64xbf16> to vector<1x8x64xbf16>
    tpu.vector_store %arg13[%c0_35, %c0_36, %c0_37], %86 {strides = array<i32>} : memref<1x8x64xbf16, #tpu.memory_space<vmem>>, vector<1x8x64xbf16>,
    %87 = arith.truncf %53 : vector<8x64xf32> to vector<8x64xbf16>
    %c0_38 = arith.constant 0 : index
    %c0_39 = arith.constant 0 : index
    %c0_40 = arith.constant 0 : index
    %88 = vector.load %arg14[%c0_38, %c0_39, %c0_40] : memref<1x8x64xbf16, #tpu.memory_space<vmem>>, vector<1x8x64xbf16>
    %89 = vector.shape_cast %88 : vector<1x8x64xbf16> to vector<8x64xbf16>
    %90 = vector.shape_cast %87 : vector<8x64xbf16> to vector<1x8x64xbf16>
    tpu.vector_store %arg14[%c0_38, %c0_39, %c0_40], %90 {strides = array<i32>} : memref<1x8x64xbf16, #tpu.memory_space<vmem>>, vector<1x8x64xbf16>,
    %91 = tpu.concatenate %23, %43 in 1 : vector<8x32xf32>, vector<8x8xf32> -> vector<8x40xf32>
    %92 = arith.truncf %91 : vector<8x40xf32> to vector<8x40xbf16>
    %c0_41 = arith.constant 0 : index
    %c0_42 = arith.constant 0 : index
    %c0_43 = arith.constant 0 : index
    %93 = vector.load %arg15[%c0_41, %c0_42, %c0_43] : memref<1x8x40xbf16, #tpu.memory_space<vmem>>, vector<1x8x40xbf16>
    %94 = vector.shape_cast %93 : vector<1x8x40xbf16> to vector<8x40xbf16>
    %95 = vector.shape_cast %92 : vector<8x40xbf16> to vector<1x8x40xbf16>
    tpu.vector_store %arg15[%c0_41, %c0_42, %c0_43], %95 {strides = array<i32>} : memref<1x8x40xbf16, #tpu.memory_space<vmem>>, vector<1x8x40xbf16>,
    %96 = tpu.concatenate %43, %27, %39 in 1 : vector<8x8xf32>, vector<8x8xf32>, vector<8x8xf32> -> vector<8x24xf32>
    %c0_44 = arith.constant 0 : index
    %c0_45 = arith.constant 0 : index
    %c0_46 = arith.constant 0 : index
    %97 = vector.load %arg16[%c0_44, %c0_45, %c0_46] : memref<1x8x24xf32, #tpu.memory_space<vmem>>, vector<1x8x24xf32>
    %98 = vector.shape_cast %97 : vector<1x8x24xf32> to vector<8x24xf32>
    %99 = vector.shape_cast %96 : vector<8x24xf32> to vector<1x8x24xf32>
    tpu.vector_store %arg16[%c0_44, %c0_45, %c0_46], %99 {strides = array<i32>} : memref<1x8x24xf32, #tpu.memory_space<vmem>>, vector<1x8x24xf32>,
    return
  }
  func.func @transform_0(%arg0: i32, %arg1: i32) -> (i32, i32, i32) {
    %c0_i32 = arith.constant 0 : i32
    %c0_i32_0 = arith.constant 0 : i32
    return %arg0, %arg1, %c0_i32 : i32, i32, i32
  }
  func.func @transform_1(%arg0: i32, %arg1: i32) -> (i32, i32, i32) {
    %c0_i32 = arith.constant 0 : i32
    %c0_i32_0 = arith.constant 0 : i32
    return %arg0, %arg1, %c0_i32 : i32, i32, i32
  }
  func.func @transform_2(%arg0: i32, %arg1: i32) -> (i32, i32, i32) {
    %c0_i32 = arith.constant 0 : i32
    %c0_i32_0 = arith.constant 0 : i32
    return %arg0, %arg1, %c0_i32 : i32, i32, i32
  }
  func.func @transform_3(%arg0: i32, %arg1: i32) -> (i32, i32) {
    %c0_i32 = arith.constant 0 : i32
    %c0_i32_0 = arith.constant 0 : i32
    return %arg1, %c0_i32 : i32, i32
  }
  func.func @transform_4(%arg0: i32, %arg1: i32) -> (i32, i32) {
    %c0_i32 = arith.constant 0 : i32
    %c0_i32_0 = arith.constant 0 : i32
    return %arg1, %c0_i32 : i32, i32
  }
  func.func @transform_5(%arg0: i32, %arg1: i32) -> (i32, i32) {
    %c0_i32 = arith.constant 0 : i32
    %c0_i32_0 = arith.constant 0 : i32
    return %arg1, %c0_i32 : i32, i32
  }
  func.func @transform_6(%arg0: i32, %arg1: i32) -> (i32, i32) {
    %c0_i32 = arith.constant 0 : i32
    %c0_i32_0 = arith.constant 0 : i32
    %c0_i32_1 = arith.constant 0 : i32
    return %c0_i32, %c0_i32_0 : i32, i32
  }
  func.func @transform_7(%arg0: i32, %arg1: i32) -> (i32, i32) {
    %c0_i32 = arith.constant 0 : i32
    %c0_i32_0 = arith.constant 0 : i32
    %c0_i32_1 = arith.constant 0 : i32
    return %c0_i32, %c0_i32_0 : i32, i32
  }
  func.func @transform_8(%arg0: i32, %arg1: i32) -> (i32, i32) {
    %c0_i32 = arith.constant 0 : i32
    %c0_i32_0 = arith.constant 0 : i32
    %c0_i32_1 = arith.constant 0 : i32
    return %c0_i32, %c0_i32_0 : i32, i32
  }
  func.func @transform_9(%arg0: i32, %arg1: i32) -> (i32, i32) {
    %c0_i32 = arith.constant 0 : i32
    %c0_i32_0 = arith.constant 0 : i32
    %c0_i32_1 = arith.constant 0 : i32
    return %c0_i32, %c0_i32_0 : i32, i32
  }
  func.func @transform_10(%arg0: i32, %arg1: i32) -> (i32, i32, i32) {
    %c0_i32 = arith.constant 0 : i32
    %c0_i32_0 = arith.constant 0 : i32
    return %arg0, %arg1, %c0_i32 : i32, i32, i32
  }
  func.func @transform_11(%arg0: i32, %arg1: i32) -> (i32, i32, i32) {
    %c0_i32 = arith.constant 0 : i32
    %c0_i32_0 = arith.constant 0 : i32
    return %arg0, %arg1, %c0_i32 : i32, i32, i32
  }
  func.func @transform_12(%arg0: i32, %arg1: i32) -> (i32, i32, i32) {
    %c0_i32 = arith.constant 0 : i32
    %c0_i32_0 = arith.constant 0 : i32
    return %arg0, %arg1, %c0_i32 : i32, i32, i32
  }
  func.func @transform_13(%arg0: i32, %arg1: i32) -> (i32, i32, i32) {
    %c0_i32 = arith.constant 0 : i32
    %c0_i32_0 = arith.constant 0 : i32
    return %arg0, %arg1, %c0_i32 : i32, i32, i32
  }
  func.func @transform_14(%arg0: i32, %arg1: i32) -> (i32, i32, i32) {
    %c0_i32 = arith.constant 0 : i32
    %c0_i32_0 = arith.constant 0 : i32
    return %arg0, %arg1, %c0_i32 : i32, i32, i32
  }
}

</mosaic_0001>

<llo_original>
// kernel: tile.19
$region0: #{tile.19}
  %s0 = inlined_call_operand.vmem [shape: f32[8,4,16], index: 0, kind: input, shape index: {}]
  %s1 = inlined_call_operand.vmem [shape: f32[8,64], index: 1, kind: output, shape index: {}]
  $region1: #{tile.19} parent=0
    #allocation0 [shape = 'u8[32768]{0}', space=vmem, size = 0x8000, scoped, tag = 'scoped mem for input reshape']
    %s3 = sshllo.u32 0, 4
    %s4 = smul.addr 4, 7
    %s5 = scalar_lea.vmem %s0, %s4
    %v6 = vld [vmem:[%s5] sm:%s3]
    %s7 = scalar_lea.vmem [#allocation0], 56
    %8 = vst [vmem:[%s7] sm:%s3] %v6
    %s9 = smul.addr 4, 6
    %s10 = scalar_lea.vmem %s0, %s9
    %v11 = vld [vmem:[%s10] sm:%s3]
    %s12 = scalar_lea.vmem [#allocation0], 48
    %13 = vst [vmem:[%s12] sm:%s3] %v11
    %s14 = smul.addr 4, 5
    %s15 = scalar_lea.vmem %s0, %s14
    %v16 = vld [vmem:[%s15] sm:%s3]
    %s17 = scalar_lea.vmem [#allocation0], 40
    %18 = vst [vmem:[%s17] sm:%s3] %v16
    %s19 = smul.addr 4, 4
    %s20 = scalar_lea.vmem %s0, %s19
    %v21 = vld [vmem:[%s20] sm:%s3]
    %s22 = scalar_lea.vmem [#allocation0], 32
    %23 = vst [vmem:[%s22] sm:%s3] %v21
    %s24 = smul.addr 4, 3
    %s25 = scalar_lea.vmem %s0, %s24
    %v26 = vld [vmem:[%s25] sm:%s3]
    %s27 = scalar_lea.vmem [#allocation0], 24
    %28 = vst [vmem:[%s27] sm:%s3] %v26
    %s29 = smul.addr 4, 2
    %s30 = scalar_lea.vmem %s0, %s29
    %v31 = vld [vmem:[%s30] sm:%s3]
    %s32 = scalar_lea.vmem [#allocation0], 16
    %33 = vst [vmem:[%s32] sm:%s3] %v31
    %s34 = scalar_lea.vmem %s0, 4
    %v35 = vld [vmem:[%s34] sm:%s3]
    %s36 = scalar_lea.vmem [#allocation0], 8
    %37 = vst [vmem:[%s36] sm:%s3] %v35
    %v38 = vld [vmem:[%s0] sm:%s3]
    %39 = vst [vmem:[#allocation0] sm:%s3] %v38
    %v40 = vld [vmem:[#allocation0] ss:$8 sm:$0xf]
    %v41 = vld [vmem:[#allocation0] ss:$8 sm:$0xf0]
    %vm42 = vcmask 1047556
    %v43 = vsel %vm42, %v41, %v40
    %vm44 = vcmask 130048
    %45 = vst.msk [vmem:[%s1] sm:$0xff] %vm44, %v43
    %s46 = scalar_lea.vmem [#allocation0], 3
    %v47 = vld [vmem:[%s46] ss:$8 sm:$0xf]
    %s48 = scalar_lea.vmem [#allocation0], 3
    %v49 = vld [vmem:[%s48] ss:$8 sm:$0xf0]
    %vm50 = vcmask 1047556
    %v51 = vsel %vm50, %v49, %v47
    %52 = vrot.lane.b32.xlu0 %v51, 48
    %v53 = vpop.permute.xlu0 %52
    %vm54 = vcmask 523648
    %55 = vst.msk [vmem:[%s1] sm:$0xff] %vm54, %v53
    %s56 = scalar_lea.vmem [#allocation0], 2
    %v57 = vld [vmem:[%s56] ss:$8 sm:$0xf]
    %s58 = scalar_lea.vmem [#allocation0], 2
    %v59 = vld [vmem:[%s58] ss:$8 sm:$0xf0]
    %vm60 = vcmask 1047556
    %v61 = vsel %vm60, %v59, %v57
    %62 = vrot.lane.b32.xlu0 %v61, 32
    %v63 = vpop.permute.xlu0 %62
    %vm64 = vcmask 392448
    %65 = vst.msk [vmem:[%s1] sm:$0xff] %vm64, %v63
    %s66 = scalar_lea.vmem [#allocation0], 1
    %v67 = vld [vmem:[%s66] ss:$8 sm:$0xf]
    %s68 = scalar_lea.vmem [#allocation0], 1
    %v69 = vld [vmem:[%s68] ss:$8 sm:$0xf0]
    %vm70 = vcmask 1047556
    %v71 = vsel %vm70, %v69, %v67
    %72 = vrot.lane.b32.xlu0 %v71, 16
    %v73 = vpop.permute.xlu0 %72
    %vm74 = vcmask 261248
    %75 = vst.msk [vmem:[%s1] sm:$0xff] %vm74, %v73

// kernel: squeeze.4
$region0: #{squeeze.4}
  #allocation0 [shape = 's32[1]{0}', space=sflag, size = 0x4, scoped, tag = 'scoped memory for squeeze.4']
  %s0 = inlined_call_operand.<no memory space> [shape: f32[], index: 0, kind: input, shape index: {}]
  %s1 = inlined_call_operand.vmem [shape: f32[2,8,8], index: 1, kind: output, shape index: {}]
  %v2 = vstv %s0
  %3 = vst [vmem:[%s1] sm:$0xff] %v2
  %s4 = scalar_lea.vmem %s1, 8
  %5 = vst [vmem:[%s4] sm:$0xff] %v2

// kernel: forward.4
$region0: #{forward.4}
  #allocation0 [shape = 'u32[]', space=smem, size = 0x4, offset = 0x4, fixed_abs, tag = 'smem constant byte address 0x4 - core index']
  #allocation1 [shape = 'u32[144,128]{1,0:T(1,128)}', space=vmem, size = 0x12000, scoped, tag = 'internal scratch']
  %s0 = inlined_call_operand.vmem [shape: f32[2,8,32], index: 0, kind: input, shape index: {}]
  %s1 = inlined_call_operand.vmem [shape: f32[2,8,8], index: 1, kind: input, shape index: {}]
  %s2 = inlined_call_operand.vmem [shape: f32[2,8,8], index: 2, kind: input, shape index: {}]
  %s3 = inlined_call_operand.vmem [shape: f32[8,64], index: 3, kind: input, shape index: {}]
  %s4 = inlined_call_operand.vmem [shape: f32[8,64], index: 4, kind: input, shape index: {}]
  %s5 = inlined_call_operand.vmem [shape: f32[8,64], index: 5, kind: input, shape index: {}]
  %s6 = inlined_call_operand.vmem [shape: f32[1,32], index: 6, kind: input, shape index: {}]
  %s7 = inlined_call_operand.vmem [shape: f32[1,32], index: 7, kind: input, shape index: {}]
  %s8 = inlined_call_operand.vmem [shape: bf16[32,16], index: 8, kind: input, shape index: {}]
  %s9 = inlined_call_operand.vmem [shape: bf16[48,192], index: 9, kind: input, shape index: {}]
  %s10 = inlined_call_operand.vmem [shape: bf16[2,8,64], index: 10, kind: output, shape index: {0}]
  %s11 = inlined_call_operand.vmem [shape: bf16[2,8,64], index: 11, kind: output, shape index: {1}]
  %s12 = inlined_call_operand.vmem [shape: bf16[2,8,64], index: 12, kind: output, shape index: {2}]
  %s13 = inlined_call_operand.vmem [shape: bf16[2,8,40], index: 13, kind: output, shape index: {3}]
  %s14 = inlined_call_operand.vmem [shape: f32[2,8,24], index: 14, kind: output, shape index: {4}]
  %15 = xla_tuple %s10, %s11, %s12, %s13, %s14
  %s16 = sld [smem:[#allocation0]]
  $region105: #{forward.4} parent=0
    _
  %s18 = ssub.s32 1, %s16
  %s19 = scalar_select 0, %s18, %s16
  loop: start=0, step=1, limit=4
  $region2: #{forward.4} parent=0 // loop_pre_header
    _
  $region3: #{forward.4} parent=0 // loop_header
    %s21 = sphi 0, %s25
    %p22 = scmp.ge.s32.totalorder %s21, 4
    %s28 = sphi 0, %s40
    %s29 = sphi 0, %s36
    %s30 = sphi 0, %s28
    %s31 = sphi 0, %s29
    %s32 = sphi 0, %s30
    %s33 = sphi 0, %s31
    %s45 = sphi 0, %s47
    %s48 = sphi 0, %s45
    %s49 = sphi 0, %s48
    %s65 = sphi 0, %s49
    %s73 = sphi 0, %s75
    %s76 = sphi 0, %s73
    %s77 = sphi 0, %s76
    %s93 = sphi 0, %s77
    %s101 = sphi 0, %s103
    %s104 = sphi 0, %s101
    %s105 = sphi 0, %s104
    %s121 = sphi 0, %s105
    %s127 = sphi 0, %s129
    %s130 = sphi 0, %s127
    %s131 = sphi 0, %s130
    %s147 = sphi 0, %s131
    %s153 = sphi 0, %s155
    %s156 = sphi 0, %s153
    %s157 = sphi 0, %s156
    %s173 = sphi 0, %s157
    %s179 = sphi 0, %s181
    %s182 = sphi 0, %s179
    %s183 = sphi 0, %s182
    %s199 = sphi 0, %s183
    %s203 = sphi 0, %s203
    %s205 = sphi 0, %s203
    %s206 = sphi 0, %s205
    %s220 = sphi 0, %s206
    %s224 = sphi 0, %s224
    %s226 = sphi 0, %s224
    %s227 = sphi 0, %s226
    %s241 = sphi 0, %s227
    %s245 = sphi 0, %s245
    %s247 = sphi 0, %s245
    %s248 = sphi 0, %s247
    %s262 = sphi 0, %s248
    %s266 = sphi 0, %s266
    %s268 = sphi 0, %s266
    %s269 = sphi 0, %s268
    %s283 = sphi 0, %s269
    %s291 = sphi 0, %s293
    %s294 = sphi 0, %s291
    %s295 = sphi 0, %s294
    %s311 = sphi 0, %s295
    %s319 = sphi 0, %s321
    %s322 = sphi 0, %s319
    %s323 = sphi 0, %s322
    %s339 = sphi 0, %s323
    %s347 = sphi 0, %s349
    %s350 = sphi 0, %s347
    %s351 = sphi 0, %s350
    %s367 = sphi 0, %s351
    %s375 = sphi 0, %s377
    %s378 = sphi 0, %s375
    %s379 = sphi 0, %s378
    %s395 = sphi 0, %s379
    %s403 = sphi 0, %s405
    %s406 = sphi 0, %s403
    %s407 = sphi 0, %s406
    %s423 = sphi 0, %s407
  $region4: #{forward.4} parent=0 // loop_header_branch
    %24 = sbr.rel (%p22) target = $region8
  $region5: #{forward.4} parent=0 // loop_body
    %s26 = ssub.s32 %s21, 1
    %s27 = ssub.s32 %s21, 2
    %s34 = sadd.s32 1, %s29
    %p35 = scmp.ge.s32.totalorder %s34, 1
    %s36 = scalar_select %p35, 0, %s34
    %s37 = sadd.s32 1, %s28
    %s38 = scalar_select %p35, %s37, %s28
    %p39 = scmp.ge.s32.totalorder %s38, 2
    %s40 = scalar_select %p39, 0, %s38
    %s41 = ssub.s32 %s28, %s40
    %s42 = ssub.s32 %s29, %s36
    %s43 = sor.u32 %s41, %s42
    %p44 = scmp.eq.s32.totalorder %s43, 0
    %s46 = sadd.s32 %s45, 1
    %s47 = scalar_select %p44, %s45, %s46
    %p50 = pneg %p44
    %p51 = scmp.eq.s32.totalorder %s21, 1
    %p52 = por %p50, %p51
    %p53 = scmp.ne.s32.totalorder %s45, %s48
    %p54 = scmp.eq.s32.totalorder %s21, 0
    %p55 = por %p53, %p54
    %p56 = scmp.ne.s32.totalorder %s45, %s48
    %p57 = scmp.eq.s32.totalorder %s26, 1
    %p58 = por %p56, %p57
    %p59 = scmp.ne.s32.totalorder %s48, %s49
    %p60 = scmp.eq.s32.totalorder %s26, 0
    %p61 = por %p59, %p60
    %p62 = scmp.ne.s32.totalorder %s48, %s49
    %p63 = scmp.eq.s32.totalorder %s27, 1
    %p64 = por %p62, %p63
    %p66 = scmp.ne.s32.totalorder %s49, %s65
    %p67 = scmp.eq.s32.totalorder %s27, 0
    %p68 = por %p66, %p67
    %s69 = ssub.s32 %s28, %s40
    %s70 = ssub.s32 %s29, %s36
    %s71 = sor.u32 %s69, %s70
    %p72 = scmp.eq.s32.totalorder %s71, 0
    %s74 = sadd.s32 %s73, 1
    %s75 = scalar_select %p72, %s73, %s74
    %p78 = pneg %p72
    %p79 = scmp.eq.s32.totalorder %s21, 1
    %p80 = por %p78, %p79
    %p81 = scmp.ne.s32.totalorder %s73, %s76
    %p82 = scmp.eq.s32.totalorder %s21, 0
    %p83 = por %p81, %p82
    %p84 = scmp.ne.s32.totalorder %s73, %s76
    %p85 = scmp.eq.s32.totalorder %s26, 1
    %p86 = por %p84, %p85
    %p87 = scmp.ne.s32.totalorder %s76, %s77
    %p88 = scmp.eq.s32.totalorder %s26, 0
    %p89 = por %p87, %p88
    %p90 = scmp.ne.s32.totalorder %s76, %s77
    %p91 = scmp.eq.s32.totalorder %s27, 1
    %p92 = por %p90, %p91
    %p94 = scmp.ne.s32.totalorder %s77, %s93
    %p95 = scmp.eq.s32.totalorder %s27, 0
    %p96 = por %p94, %p95
    %s97 = ssub.s32 %s28, %s40
    %s98 = ssub.s32 %s29, %s36
    %s99 = sor.u32 %s97, %s98
    %p100 = scmp.eq.s32.totalorder %s99, 0
    %s102 = sadd.s32 %s101, 1
    %s103 = scalar_select %p100, %s101, %s102
    %p106 = pneg %p100
    %p107 = scmp.eq.s32.totalorder %s21, 1
    %p108 = por %p106, %p107
    %p109 = scmp.ne.s32.totalorder %s101, %s104
    %p110 = scmp.eq.s32.totalorder %s21, 0
    %p111 = por %p109, %p110
    %p112 = scmp.ne.s32.totalorder %s101, %s104
    %p113 = scmp.eq.s32.totalorder %s26, 1
    %p114 = por %p112, %p113
    %p115 = scmp.ne.s32.totalorder %s104, %s105
    %p116 = scmp.eq.s32.totalorder %s26, 0
    %p117 = por %p115, %p116
    %p118 = scmp.ne.s32.totalorder %s104, %s105
    %p119 = scmp.eq.s32.totalorder %s27, 1
    %p120 = por %p118, %p119
    %p122 = scmp.ne.s32.totalorder %s105, %s121
    %p123 = scmp.eq.s32.totalorder %s27, 0
    %p124 = por %p122, %p123
    %s125 = ssub.s32 %s29, %s36
    %p126 = scmp.eq.s32.totalorder %s125, 0
    %s128 = sadd.s32 %s127, 1
    %s129 = scalar_select %p126, %s127, %s128
    %p132 = pneg %p126
    %p133 = scmp.eq.s32.totalorder %s21, 1
    %p134 = por %p132, %p133
    %p135 = scmp.ne.s32.totalorder %s127, %s130
    %p136 = scmp.eq.s32.totalorder %s21, 0
    %p137 = por %p135, %p136
    %p138 = scmp.ne.s32.totalorder %s127, %s130
    %p139 = scmp.eq.s32.totalorder %s26, 1
    %p140 = por %p138, %p139
    %p141 = scmp.ne.s32.totalorder %s130, %s131
    %p142 = scmp.eq.s32.totalorder %s26, 0
    %p143 = por %p141, %p142
    %p144 = scmp.ne.s32.totalorder %s130, %s131
    %p145 = scmp.eq.s32.totalorder %s27, 1
    %p146 = por %p144, %p145
    %p148 = scmp.ne.s32.totalorder %s131, %s147
    %p149 = scmp.eq.s32.totalorder %s27, 0
    %p150 = por %p148, %p149
    %s151 = ssub.s32 %s29, %s36
    %p152 = scmp.eq.s32.totalorder %s151, 0
    %s154 = sadd.s32 %s153, 1
    %s155 = scalar_select %p152, %s153, %s154
    %p158 = pneg %p152
    %p159 = scmp.eq.s32.totalorder %s21, 1
    %p160 = por %p158, %p159
    %p161 = scmp.ne.s32.totalorder %s153, %s156
    %p162 = scmp.eq.s32.totalorder %s21, 0
    %p163 = por %p161, %p162
    %p164 = scmp.ne.s32.totalorder %s153, %s156
    %p165 = scmp.eq.s32.totalorder %s26, 1
    %p166 = por %p164, %p165
    %p167 = scmp.ne.s32.totalorder %s156, %s157
    %p168 = scmp.eq.s32.totalorder %s26, 0
    %p169 = por %p167, %p168
    %p170 = scmp.ne.s32.totalorder %s156, %s157
    %p171 = scmp.eq.s32.totalorder %s27, 1
    %p172 = por %p170, %p171
    %p174 = scmp.ne.s32.totalorder %s157, %s173
    %p175 = scmp.eq.s32.totalorder %s27, 0
    %p176 = por %p174, %p175
    %s177 = ssub.s32 %s29, %s36
    %p178 = scmp.eq.s32.totalorder %s177, 0
    %s180 = sadd.s32 %s179, 1
    %s181 = scalar_select %p178, %s179, %s180
    %p184 = pneg %p178
    %p185 = scmp.eq.s32.totalorder %s21, 1
    %p186 = por %p184, %p185
    %p187 = scmp.ne.s32.totalorder %s179, %s182
    %p188 = scmp.eq.s32.totalorder %s21, 0
    %p189 = por %p187, %p188
    %p190 = scmp.ne.s32.totalorder %s179, %s182
    %p191 = scmp.eq.s32.totalorder %s26, 1
    %p192 = por %p190, %p191
    %p193 = scmp.ne.s32.totalorder %s182, %s183
    %p194 = scmp.eq.s32.totalorder %s26, 0
    %p195 = por %p193, %p194
    %p196 = scmp.ne.s32.totalorder %s182, %s183
    %p197 = scmp.eq.s32.totalorder %s27, 1
    %p198 = por %p196, %p197
    %p200 = scmp.ne.s32.totalorder %s183, %s199
    %p201 = scmp.eq.s32.totalorder %s27, 0
    %p202 = por %p200, %p201
    %s204 = sadd.s32 %s203, 1
    %p207 = scmp.eq.s32.totalorder %s21, 1
    %p208 = scmp.ne.s32.totalorder %s203, %s205
    %p209 = scmp.eq.s32.totalorder %s21, 0
    %p210 = por %p208, %p209
    %p211 = scmp.ne.s32.totalorder %s203, %s205
    %p212 = scmp.eq.s32.totalorder %s26, 1
    %p213 = por %p211, %p212
    %p214 = scmp.ne.s32.totalorder %s205, %s206
    %p215 = scmp.eq.s32.totalorder %s26, 0
    %p216 = por %p214, %p215
    %p217 = scmp.ne.s32.totalorder %s205, %s206
    %p218 = scmp.eq.s32.totalorder %s27, 1
    %p219 = por %p217, %p218
    %p221 = scmp.ne.s32.totalorder %s206, %s220
    %p222 = scmp.eq.s32.totalorder %s27, 0
    %p223 = por %p221, %p222
    %s225 = sadd.s32 %s224, 1
    %p228 = scmp.eq.s32.totalorder %s21, 1
    %p229 = scmp.ne.s32.totalorder %s224, %s226
    %p230 = scmp.eq.s32.totalorder %s21, 0
    %p231 = por %p229, %p230
    %p232 = scmp.ne.s32.totalorder %s224, %s226
    %p233 = scmp.eq.s32.totalorder %s26, 1
    %p234 = por %p232, %p233
    %p235 = scmp.ne.s32.totalorder %s226, %s227
    %p236 = scmp.eq.s32.totalorder %s26, 0
    %p237 = por %p235, %p236
    %p238 = scmp.ne.s32.totalorder %s226, %s227
    %p239 = scmp.eq.s32.totalorder %s27, 1
    %p240 = por %p238, %p239
    %p242 = scmp.ne.s32.totalorder %s227, %s241
    %p243 = scmp.eq.s32.totalorder %s27, 0
    %p244 = por %p242, %p243
    %s246 = sadd.s32 %s245, 1
    %p249 = scmp.eq.s32.totalorder %s21, 1
    %p250 = scmp.ne.s32.totalorder %s245, %s247
    %p251 = scmp.eq.s32.totalorder %s21, 0
    %p252 = por %p250, %p251
    %p253 = scmp.ne.s32.totalorder %s245, %s247
    %p254 = scmp.eq.s32.totalorder %s26, 1
    %p255 = por %p253, %p254
    %p256 = scmp.ne.s32.totalorder %s247, %s248
    %p257 = scmp.eq.s32.totalorder %s26, 0
    %p258 = por %p256, %p257
    %p259 = scmp.ne.s32.totalorder %s247, %s248
    %p260 = scmp.eq.s32.totalorder %s27, 1
    %p261 = por %p259, %p260
    %p263 = scmp.ne.s32.totalorder %s248, %s262
    %p264 = scmp.eq.s32.totalorder %s27, 0
    %p265 = por %p263, %p264
    %s267 = sadd.s32 %s266, 1
    %p270 = scmp.eq.s32.totalorder %s21, 1
    %p271 = scmp.ne.s32.totalorder %s266, %s268
    %p272 = scmp.eq.s32.totalorder %s21, 0
    %p273 = por %p271, %p272
    %p274 = scmp.ne.s32.totalorder %s266, %s268
    %p275 = scmp.eq.s32.totalorder %s26, 1
    %p276 = por %p274, %p275
    %p277 = scmp.ne.s32.totalorder %s268, %s269
    %p278 = scmp.eq.s32.totalorder %s26, 0
    %p279 = por %p277, %p278
    %p280 = scmp.ne.s32.totalorder %s268, %s269
    %p281 = scmp.eq.s32.totalorder %s27, 1
    %p282 = por %p280, %p281
    %p284 = scmp.ne.s32.totalorder %s269, %s283
    %p285 = scmp.eq.s32.totalorder %s27, 0
    %p286 = por %p284, %p285
    %s287 = ssub.s32 %s28, %s40
    %s288 = ssub.s32 %s29, %s36
    %s289 = sor.u32 %s287, %s288
    %p290 = scmp.eq.s32.totalorder %s289, 0
    %s292 = sadd.s32 %s291, 1
    %s293 = scalar_select %p290, %s291, %s292
    %p296 = pneg %p290
    %p297 = scmp.eq.s32.totalorder %s21, 1
    %p298 = por %p296, %p297
    %p299 = scmp.ne.s32.totalorder %s291, %s294
    %p300 = scmp.eq.s32.totalorder %s21, 0
    %p301 = por %p299, %p300
    %p302 = scmp.ne.s32.totalorder %s291, %s294
    %p303 = scmp.eq.s32.totalorder %s26, 1
    %p304 = por %p302, %p303
    %p305 = scmp.ne.s32.totalorder %s294, %s295
    %p306 = scmp.eq.s32.totalorder %s26, 0
    %p307 = por %p305, %p306
    %p308 = scmp.ne.s32.totalorder %s294, %s295
    %p309 = scmp.eq.s32.totalorder %s27, 1
    %p310 = por %p308, %p309
    %p312 = scmp.ne.s32.totalorder %s295, %s311
    %p313 = scmp.eq.s32.totalorder %s27, 0
    %p314 = por %p312, %p313
    %s315 = ssub.s32 %s28, %s40
    %s316 = ssub.s32 %s29, %s36
    %s317 = sor.u32 %s315, %s316
    %p318 = scmp.eq.s32.totalorder %s317, 0
    %s320 = sadd.s32 %s319, 1
    %s321 = scalar_select %p318, %s319, %s320
    %p324 = pneg %p318
    %p325 = scmp.eq.s32.totalorder %s21, 1
    %p326 = por %p324, %p325
    %p327 = scmp.ne.s32.totalorder %s319, %s322
    %p328 = scmp.eq.s32.totalorder %s21, 0
    %p329 = por %p327, %p328
    %p330 = scmp.ne.s32.totalorder %s319, %s322
    %p331 = scmp.eq.s32.totalorder %s26, 1
    %p332 = por %p330, %p331
    %p333 = scmp.ne.s32.totalorder %s322, %s323
    %p334 = scmp.eq.s32.totalorder %s26, 0
    %p335 = por %p333, %p334
    %p336 = scmp.ne.s32.totalorder %s322, %s323
    %p337 = scmp.eq.s32.totalorder %s27, 1
    %p338 = por %p336, %p337
    %p340 = scmp.ne.s32.totalorder %s323, %s339
    %p341 = scmp.eq.s32.totalorder %s27, 0
    %p342 = por %p340, %p341
    %s343 = ssub.s32 %s28, %s40
    %s344 = ssub.s32 %s29, %s36
    %s345 = sor.u32 %s343, %s344
    %p346 = scmp.eq.s32.totalorder %s345, 0
    %s348 = sadd.s32 %s347, 1
    %s349 = scalar_select %p346, %s347, %s348
    %p352 = pneg %p346
    %p353 = scmp.eq.s32.totalorder %s21, 1
    %p354 = por %p352, %p353
    %p355 = scmp.ne.s32.totalorder %s347, %s350
    %p356 = scmp.eq.s32.totalorder %s21, 0
    %p357 = por %p355, %p356
    %p358 = scmp.ne.s32.totalorder %s347, %s350
    %p359 = scmp.eq.s32.totalorder %s26, 1
    %p360 = por %p358, %p359
    %p361 = scmp.ne.s32.totalorder %s350, %s351
    %p362 = scmp.eq.s32.totalorder %s26, 0
    %p363 = por %p361, %p362
    %p364 = scmp.ne.s32.totalorder %s350, %s351
    %p365 = scmp.eq.s32.totalorder %s27, 1
    %p366 = por %p364, %p365
    %p368 = scmp.ne.s32.totalorder %s351, %s367
    %p369 = scmp.eq.s32.totalorder %s27, 0
    %p370 = por %p368, %p369
    %s371 = ssub.s32 %s28, %s40
    %s372 = ssub.s32 %s29, %s36
    %s373 = sor.u32 %s371, %s372
    %p374 = scmp.eq.s32.totalorder %s373, 0
    %s376 = sadd.s32 %s375, 1
    %s377 = scalar_select %p374, %s375, %s376
    %p380 = pneg %p374
    %p381 = scmp.eq.s32.totalorder %s21, 1
    %p382 = por %p380, %p381
    %p383 = scmp.ne.s32.totalorder %s375, %s378
    %p384 = scmp.eq.s32.totalorder %s21, 0
    %p385 = por %p383, %p384
    %p386 = scmp.ne.s32.totalorder %s375, %s378
    %p387 = scmp.eq.s32.totalorder %s26, 1
    %p388 = por %p386, %p387
    %p389 = scmp.ne.s32.totalorder %s378, %s379
    %p390 = scmp.eq.s32.totalorder %s26, 0
    %p391 = por %p389, %p390
    %p392 = scmp.ne.s32.totalorder %s378, %s379
    %p393 = scmp.eq.s32.totalorder %s27, 1
    %p394 = por %p392, %p393
    %p396 = scmp.ne.s32.totalorder %s379, %s395
    %p397 = scmp.eq.s32.totalorder %s27, 0
    %p398 = por %p396, %p397
    %s399 = ssub.s32 %s28, %s40
    %s400 = ssub.s32 %s29, %s36
    %s401 = sor.u32 %s399, %s400
    %p402 = scmp.eq.s32.totalorder %s401, 0
    %s404 = sadd.s32 %s403, 1
    %s405 = scalar_select %p402, %s403, %s404
    %p408 = pneg %p402
    %p409 = scmp.eq.s32.totalorder %s21, 1
    %p410 = por %p408, %p409
    %p411 = scmp.ne.s32.totalorder %s403, %s406
    %p412 = scmp.eq.s32.totalorder %s21, 0
    %p413 = por %p411, %p412
    %p414 = scmp.ne.s32.totalorder %s403, %s406
    %p415 = scmp.eq.s32.totalorder %s26, 1
    %p416 = por %p414, %p415
    %p417 = scmp.ne.s32.totalorder %s406, %s407
    %p418 = scmp.eq.s32.totalorder %s26, 0
    %p419 = por %p417, %p418
    %p420 = scmp.ne.s32.totalorder %s406, %s407
    %p421 = scmp.eq.s32.totalorder %s27, 1
    %p422 = por %p420, %p421
    %p424 = scmp.ne.s32.totalorder %s407, %s423
    %p425 = scmp.eq.s32.totalorder %s27, 0
    %p426 = por %p424, %p425
    %p427 = scmp.le.s32.totalorder 1, %s21
    %p428 = scmp.lt.s32.totalorder %s21, 3
    %p429 = pnand %p427, %p428
    %p430 = pneg %p429
    // Predicated region
    $region9: #{forward.4} parent=5 // pred_check
      _
    $region10: #{forward.4} parent=5 // pred_check_branch
      %432 = sbr.rel (%p429) target = $region12
    $region11: #{forward.4} parent=5 // pred_region
      %s433 = ssub.s32 %s21, 1
      // Predicated region
      $region13: #{forward.4} parent=11 // pred_check
        %p434 = pneg %p143
      $region14: #{forward.4} parent=11 // pred_check_branch
        %436 = sbr.rel (%p434) target = $region16
      $region15: #{forward.4} parent=11 // pred_region
        %p437 = scmp.lt.s32.totalorder %s31, 0
        %s438 = scalar_select %p437, %s31, 0
        %s439 = smul.addr %s438, 8
        %s440 = scalar_lea.vmem %s3, %s439
      $region16: #{forward.4} parent=11 // pred_fallthru
        _
      // Predicated region
      $region17: #{forward.4} parent=11 // pred_check
        %p441 = pneg %p169
      $region18: #{forward.4} parent=11 // pred_check_branch
        %443 = sbr.rel (%p441) target = $region20
      $region19: #{forward.4} parent=11 // pred_region
        %p444 = scmp.lt.s32.totalorder %s31, 0
        %s445 = scalar_select %p444, %s31, 0
        %s446 = smul.addr %s445, 8
        %s447 = scalar_lea.vmem %s4, %s446
      $region20: #{forward.4} parent=11 // pred_fallthru
        _
      // Predicated region
      $region21: #{forward.4} parent=11 // pred_check
        %p448 = pneg %p195
      $region22: #{forward.4} parent=11 // pred_check_branch
        %450 = sbr.rel (%p448) target = $region24
      $region23: #{forward.4} parent=11 // pred_region
        %p451 = scmp.lt.s32.totalorder %s31, 0
        %s452 = scalar_select %p451, %s31, 0
        %s453 = smul.addr %s452, 8
        %s454 = scalar_lea.vmem %s5, %s453
      $region24: #{forward.4} parent=11 // pred_fallthru
        _
      // Predicated region
      $region25: #{forward.4} parent=11 // pred_check
        %p455 = pneg %p216
      $region26: #{forward.4} parent=11 // pred_check_branch
        %457 = sbr.rel (%p455) target = $region28
      $region27: #{forward.4} parent=11 // pred_region
        _
      $region28: #{forward.4} parent=11 // pred_fallthru
        _
      // Predicated region
      $region29: #{forward.4} parent=11 // pred_check
        %p458 = pneg %p237
      $region30: #{forward.4} parent=11 // pred_check_branch
        %460 = sbr.rel (%p458) target = $region32
      $region31: #{forward.4} parent=11 // pred_region
        _
      $region32: #{forward.4} parent=11 // pred_fallthru
        _
      // Predicated region
      $region33: #{forward.4} parent=11 // pred_check
        %p461 = pneg %p258
      $region34: #{forward.4} parent=11 // pred_check_branch
        %463 = sbr.rel (%p461) target = $region36
      $region35: #{forward.4} parent=11 // pred_region
        _
      $region36: #{forward.4} parent=11 // pred_fallthru
        _
      // Predicated region
      $region37: #{forward.4} parent=11 // pred_check
        %p464 = pneg %p279
      $region38: #{forward.4} parent=11 // pred_check_branch
        %466 = sbr.rel (%p464) target = $region40
      $region39: #{forward.4} parent=11 // pred_region
        _
      $region40: #{forward.4} parent=11 // pred_fallthru
        _
    $region12: #{forward.4} parent=5 // pred_fallthru
      _
    %p467 = scmp.lt.s32.totalorder %s21, 2
    // Predicated region
    $region41: #{forward.4} parent=5 // pred_check
      %p468 = pneg %p467
    $region42: #{forward.4} parent=5 // pred_check_branch
      %470 = sbr.rel (%p468) target = $region44
    $region43: #{forward.4} parent=5 // pred_region
      // Predicated region
      $region45: #{forward.4} parent=43 // pred_check
        %p471 = pneg %p55
      $region46: #{forward.4} parent=43 // pred_check_branch
        %473 = sbr.rel (%p471) target = $region48
      $region47: #{forward.4} parent=43 // pred_region
        %p474 = scmp.lt.s32.totalorder %s28, 1
        %s475 = scalar_select %p474, %s28, 1
        %p476 = scmp.lt.s32.totalorder %s29, 0
        %s477 = scalar_select %p476, %s29, 0
        %s478 = sadd.s32 %s477, %s475
        %s479 = smul.addr %s478, 8
        %s480 = scalar_lea.vmem %s0, %s479
      $region48: #{forward.4} parent=43 // pred_fallthru
        _
      // Predicated region
      $region49: #{forward.4} parent=43 // pred_check
        %p481 = pneg %p83
      $region50: #{forward.4} parent=43 // pred_check_branch
        %483 = sbr.rel (%p481) target = $region52
      $region51: #{forward.4} parent=43 // pred_region
        %p484 = scmp.lt.s32.totalorder %s28, 1
        %s485 = scalar_select %p484, %s28, 1
        %p486 = scmp.lt.s32.totalorder %s29, 0
        %s487 = scalar_select %p486, %s29, 0
        %s488 = sadd.s32 %s487, %s485
        %s489 = smul.addr %s488, 8
        %s490 = scalar_lea.vmem %s1, %s489
      $region52: #{forward.4} parent=43 // pred_fallthru
        _
      // Predicated region
      $region53: #{forward.4} parent=43 // pred_check
        %p491 = pneg %p111
      $region54: #{forward.4} parent=43 // pred_check_branch
        %493 = sbr.rel (%p491) target = $region56
      $region55: #{forward.4} parent=43 // pred_region
        %p494 = scmp.lt.s32.totalorder %s28, 1
        %s495 = scalar_select %p494, %s28, 1
        %p496 = scmp.lt.s32.totalorder %s29, 0
        %s497 = scalar_select %p496, %s29, 0
        %s498 = sadd.s32 %s497, %s495
        %s499 = smul.addr %s498, 8
        %s500 = scalar_lea.vmem %s2, %s499
      $region56: #{forward.4} parent=43 // pred_fallthru
        _
    $region44: #{forward.4} parent=5 // pred_fallthru
      _
    %p501 = scmp.le.s32.totalorder 1, %s21
    %p502 = scmp.lt.s32.totalorder %s21, 3
    %p503 = pnand %p501, %p502
    %p504 = pneg %p503
    // Predicated region
    $region57: #{forward.4} parent=5 // pred_check
      _
    $region58: #{forward.4} parent=5 // pred_check_branch
      %506 = sbr.rel (%p503) target = $region60
    $region59: #{forward.4} parent=5 // pred_region
      %s507 = ssub.s32 %s21, 1
      %p508 = scmp.lt.s32.totalorder %s30, 1
      %s509 = scalar_select %p508, %s30, 1
      %p510 = scmp.lt.s32.totalorder %s31, 0
      %s511 = scalar_select %p510, %s31, 0
      %s512 = sadd.s32 %s511, %s509
      %s513 = smul.addr %s512, 8
      %s514 = scalar_lea.vmem %s0, %s513
      %p515 = pneg %p61
      %p516 = pneg %p58
      %p517 = scmp.lt.s32.totalorder %s30, 1
      %s518 = scalar_select %p517, %s30, 1
      %p519 = scmp.lt.s32.totalorder %s31, 0
      %s520 = scalar_select %p519, %s31, 0
      %s521 = sadd.s32 %s520, %s518
      %s522 = smul.addr %s521, 8
      %s523 = scalar_lea.vmem %s1, %s522
      %p524 = pneg %p89
      %p525 = pneg %p86
      %p526 = scmp.lt.s32.totalorder %s30, 1
      %s527 = scalar_select %p526, %s30, 1
      %p528 = scmp.lt.s32.totalorder %s31, 0
      %s529 = scalar_select %p528, %s31, 0
      %s530 = sadd.s32 %s529, %s527
      %s531 = smul.addr %s530, 8
      %s532 = scalar_lea.vmem %s2, %s531
      %p533 = pneg %p117
      %p534 = pneg %p114
      %p535 = scmp.lt.s32.totalorder %s31, 0
      %s536 = scalar_select %p535, %s31, 0
      %s537 = smul.addr %s536, 8
      %s538 = scalar_lea.vmem %s3, %s537
      %p539 = pneg %p143
      %p540 = pneg %p140
      %p541 = scmp.lt.s32.totalorder %s31, 0
      %s542 = scalar_select %p541, %s31, 0
      %s543 = smul.addr %s542, 8
      %s544 = scalar_lea.vmem %s4, %s543
      %p545 = pneg %p169
      %p546 = pneg %p166
      %p547 = scmp.lt.s32.totalorder %s31, 0
      %s548 = scalar_select %p547, %s31, 0
      %s549 = smul.addr %s548, 8
      %s550 = scalar_lea.vmem %s5, %s549
      %p551 = pneg %p195
      %p552 = pneg %p192
      %p553 = pneg %p216
      %p554 = pneg %p213
      %p555 = pneg %p237
      %p556 = pneg %p234
      %p557 = pneg %p258
      %p558 = pneg %p255
      %p559 = pneg %p279
      %p560 = pneg %p276
      %p561 = pneg %p307
      %p562 = pneg %p304
      %p563 = scmp.lt.s32.totalorder %s30, 1
      %s564 = scalar_select %p563, %s30, 1
      %p565 = scmp.lt.s32.totalorder %s31, 0
      %s566 = scalar_select %p565, %s31, 0
      %s567 = sadd.s32 %s566, %s564
      %s568 = smul.addr %s567, 4
      %s569 = scalar_lea.vmem %s10, %s568
      %p570 = pneg %p335
      %p571 = pneg %p332
      %p572 = scmp.lt.s32.totalorder %s30, 1
      %s573 = scalar_select %p572, %s30, 1
      %p574 = scmp.lt.s32.totalorder %s31, 0
      %s575 = scalar_select %p574, %s31, 0
      %s576 = sadd.s32 %s575, %s573
      %s577 = smul.addr %s576, 4
      %s578 = scalar_lea.vmem %s11, %s577
      %p579 = pneg %p363
      %p580 = pneg %p360
      %p581 = scmp.lt.s32.totalorder %s30, 1
      %s582 = scalar_select %p581, %s30, 1
      %p583 = scmp.lt.s32.totalorder %s31, 0
      %s584 = scalar_select %p583, %s31, 0
      %s585 = sadd.s32 %s584, %s582
      %s586 = smul.addr %s585, 4
      %s587 = scalar_lea.vmem %s12, %s586
      %p588 = pneg %p391
      %p589 = pneg %p388
      %p590 = scmp.lt.s32.totalorder %s30, 1
      %s591 = scalar_select %p590, %s30, 1
      %p592 = scmp.lt.s32.totalorder %s31, 0
      %s593 = scalar_select %p592, %s31, 0
      %s594 = sadd.s32 %s593, %s591
      %s595 = smul.addr %s594, 4
      %s596 = scalar_lea.vmem %s13, %s595
      %p597 = pneg %p419
      %p598 = pneg %p416
      %p599 = scmp.lt.s32.totalorder %s30, 1
      %s600 = scalar_select %p599, %s30, 1
      %p601 = scmp.lt.s32.totalorder %s31, 0
      %s602 = scalar_select %p601, %s31, 0
      %s603 = sadd.s32 %s602, %s600
      %s604 = smul.addr %s603, 8
      %s605 = scalar_lea.vmem %s14, %s604
      %p606 = scmp.lt.s32.totalorder %s30, 1
      %s607 = scalar_select %p606, %s30, 1
      %p608 = scmp.lt.s32.totalorder %s31, 0
      %s609 = scalar_select %p608, %s31, 0
      %s610 = sadd.s32 %s609, %s607
      %s611 = smul.addr %s610, 8
      %s612 = scalar_lea.vmem %s0, %s611
      %p613 = scmp.lt.s32.totalorder %s30, 1
      %s614 = scalar_select %p613, %s30, 1
      %p615 = scmp.lt.s32.totalorder %s31, 0
      %s616 = scalar_select %p615, %s31, 0
      %s617 = sadd.s32 %s616, %s614
      %s618 = smul.addr %s617, 8
      %s619 = scalar_lea.vmem %s1, %s618
      %p620 = scmp.lt.s32.totalorder %s30, 1
      %s621 = scalar_select %p620, %s30, 1
      %p622 = scmp.lt.s32.totalorder %s31, 0
      %s623 = scalar_select %p622, %s31, 0
      %s624 = sadd.s32 %s623, %s621
      %s625 = smul.addr %s624, 8
      %s626 = scalar_lea.vmem %s2, %s625
      %p627 = scmp.lt.s32.totalorder %s31, 0
      %s628 = scalar_select %p627, %s31, 0
      %s629 = smul.addr %s628, 8
      %s630 = scalar_lea.vmem %s3, %s629
      %p631 = scmp.lt.s32.totalorder %s31, 0
      %s632 = scalar_select %p631, %s31, 0
      %s633 = smul.addr %s632, 8
      %s634 = scalar_lea.vmem %s4, %s633
      %p635 = scmp.lt.s32.totalorder %s31, 0
      %s636 = scalar_select %p635, %s31, 0
      %s637 = smul.addr %s636, 8
      %s638 = scalar_lea.vmem %s5, %s637
      %p639 = scmp.lt.s32.totalorder %s30, 1
      %s640 = scalar_select %p639, %s30, 1
      %p641 = scmp.lt.s32.totalorder %s31, 0
      %s642 = scalar_select %p641, %s31, 0
      %s643 = sadd.s32 %s642, %s640
      %s644 = smul.addr %s643, 4
      %s645 = scalar_lea.vmem %s10, %s644
      %p646 = scmp.lt.s32.totalorder %s30, 1
      %s647 = scalar_select %p646, %s30, 1
      %p648 = scmp.lt.s32.totalorder %s31, 0
      %s649 = scalar_select %p648, %s31, 0
      %s650 = sadd.s32 %s649, %s647
      %s651 = smul.addr %s650, 4
      %s652 = scalar_lea.vmem %s11, %s651
      %p653 = scmp.lt.s32.totalorder %s30, 1
      %s654 = scalar_select %p653, %s30, 1
      %p655 = scmp.lt.s32.totalorder %s31, 0
      %s656 = scalar_select %p655, %s31, 0
      %s657 = sadd.s32 %s656, %s654
      %s658 = smul.addr %s657, 4
      %s659 = scalar_lea.vmem %s12, %s658
      %p660 = scmp.lt.s32.totalorder %s30, 1
      %s661 = scalar_select %p660, %s30, 1
      %p662 = scmp.lt.s32.totalorder %s31, 0
      %s663 = scalar_select %p662, %s31, 0
      %s664 = sadd.s32 %s663, %s661
      %s665 = smul.addr %s664, 4
      %s666 = scalar_lea.vmem %s13, %s665
      %p667 = scmp.lt.s32.totalorder %s30, 1
      %s668 = scalar_select %p667, %s30, 1
      %p669 = scmp.lt.s32.totalorder %s31, 0
      %s670 = scalar_select %p669, %s31, 0
      %s671 = sadd.s32 %s670, %s668
      %s672 = smul.addr %s671, 8
      %s673 = scalar_lea.vmem %s14, %s672
      %v675 = vld [vmem:[%s612] sm:$0xff]
      %vm676 = vcmask 261120
      %v677 = vsel %vm676, %v675, 0.0
      %678 = vadd.xlane.f32.xlu0 %v677
      %v679 = vpop.xlane.xlu0 %678
      %v680 = vrcp.pop 32.0
      %v681 = vmul.f32 %v679, %v680
      %v682 = vsub.f32 %v675, %v681
      %v683 = vmul.f32 %v682, %v682
      %v684 = vsel %vm676, %v683, 0.0
      %685 = vadd.xlane.f32.xlu0 %v684
      %v686 = vpop.xlane.xlu0 %685
      %v687 = vmul.f32 %v686, %v680
      %v688 = vadd.f32 %v687, 1e-05
      %v689 = vrsqrt.pop %v688
      %v690 = vmul.f32 %v682, %v689
      %v691 = vld [vmem:[%s6] sm:$0x1]
      %v693 = vlaneseq
      %v694 = vshrl.u32 %v693, 7
      %v695 = vsub.s32 0, %v694
      %v696 = vrot.slane %v691, %v695
      %v698 = vmul.f32 %v690, %v696
      %v699 = vld [vmem:[%s7] sm:$0x1]
      %v701 = vlaneseq
      %v702 = vshrl.u32 %v701, 7
      %v703 = vsub.s32 0, %v702
      %v704 = vrot.slane %v699, %v703
      %v706 = vadd.f32 %v698, %v704
      %v707 = vpack.c.bf16 %v706, %v706
      %v708 = vld [vmem:[%s8] sm:$0xf]
      %v709 = vld [vmem:[%s8 + $0x4] sm:$0xf]
      %v710 = vld [vmem:[%s8 + $0x8] sm:$0xf]
      %v711 = vld [vmem:[%s8 + $0xc] sm:$0xf]
      %v716 = vunpack.c.l.b16 %v708
      %v717 = vunpack.c.l.b16 %v709
      %v718 = vunpack.c.l.b16 %v710
      %v719 = vunpack.c.l.b16 %v711
      %v720 = vpack.c.b16 %v717, %v716
      %v721 = vpack.c.b16 %v719, %v718
      %v725 = vsel %vm676, %v707, 0
      %727 = vmatprep.subr.bf16.mxu0 0
      %728 = vmatpush1.bf16.msra.mxu0 %v720
      %729 = vmatprep.subr.bf16.mxu0 0
      %730 = vmatpush1.bf16.msra.mxu0 %v721
      %731 = vmatprep.subr.bf16.mxu0 0
      %732 = vmatpush1.bf16.msra.mxu0 0
      %733 = vmatprep.subr.bf16.mxu0 0
      %734 = vmatpush1.bf16.msra.mxu0 0
      %735 = vmatprep.subr.bf16.mxu0 0
      %736 = vmatpush1.bf16.msra.mxu0 0
      %737 = vmatprep.subr.bf16.mxu0 0
      %738 = vmatpush1.bf16.msra.mxu0 0
      %739 = vmatprep.subr.bf16.mxu0 0
      %740 = vmatpush1.bf16.msra.mxu0 0
      %741 = vmatprep.subr.bf16.mxu0 0
      %742 = vmatpush1.bf16.msra.mxu0 0
      %743 = vmatprep.subr.bf16.mxu0 0
      %744 = vmatpush1.bf16.msra.mxu0 0
      %745 = vmatprep.subr.bf16.mxu0 0
      %746 = vmatpush1.bf16.msra.mxu0 0
      %747 = vmatprep.subr.bf16.mxu0 0
      %748 = vmatpush1.bf16.msra.mxu0 0
      %749 = vmatprep.subr.bf16.mxu0 0
      %750 = vmatpush1.bf16.msra.mxu0 0
      %751 = vmatprep.subr.bf16.mxu0 0
      %752 = vmatpush1.bf16.msra.mxu0 0
      %753 = vmatprep.subr.bf16.mxu0 0
      %754 = vmatpush1.bf16.msra.mxu0 0
      %755 = vmatprep.subr.bf16.mxu0 0
      %756 = vmatpush1.bf16.msra.mxu0 0
      %757 = vmatprep.subr.bf16.mxu0 0
      %758 = vmatpush1.bf16.msra.mxu0 0
      %759 = vmatprep.mubr.bf16.mxu0 0
      %760 = vmatmul.mubr.bf16.gmra.mrb[0].mxu0 %v725
      %v761 = vpop.f32.mrb[0].mxu0
      %v762 = vadd.f32 0.0, %v761
      %v763 = vpop.f32.mrb[0].mxu0
      %v764 = vpop.f32.mrb[0].mxu0
      %v765 = vpop.f32.mrb[0].mxu0
      %766 = vdwg.mxu0
      %v767 = vadd.f32 %v762, 0.54132485
      %vm768 = vcmp.gt.f32.partialorder %v767, 20.0
      %v769 = vmin.f32 %v767, 20.0
      %v770 = vmul.f32 %v769, 1.442695
      %v771 = vpow.pop %v770
      %v772 = vadd.f32 %v771, 1.0
      %v773 = vlog2.pop %v772
      %v774 = vmul.f32 %v773, 0.6931472
      %v775 = vsel %vm768, %v767, %v774
      %v776 = vld [vmem:[%s619] sm:$0xff]
      %778 = vrot.lane.b32.xlu0 %v776, 8
      %v779 = vpop.permute.xlu0 %778
      %v781 = vmul.f32 %v775, %v779
      %783 = vrot.lane.b32.xlu0 %v781, 120
      %v784 = vpop.permute.xlu0 %783
      %v786 = vadd.f32 %v762, %v784
      %v787 = vpack.c.bf16 %v786, %v786
      %v788 = vld [vmem:[%s626] sm:$0xff]
      %v789 = vpack.c.bf16 %v788, %v788
      %791 = vrot.lane.b32.xlu0 %v787, 32
      %v792 = vpop.permute.xlu0 %791
      %794 = vrot.lane.b32.xlu0 %v789, 40
      %v795 = vpop.permute.xlu0 %794
      %v797 = vsel %vm676, %v707, %v792
      %vm798 = vcmask 326656
      %v800 = vsel %vm798, %v797, %v795
      %v801 = vld [vmem:[%s9] sm:$0xff]
      %v802 = vld [vmem:[%s9 + $0x8] sm:$0xff]
      %v803 = vld [vmem:[%s9 + $0x10] sm:$0xff]
      %v804 = vld [vmem:[%s9 + $0x18] sm:$0xff]
      %v805 = vld [vmem:[%s9 + $0x20] sm:$0xff]
      %v806 = vld [vmem:[%s9 + $0x28] sm:$0xff]
      %v813 = vunpack.c.l.b16 %v801
      %v814 = vunpack.c.h.b16 %v801
      %v815 = vunpack.c.l.b16 %v802
      %v816 = vunpack.c.h.b16 %v802
      %v817 = vunpack.c.l.b16 %v803
      %v818 = vunpack.c.h.b16 %v803
      %v819 = vunpack.c.l.b16 %v804
      %v820 = vunpack.c.h.b16 %v804
      %v821 = vunpack.c.l.b16 %v805
      %v822 = vunpack.c.h.b16 %v805
      %v823 = vunpack.c.l.b16 %v806
      %v824 = vunpack.c.h.b16 %v806
      %v825 = vpack.c.b16 %v815, %v813
      %v826 = vpack.c.b16 %v816, %v814
      %v827 = vpack.c.b16 %v819, %v817
      %v828 = vpack.c.b16 %v820, %v818
      %v829 = vpack.c.b16 %v823, %v821
      %v830 = vpack.c.b16 %v824, %v822
      %vm837 = vcmask 392192
      %v838 = vsel %vm837, %v800, 0
      %840 = vmatprep.subr.bf16.mxu0 %v826
      %841 = vmatpush1.bf16.msra.mxu0 %v825
      %842 = vmatprep.subr.bf16.mxu0 %v828
      %843 = vmatpush1.bf16.msra.mxu0 %v827
      %844 = vmatprep.subr.bf16.mxu0 %v830
      %845 = vmatpush1.bf16.msra.mxu0 %v829
      %846 = vmatprep.subr.bf16.mxu0 0
      %847 = vmatpush1.bf16.msra.mxu0 0
      %848 = vmatprep.subr.bf16.mxu0 0
      %849 = vmatpush1.bf16.msra.mxu0 0
      %850 = vmatprep.subr.bf16.mxu0 0
      %851 = vmatpush1.bf16.msra.mxu0 0
      %852 = vmatprep.subr.bf16.mxu0 0
      %853 = vmatpush1.bf16.msra.mxu0 0
      %854 = vmatprep.subr.bf16.mxu0 0
      %855 = vmatpush1.bf16.msra.mxu0 0
      %856 = vmatprep.subr.bf16.mxu0 0
      %857 = vmatpush1.bf16.msra.mxu0 0
      %858 = vmatprep.subr.bf16.mxu0 0
      %859 = vmatpush1.bf16.msra.mxu0 0
      %860 = vmatprep.subr.bf16.mxu0 0
      %861 = vmatpush1.bf16.msra.mxu0 0
      %862 = vmatprep.subr.bf16.mxu0 0
      %863 = vmatpush1.bf16.msra.mxu0 0
      %864 = vmatprep.subr.bf16.mxu0 0
      %865 = vmatpush1.bf16.msra.mxu0 0
      %866 = vmatprep.subr.bf16.mxu0 0
      %867 = vmatpush1.bf16.msra.mxu0 0
      %868 = vmatprep.subr.bf16.mxu0 0
      %869 = vmatpush1.bf16.msra.mxu0 0
      %870 = vmatprep.subr.bf16.mxu0 0
      %871 = vmatpush1.bf16.msra.mxu0 0
      %872 = vmatprep.mubr.bf16.mxu0 0
      %873 = vmatmul.mubr.bf16.gmra.mrb[0].mxu0 %v838
      %v874 = vpop.f32.mrb[0].mxu0
      %v875 = vadd.f32 0.0, %v874
      %v876 = vpop.f32.mrb[0].mxu0
      %v877 = vadd.f32 0.0, %v876
      %v878 = vpop.f32.mrb[0].mxu0
      %v879 = vpop.f32.mrb[0].mxu0
      %880 = vdwg.mxu0
      %v881 = vld [vmem:[%s630] sm:$0xff]
      %v882 = vld [vmem:[%s634] sm:$0xff]
      %v883 = vld [vmem:[%s638] sm:$0xff]
      %v884 = vmul.f32 %v875, %v881
      %886 = vrot.lane.b32.xlu0 %v875, 120
      %v887 = vpop.permute.xlu0 %886
      %889 = vrot.lane.b32.xlu0 %v875, 56
      %v890 = vpop.permute.xlu0 %889
      %vm892 = vcmask 457728
      %v893 = vsel %vm892, %v887, %v890
      %v894 = vmul.f32 %v893, %v882
      %v895 = vadd.f32 %v884, %v894
      %896 = vrot.lane.b32.xlu0 %v875, 72
      %v897 = vpop.permute.xlu0 %896
      %899 = vrot.lane.b32.xlu0 %v875, 8
      %v900 = vpop.permute.xlu0 %899
      %vm902 = vcmask 64512
      %v903 = vsel %vm902, %v897, %v900
      %v904 = vmul.f32 %v903, %v883
      %v905 = vadd.f32 %v895, %v904
      %v906 = vpack.c.bf16 %v905, %v905
      %vm907 = vcmask 519168
      %908 = vst.msk [vmem:[%s645] sm:$0xf] %vm907, %v906
      %910 = vrot.lane.b32.xlu0 %v881, 64
      %v911 = vpop.permute.xlu0 %910
      %v913 = vmul.f32 %v875, %v911
      %v914 = vsel %vm892, %v890, %v887
      %v915 = vmul.f32 %v914, %v882
      %917 = vrot.lane.b32.xlu0 %v915, 64
      %v918 = vpop.permute.xlu0 %917
      %v920 = vadd.f32 %v913, %v918
      %v921 = vsel %vm902, %v900, %v897
      %v922 = vmul.f32 %v921, %v883
      %924 = vrot.lane.b32.xlu0 %v922, 64
      %v925 = vpop.permute.xlu0 %924
      %v927 = vadd.f32 %v920, %v925
      %v928 = vpack.c.bf16 %v927, %v927
      %v930 = vunpack.c.l.b16 %v928
      %v931 = vpack.c.b16 %v930, %v930
      %932 = vrot.lane.b32.xlu0 %v931, 64
      %v933 = vpop.permute.xlu0 %932
      %935 = vst.msk [vmem:[%s652] sm:$0xf] %vm907, %v933
      %v936 = vpack.c.bf16 %v877, %v877
      %937 = vst.msk [vmem:[%s659] sm:$0xf] %vm907, %v936
      %939 = vrot.lane.b32.xlu0 %v786, 32
      %v940 = vpop.permute.xlu0 %939
      %v942 = vsel %vm676, %v706, %v940
      %v943 = vpack.c.bf16 %v942, %v942
      %vm944 = vcmask 322560
      %945 = vst.msk [vmem:[%s666] sm:$0xf] %vm944, %v943
      %947 = vrot.lane.b32.xlu0 %v762, 8
      %v948 = vpop.permute.xlu0 %947
      %951 = vrot.lane.b32.xlu0 %v775, 8
      %v952 = vpop.permute.xlu0 %951
      %v954 = vsel %vm902, %v786, %v948
      %vm955 = vcmask 130048
      %v956 = vsel %vm955, %v954, %v952
      %vm957 = vcmask 195584
      %958 = vst.msk [vmem:[%s673] sm:$0xff] %vm957, %v956
      %p959 = scmp.lt.s32.totalorder %s30, 1
      %s960 = scalar_select %p959, %s30, 1
      %p961 = scmp.lt.s32.totalorder %s31, 0
      %s962 = scalar_select %p961, %s31, 0
      %s963 = sadd.s32 %s962, %s960
      %s964 = smul.addr %s963, 4
      %s965 = scalar_lea.vmem %s10, %s964
      %p966 = scmp.lt.s32.totalorder %s30, 1
      %s967 = scalar_select %p966, %s30, 1
      %p968 = scmp.lt.s32.totalorder %s31, 0
      %s969 = scalar_select %p968, %s31, 0
      %s970 = sadd.s32 %s969, %s967
      %s971 = smul.addr %s970, 4
      %s972 = scalar_lea.vmem %s11, %s971
      %p973 = scmp.lt.s32.totalorder %s30, 1
      %s974 = scalar_select %p973, %s30, 1
      %p975 = scmp.lt.s32.totalorder %s31, 0
      %s976 = scalar_select %p975, %s31, 0
      %s977 = sadd.s32 %s976, %s974
      %s978 = smul.addr %s977, 4
      %s979 = scalar_lea.vmem %s12, %s978
      %p980 = scmp.lt.s32.totalorder %s30, 1
      %s981 = scalar_select %p980, %s30, 1
      %p982 = scmp.lt.s32.totalorder %s31, 0
      %s983 = scalar_select %p982, %s31, 0
      %s984 = sadd.s32 %s983, %s981
      %s985 = smul.addr %s984, 4
      %s986 = scalar_lea.vmem %s13, %s985
      %p987 = scmp.lt.s32.totalorder %s30, 1
      %s988 = scalar_select %p987, %s30, 1
      %p989 = scmp.lt.s32.totalorder %s31, 0
      %s990 = scalar_select %p989, %s31, 0
      %s991 = sadd.s32 %s990, %s988
      %s992 = smul.addr %s991, 8
      %s993 = scalar_lea.vmem %s14, %s992
      // Predicated region
      $region61: #{forward.4} parent=59 // pred_check
        %p994 = pneg %p304
      $region62: #{forward.4} parent=59 // pred_check_branch
        %996 = sbr.rel (%p994) target = $region64
      $region63: #{forward.4} parent=59 // pred_region
        _
      $region64: #{forward.4} parent=59 // pred_fallthru
        _
      // Predicated region
      $region65: #{forward.4} parent=59 // pred_check
        %p997 = pneg %p332
      $region66: #{forward.4} parent=59 // pred_check_branch
        %999 = sbr.rel (%p997) target = $region68
      $region67: #{forward.4} parent=59 // pred_region
        _
      $region68: #{forward.4} parent=59 // pred_fallthru
        _
      // Predicated region
      $region69: #{forward.4} parent=59 // pred_check
        %p1000 = pneg %p360
      $region70: #{forward.4} parent=59 // pred_check_branch
        %1002 = sbr.rel (%p1000) target = $region72
      $region71: #{forward.4} parent=59 // pred_region
        _
      $region72: #{forward.4} parent=59 // pred_fallthru
        _
      // Predicated region
      $region73: #{forward.4} parent=59 // pred_check
        %p1003 = pneg %p388
      $region74: #{forward.4} parent=59 // pred_check_branch
        %1005 = sbr.rel (%p1003) target = $region76
      $region75: #{forward.4} parent=59 // pred_region
        _
      $region76: #{forward.4} parent=59 // pred_fallthru
        _
      // Predicated region
      $region77: #{forward.4} parent=59 // pred_check
        %p1006 = pneg %p416
      $region78: #{forward.4} parent=59 // pred_check_branch
        %1008 = sbr.rel (%p1006) target = $region80
      $region79: #{forward.4} parent=59 // pred_region
        _
      $region80: #{forward.4} parent=59 // pred_fallthru
        _
    $region60: #{forward.4} parent=5 // pred_fallthru
      _
    %p1009 = scmp.le.s32.totalorder 2, %s21
    // Predicated region
    $region81: #{forward.4} parent=5 // pred_check
      %p1010 = pneg %p1009
    $region82: #{forward.4} parent=5 // pred_check_branch
      %1012 = sbr.rel (%p1010) target = $region84
    $region83: #{forward.4} parent=5 // pred_region
      %s1013 = ssub.s32 %s21, 2
      // Predicated region
      $region85: #{forward.4} parent=83 // pred_check
        %p1014 = pneg %p310
      $region86: #{forward.4} parent=83 // pred_check_branch
        %1016 = sbr.rel (%p1014) target = $region88
      $region87: #{forward.4} parent=83 // pred_region
        %p1017 = scmp.lt.s32.totalorder %s32, 1
        %s1018 = scalar_select %p1017, %s32, 1
        %p1019 = scmp.lt.s32.totalorder %s33, 0
        %s1020 = scalar_select %p1019, %s33, 0
        %s1021 = sadd.s32 %s1020, %s1018
        %s1022 = smul.addr %s1021, 4
        %s1023 = scalar_lea.vmem %s10, %s1022
      $region88: #{forward.4} parent=83 // pred_fallthru
        _
      // Predicated region
      $region89: #{forward.4} parent=83 // pred_check
        %p1024 = pneg %p338
      $region90: #{forward.4} parent=83 // pred_check_branch
        %1026 = sbr.rel (%p1024) target = $region92
      $region91: #{forward.4} parent=83 // pred_region
        %p1027 = scmp.lt.s32.totalorder %s32, 1
        %s1028 = scalar_select %p1027, %s32, 1
        %p1029 = scmp.lt.s32.totalorder %s33, 0
        %s1030 = scalar_select %p1029, %s33, 0
        %s1031 = sadd.s32 %s1030, %s1028
        %s1032 = smul.addr %s1031, 4
        %s1033 = scalar_lea.vmem %s11, %s1032
      $region92: #{forward.4} parent=83 // pred_fallthru
        _
      // Predicated region
      $region93: #{forward.4} parent=83 // pred_check
        %p1034 = pneg %p366
      $region94: #{forward.4} parent=83 // pred_check_branch
        %1036 = sbr.rel (%p1034) target = $region96
      $region95: #{forward.4} parent=83 // pred_region
        %p1037 = scmp.lt.s32.totalorder %s32, 1
        %s1038 = scalar_select %p1037, %s32, 1
        %p1039 = scmp.lt.s32.totalorder %s33, 0
        %s1040 = scalar_select %p1039, %s33, 0
        %s1041 = sadd.s32 %s1040, %s1038
        %s1042 = smul.addr %s1041, 4
        %s1043 = scalar_lea.vmem %s12, %s1042
      $region96: #{forward.4} parent=83 // pred_fallthru
        _
      // Predicated region
      $region97: #{forward.4} parent=83 // pred_check
        %p1044 = pneg %p394
      $region98: #{forward.4} parent=83 // pred_check_branch
        %1046 = sbr.rel (%p1044) target = $region100
      $region99: #{forward.4} parent=83 // pred_region
        %p1047 = scmp.lt.s32.totalorder %s32, 1
        %s1048 = scalar_select %p1047, %s32, 1
        %p1049 = scmp.lt.s32.totalorder %s33, 0
        %s1050 = scalar_select %p1049, %s33, 0
        %s1051 = sadd.s32 %s1050, %s1048
        %s1052 = smul.addr %s1051, 4
        %s1053 = scalar_lea.vmem %s13, %s1052
      $region100: #{forward.4} parent=83 // pred_fallthru
        _
      // Predicated region
      $region101: #{forward.4} parent=83 // pred_check
        %p1054 = pneg %p422
      $region102: #{forward.4} parent=83 // pred_check_branch
        %1056 = sbr.rel (%p1054) target = $region104
      $region103: #{forward.4} parent=83 // pred_region
        %p1057 = scmp.lt.s32.totalorder %s32, 1
        %s1058 = scalar_select %p1057, %s32, 1
        %p1059 = scmp.lt.s32.totalorder %s33, 0
        %s1060 = scalar_select %p1059, %s33, 0
        %s1061 = sadd.s32 %s1060, %s1058
        %s1062 = smul.addr %s1061, 8
        %s1063 = scalar_lea.vmem %s14, %s1062
      $region104: #{forward.4} parent=83 // pred_fallthru
        _
    $region84: #{forward.4} parent=5 // pred_fallthru
      _
  $region6: #{forward.4} parent=0 // loop_footer
    %s25 = sadd.s32 1, %s21
  $region7: #{forward.4} parent=0 // loop_footer_branch
    %20 = sbr.rel target = $region3
  $region8: #{forward.4} parent=0 // loop_exit
    _

// kernel: forward.7
$region0: #{forward.7}
  #allocation0 [shape = 'u32[]', space=smem, size = 0x4, offset = 0x4, fixed_abs, tag = 'smem constant byte address 0x4 - core index']
  #allocation1 [shape = 'u32[144,128]{1,0:T(1,128)}', space=vmem, size = 0x12000, scoped, tag = 'internal scratch']
  %s0 = inlined_call_operand.vmem [shape: f32[2,8,32], index: 0, kind: input, shape index: {}]
  %s1 = inlined_call_operand.vmem [shape: f32[2,8,8], index: 1, kind: input, shape index: {}]
  %s2 = inlined_call_operand.vmem [shape: f32[2,8,8], index: 2, kind: input, shape index: {}]
  %s3 = inlined_call_operand.vmem [shape: f32[8,64], index: 3, kind: input, shape index: {}]
  %s4 = inlined_call_operand.vmem [shape: f32[8,64], index: 4, kind: input, shape index: {}]
  %s5 = inlined_call_operand.vmem [shape: f32[8,64], index: 5, kind: input, shape index: {}]
  %s6 = inlined_call_operand.vmem [shape: f32[1,32], index: 6, kind: input, shape index: {}]
  %s7 = inlined_call_operand.vmem [shape: f32[1,32], index: 7, kind: input, shape index: {}]
  %s8 = inlined_call_operand.vmem [shape: bf16[32,16], index: 8, kind: input, shape index: {}]
  %s9 = inlined_call_operand.vmem [shape: bf16[48,192], index: 9, kind: input, shape index: {}]
  %s10 = inlined_call_operand.hbm [shape: bf16[2,8,64], index: 10, kind: output, shape index: {0}]
  %s11 = inlined_call_operand.hbm [shape: bf16[2,8,64], index: 11, kind: output, shape index: {1}]
  %s12 = inlined_call_operand.hbm [shape: bf16[2,8,64], index: 12, kind: output, shape index: {2}]
  %s13 = inlined_call_operand.hbm [shape: bf16[2,8,40], index: 13, kind: output, shape index: {3}]
  %s14 = inlined_call_operand.vmem [shape: f32[2,8,24], index: 14, kind: output, shape index: {4}]
  %15 = xla_tuple %s10, %s11, %s12, %s13, %s14
  %s16 = sld [smem:[#allocation0]]
  $region105: #{forward.7} parent=0
    _
  %s18 = ssub.s32 1, %s16
  %s19 = scalar_select 0, %s18, %s16
  $region1: #{forward.7} parent=0
    #allocation2 [shape = 'u8[4096]{0}', space=vmem, size = 0x1000, scoped, tag = 'output window, operand 0']
    #allocation3 [shape = 's32[2]{0}', space=sflag, size = 0x8, scoped, tag = 'scoped memory for forward.7']
    #allocation4 [shape = 'u8[4096]{0}', space=vmem, size = 0x1000, scoped, tag = 'output window, operand 1']
    #allocation5 [shape = 's32[2]{0}', space=sflag, size = 0x8, scoped, tag = 'scoped memory for forward.7']
    #allocation6 [shape = 'u8[4096]{0}', space=vmem, size = 0x1000, scoped, tag = 'output window, operand 2']
    #allocation7 [shape = 'u8[4096]{0}', space=vmem, size = 0x1000, scoped, tag = 'output window, operand 3']
    #allocation8 [shape = 's32[2]{0}', space=sflag, size = 0x8, scoped, tag = 'scoped memory for forward.7']
    %20 = vsyncpa [#allocation3], 0
    %s21 = scalar_lea.sflag [#allocation3], 1
    %22 = vsyncpa %s21, 0
    %23 = vsyncpa [#allocation5], 0
    %s24 = scalar_lea.sflag [#allocation5], 1
    %25 = vsyncpa %s24, 0
    %26 = vsyncpa [#allocation8], 0
    %s27 = scalar_lea.sflag [#allocation8], 1
    %28 = vsyncpa %s27, 0
    loop: start=0, step=1, limit=4
    $region2: #{forward.7} parent=1 // loop_pre_header
      _
    $region3: #{forward.7} parent=1 // loop_header
      %s30 = sphi 0, %s34
      %p31 = scmp.ge.s32.totalorder %s30, 4
      %s37 = sphi 0, %s49
      %s38 = sphi 0, %s45
      %s39 = sphi 0, %s37
      %s40 = sphi 0, %s38
      %s41 = sphi 0, %s39
      %s42 = sphi 0, %s40
      %s54 = sphi 0, %s56
      %s57 = sphi 0, %s54
      %s58 = sphi 0, %s57
      %s74 = sphi 0, %s58
      %s82 = sphi 0, %s84
      %s85 = sphi 0, %s82
      %s86 = sphi 0, %s85
      %s102 = sphi 0, %s86
      %s110 = sphi 0, %s112
      %s113 = sphi 0, %s110
      %s114 = sphi 0, %s113
      %s130 = sphi 0, %s114
      %s136 = sphi 0, %s138
      %s139 = sphi 0, %s136
      %s140 = sphi 0, %s139
      %s156 = sphi 0, %s140
      %s162 = sphi 0, %s164
      %s165 = sphi 0, %s162
      %s166 = sphi 0, %s165
      %s182 = sphi 0, %s166
      %s188 = sphi 0, %s190
      %s191 = sphi 0, %s188
      %s192 = sphi 0, %s191
      %s208 = sphi 0, %s192
      %s212 = sphi 0, %s212
      %s214 = sphi 0, %s212
      %s215 = sphi 0, %s214
      %s229 = sphi 0, %s215
      %s233 = sphi 0, %s233
      %s235 = sphi 0, %s233
      %s236 = sphi 0, %s235
      %s250 = sphi 0, %s236
      %s254 = sphi 0, %s254
      %s256 = sphi 0, %s254
      %s257 = sphi 0, %s256
      %s271 = sphi 0, %s257
      %s275 = sphi 0, %s275
      %s277 = sphi 0, %s275
      %s278 = sphi 0, %s277
      %s292 = sphi 0, %s278
      %s300 = sphi 0, %s302
      %s303 = sphi 0, %s300
      %s304 = sphi 0, %s303
      %s320 = sphi 0, %s304
      %s328 = sphi 0, %s330
      %s331 = sphi 0, %s328
      %s332 = sphi 0, %s331
      %s348 = sphi 0, %s332
      %s356 = sphi 0, %s358
      %s359 = sphi 0, %s356
      %s360 = sphi 0, %s359
      %s376 = sphi 0, %s360
      %s384 = sphi 0, %s386
      %s387 = sphi 0, %s384
      %s388 = sphi 0, %s387
      %s404 = sphi 0, %s388
      %s412 = sphi 0, %s414
      %s415 = sphi 0, %s412
      %s416 = sphi 0, %s415
      %s432 = sphi 0, %s416
    $region4: #{forward.7} parent=1 // loop_header_branch
      %33 = sbr.rel (%p31) target = $region8
    $region5: #{forward.7} parent=1 // loop_body
      %s35 = ssub.s32 %s30, 1
      %s36 = ssub.s32 %s30, 2
      %s43 = sadd.s32 1, %s38
      %p44 = scmp.ge.s32.totalorder %s43, 1
      %s45 = scalar_select %p44, 0, %s43
      %s46 = sadd.s32 1, %s37
      %s47 = scalar_select %p44, %s46, %s37
      %p48 = scmp.ge.s32.totalorder %s47, 2
      %s49 = scalar_select %p48, 0, %s47
      %s50 = ssub.s32 %s37, %s49
      %s51 = ssub.s32 %s38, %s45
      %s52 = sor.u32 %s50, %s51
      %p53 = scmp.eq.s32.totalorder %s52, 0
      %s55 = sadd.s32 %s54, 1
      %s56 = scalar_select %p53, %s54, %s55
      %p59 = pneg %p53
      %p60 = scmp.eq.s32.totalorder %s30, 1
      %p61 = por %p59, %p60
      %p62 = scmp.ne.s32.totalorder %s54, %s57
      %p63 = scmp.eq.s32.totalorder %s30, 0
      %p64 = por %p62, %p63
      %p65 = scmp.ne.s32.totalorder %s54, %s57
      %p66 = scmp.eq.s32.totalorder %s35, 1
      %p67 = por %p65, %p66
      %p68 = scmp.ne.s32.totalorder %s57, %s58
      %p69 = scmp.eq.s32.totalorder %s35, 0
      %p70 = por %p68, %p69
      %p71 = scmp.ne.s32.totalorder %s57, %s58
      %p72 = scmp.eq.s32.totalorder %s36, 1
      %p73 = por %p71, %p72
      %p75 = scmp.ne.s32.totalorder %s58, %s74
      %p76 = scmp.eq.s32.totalorder %s36, 0
      %p77 = por %p75, %p76
      %s78 = ssub.s32 %s37, %s49
      %s79 = ssub.s32 %s38, %s45
      %s80 = sor.u32 %s78, %s79
      %p81 = scmp.eq.s32.totalorder %s80, 0
      %s83 = sadd.s32 %s82, 1
      %s84 = scalar_select %p81, %s82, %s83
      %p87 = pneg %p81
      %p88 = scmp.eq.s32.totalorder %s30, 1
      %p89 = por %p87, %p88
      %p90 = scmp.ne.s32.totalorder %s82, %s85
      %p91 = scmp.eq.s32.totalorder %s30, 0
      %p92 = por %p90, %p91
      %p93 = scmp.ne.s32.totalorder %s82, %s85
      %p94 = scmp.eq.s32.totalorder %s35, 1
      %p95 = por %p93, %p94
      %p96 = scmp.ne.s32.totalorder %s85, %s86
      %p97 = scmp.eq.s32.totalorder %s35, 0
      %p98 = por %p96, %p97
      %p99 = scmp.ne.s32.totalorder %s85, %s86
      %p100 = scmp.eq.s32.totalorder %s36, 1
      %p101 = por %p99, %p100
      %p103 = scmp.ne.s32.totalorder %s86, %s102
      %p104 = scmp.eq.s32.totalorder %s36, 0
      %p105 = por %p103, %p104
      %s106 = ssub.s32 %s37, %s49
      %s107 = ssub.s32 %s38, %s45
      %s108 = sor.u32 %s106, %s107
      %p109 = scmp.eq.s32.totalorder %s108, 0
      %s111 = sadd.s32 %s110, 1
      %s112 = scalar_select %p109, %s110, %s111
      %p115 = pneg %p109
      %p116 = scmp.eq.s32.totalorder %s30, 1
      %p117 = por %p115, %p116
      %p118 = scmp.ne.s32.totalorder %s110, %s113
      %p119 = scmp.eq.s32.totalorder %s30, 0
      %p120 = por %p118, %p119
      %p121 = scmp.ne.s32.totalorder %s110, %s113
      %p122 = scmp.eq.s32.totalorder %s35, 1
      %p123 = por %p121, %p122
      %p124 = scmp.ne.s32.totalorder %s113, %s114
      %p125 = scmp.eq.s32.totalorder %s35, 0
      %p126 = por %p124, %p125
      %p127 = scmp.ne.s32.totalorder %s113, %s114
      %p128 = scmp.eq.s32.totalorder %s36, 1
      %p129 = por %p127, %p128
      %p131 = scmp.ne.s32.totalorder %s114, %s130
      %p132 = scmp.eq.s32.totalorder %s36, 0
      %p133 = por %p131, %p132
      %s134 = ssub.s32 %s38, %s45
      %p135 = scmp.eq.s32.totalorder %s134, 0
      %s137 = sadd.s32 %s136, 1
      %s138 = scalar_select %p135, %s136, %s137
      %p141 = pneg %p135
      %p142 = scmp.eq.s32.totalorder %s30, 1
      %p143 = por %p141, %p142
      %p144 = scmp.ne.s32.totalorder %s136, %s139
      %p145 = scmp.eq.s32.totalorder %s30, 0
      %p146 = por %p144, %p145
      %p147 = scmp.ne.s32.totalorder %s136, %s139
      %p148 = scmp.eq.s32.totalorder %s35, 1
      %p149 = por %p147, %p148
      %p150 = scmp.ne.s32.totalorder %s139, %s140
      %p151 = scmp.eq.s32.totalorder %s35, 0
      %p152 = por %p150, %p151
      %p153 = scmp.ne.s32.totalorder %s139, %s140
      %p154 = scmp.eq.s32.totalorder %s36, 1
      %p155 = por %p153, %p154
      %p157 = scmp.ne.s32.totalorder %s140, %s156
      %p158 = scmp.eq.s32.totalorder %s36, 0
      %p159 = por %p157, %p158
      %s160 = ssub.s32 %s38, %s45
      %p161 = scmp.eq.s32.totalorder %s160, 0
      %s163 = sadd.s32 %s162, 1
      %s164 = scalar_select %p161, %s162, %s163
      %p167 = pneg %p161
      %p168 = scmp.eq.s32.totalorder %s30, 1
      %p169 = por %p167, %p168
      %p170 = scmp.ne.s32.totalorder %s162, %s165
      %p171 = scmp.eq.s32.totalorder %s30, 0
      %p172 = por %p170, %p171
      %p173 = scmp.ne.s32.totalorder %s162, %s165
      %p174 = scmp.eq.s32.totalorder %s35, 1
      %p175 = por %p173, %p174
      %p176 = scmp.ne.s32.totalorder %s165, %s166
      %p177 = scmp.eq.s32.totalorder %s35, 0
      %p178 = por %p176, %p177
      %p179 = scmp.ne.s32.totalorder %s165, %s166
      %p180 = scmp.eq.s32.totalorder %s36, 1
      %p181 = por %p179, %p180
      %p183 = scmp.ne.s32.totalorder %s166, %s182
      %p184 = scmp.eq.s32.totalorder %s36, 0
      %p185 = por %p183, %p184
      %s186 = ssub.s32 %s38, %s45
      %p187 = scmp.eq.s32.totalorder %s186, 0
      %s189 = sadd.s32 %s188, 1
      %s190 = scalar_select %p187, %s188, %s189
      %p193 = pneg %p187
      %p194 = scmp.eq.s32.totalorder %s30, 1
      %p195 = por %p193, %p194
      %p196 = scmp.ne.s32.totalorder %s188, %s191
      %p197 = scmp.eq.s32.totalorder %s30, 0
      %p198 = por %p196, %p197
      %p199 = scmp.ne.s32.totalorder %s188, %s191
      %p200 = scmp.eq.s32.totalorder %s35, 1
      %p201 = por %p199, %p200
      %p202 = scmp.ne.s32.totalorder %s191, %s192
      %p203 = scmp.eq.s32.totalorder %s35, 0
      %p204 = por %p202, %p203
      %p205 = scmp.ne.s32.totalorder %s191, %s192
      %p206 = scmp.eq.s32.totalorder %s36, 1
      %p207 = por %p205, %p206
      %p209 = scmp.ne.s32.totalorder %s192, %s208
      %p210 = scmp.eq.s32.totalorder %s36, 0
      %p211 = por %p209, %p210
      %s213 = sadd.s32 %s212, 1
      %p216 = scmp.eq.s32.totalorder %s30, 1
      %p217 = scmp.ne.s32.totalorder %s212, %s214
      %p218 = scmp.eq.s32.totalorder %s30, 0
      %p219 = por %p217, %p218
      %p220 = scmp.ne.s32.totalorder %s212, %s214
      %p221 = scmp.eq.s32.totalorder %s35, 1
      %p222 = por %p220, %p221
      %p223 = scmp.ne.s32.totalorder %s214, %s215
      %p224 = scmp.eq.s32.totalorder %s35, 0
      %p225 = por %p223, %p224
      %p226 = scmp.ne.s32.totalorder %s214, %s215
      %p227 = scmp.eq.s32.totalorder %s36, 1
      %p228 = por %p226, %p227
      %p230 = scmp.ne.s32.totalorder %s215, %s229
      %p231 = scmp.eq.s32.totalorder %s36, 0
      %p232 = por %p230, %p231
      %s234 = sadd.s32 %s233, 1
      %p237 = scmp.eq.s32.totalorder %s30, 1
      %p238 = scmp.ne.s32.totalorder %s233, %s235
      %p239 = scmp.eq.s32.totalorder %s30, 0
      %p240 = por %p238, %p239
      %p241 = scmp.ne.s32.totalorder %s233, %s235
      %p242 = scmp.eq.s32.totalorder %s35, 1
      %p243 = por %p241, %p242
      %p244 = scmp.ne.s32.totalorder %s235, %s236
      %p245 = scmp.eq.s32.totalorder %s35, 0
      %p246 = por %p244, %p245
      %p247 = scmp.ne.s32.totalorder %s235, %s236
      %p248 = scmp.eq.s32.totalorder %s36, 1
      %p249 = por %p247, %p248
      %p251 = scmp.ne.s32.totalorder %s236, %s250
      %p252 = scmp.eq.s32.totalorder %s36, 0
      %p253 = por %p251, %p252
      %s255 = sadd.s32 %s254, 1
      %p258 = scmp.eq.s32.totalorder %s30, 1
      %p259 = scmp.ne.s32.totalorder %s254, %s256
      %p260 = scmp.eq.s32.totalorder %s30, 0
      %p261 = por %p259, %p260
      %p262 = scmp.ne.s32.totalorder %s254, %s256
      %p263 = scmp.eq.s32.totalorder %s35, 1
      %p264 = por %p262, %p263
      %p265 = scmp.ne.s32.totalorder %s256, %s257
      %p266 = scmp.eq.s32.totalorder %s35, 0
      %p267 = por %p265, %p266
      %p268 = scmp.ne.s32.totalorder %s256, %s257
      %p269 = scmp.eq.s32.totalorder %s36, 1
      %p270 = por %p268, %p269
      %p272 = scmp.ne.s32.totalorder %s257, %s271
      %p273 = scmp.eq.s32.totalorder %s36, 0
      %p274 = por %p272, %p273
      %s276 = sadd.s32 %s275, 1
      %p279 = scmp.eq.s32.totalorder %s30, 1
      %p280 = scmp.ne.s32.totalorder %s275, %s277
      %p281 = scmp.eq.s32.totalorder %s30, 0
      %p282 = por %p280, %p281
      %p283 = scmp.ne.s32.totalorder %s275, %s277
      %p284 = scmp.eq.s32.totalorder %s35, 1
      %p285 = por %p283, %p284
      %p286 = scmp.ne.s32.totalorder %s277, %s278
      %p287 = scmp.eq.s32.totalorder %s35, 0
      %p288 = por %p286, %p287
      %p289 = scmp.ne.s32.totalorder %s277, %s278
      %p290 = scmp.eq.s32.totalorder %s36, 1
      %p291 = por %p289, %p290
      %p293 = scmp.ne.s32.totalorder %s278, %s292
      %p294 = scmp.eq.s32.totalorder %s36, 0
      %p295 = por %p293, %p294
      %s296 = ssub.s32 %s37, %s49
      %s297 = ssub.s32 %s38, %s45
      %s298 = sor.u32 %s296, %s297
      %p299 = scmp.eq.s32.totalorder %s298, 0
      %s301 = sadd.s32 %s300, 1
      %s302 = scalar_select %p299, %s300, %s301
      %p305 = pneg %p299
      %p306 = scmp.eq.s32.totalorder %s30, 1
      %p307 = por %p305, %p306
      %p308 = scmp.ne.s32.totalorder %s300, %s303
      %p309 = scmp.eq.s32.totalorder %s30, 0
      %p310 = por %p308, %p309
      %p311 = scmp.ne.s32.totalorder %s300, %s303
      %p312 = scmp.eq.s32.totalorder %s35, 1
      %p313 = por %p311, %p312
      %p314 = scmp.ne.s32.totalorder %s303, %s304
      %p315 = scmp.eq.s32.totalorder %s35, 0
      %p316 = por %p314, %p315
      %p317 = scmp.ne.s32.totalorder %s303, %s304
      %p318 = scmp.eq.s32.totalorder %s36, 1
      %p319 = por %p317, %p318
      %p321 = scmp.ne.s32.totalorder %s304, %s320
      %p322 = scmp.eq.s32.totalorder %s36, 0
      %p323 = por %p321, %p322
      %s324 = ssub.s32 %s37, %s49
      %s325 = ssub.s32 %s38, %s45
      %s326 = sor.u32 %s324, %s325
      %p327 = scmp.eq.s32.totalorder %s326, 0
      %s329 = sadd.s32 %s328, 1
      %s330 = scalar_select %p327, %s328, %s329
      %p333 = pneg %p327
      %p334 = scmp.eq.s32.totalorder %s30, 1
      %p335 = por %p333, %p334
      %p336 = scmp.ne.s32.totalorder %s328, %s331
      %p337 = scmp.eq.s32.totalorder %s30, 0
      %p338 = por %p336, %p337
      %p339 = scmp.ne.s32.totalorder %s328, %s331
      %p340 = scmp.eq.s32.totalorder %s35, 1
      %p341 = por %p339, %p340
      %p342 = scmp.ne.s32.totalorder %s331, %s332
      %p343 = scmp.eq.s32.totalorder %s35, 0
      %p344 = por %p342, %p343
      %p345 = scmp.ne.s32.totalorder %s331, %s332
      %p346 = scmp.eq.s32.totalorder %s36, 1
      %p347 = por %p345, %p346
      %p349 = scmp.ne.s32.totalorder %s332, %s348
      %p350 = scmp.eq.s32.totalorder %s36, 0
      %p351 = por %p349, %p350
      %s352 = ssub.s32 %s37, %s49
      %s353 = ssub.s32 %s38, %s45
      %s354 = sor.u32 %s352, %s353
      %p355 = scmp.eq.s32.totalorder %s354, 0
      %s357 = sadd.s32 %s356, 1
      %s358 = scalar_select %p355, %s356, %s357
      %p361 = pneg %p355
      %p362 = scmp.eq.s32.totalorder %s30, 1
      %p363 = por %p361, %p362
      %p364 = scmp.ne.s32.totalorder %s356, %s359
      %p365 = scmp.eq.s32.totalorder %s30, 0
      %p366 = por %p364, %p365
      %p367 = scmp.ne.s32.totalorder %s356, %s359
      %p368 = scmp.eq.s32.totalorder %s35, 1
      %p369 = por %p367, %p368
      %p370 = scmp.ne.s32.totalorder %s359, %s360
      %p371 = scmp.eq.s32.totalorder %s35, 0
      %p372 = por %p370, %p371
      %p373 = scmp.ne.s32.totalorder %s359, %s360
      %p374 = scmp.eq.s32.totalorder %s36, 1
      %p375 = por %p373, %p374
      %p377 = scmp.ne.s32.totalorder %s360, %s376
      %p378 = scmp.eq.s32.totalorder %s36, 0
      %p379 = por %p377, %p378
      %s380 = ssub.s32 %s37, %s49
      %s381 = ssub.s32 %s38, %s45
      %s382 = sor.u32 %s380, %s381
      %p383 = scmp.eq.s32.totalorder %s382, 0
      %s385 = sadd.s32 %s384, 1
      %s386 = scalar_select %p383, %s384, %s385
      %p389 = pneg %p383
      %p390 = scmp.eq.s32.totalorder %s30, 1
      %p391 = por %p389, %p390
      %p392 = scmp.ne.s32.totalorder %s384, %s387
      %p393 = scmp.eq.s32.totalorder %s30, 0
      %p394 = por %p392, %p393
      %p395 = scmp.ne.s32.totalorder %s384, %s387
      %p396 = scmp.eq.s32.totalorder %s35, 1
      %p397 = por %p395, %p396
      %p398 = scmp.ne.s32.totalorder %s387, %s388
      %p399 = scmp.eq.s32.totalorder %s35, 0
      %p400 = por %p398, %p399
      %p401 = scmp.ne.s32.totalorder %s387, %s388
      %p402 = scmp.eq.s32.totalorder %s36, 1
      %p403 = por %p401, %p402
      %p405 = scmp.ne.s32.totalorder %s388, %s404
      %p406 = scmp.eq.s32.totalorder %s36, 0
      %p407 = por %p405, %p406
      %s408 = ssub.s32 %s37, %s49
      %s409 = ssub.s32 %s38, %s45
      %s410 = sor.u32 %s408, %s409
      %p411 = scmp.eq.s32.totalorder %s410, 0
      %s413 = sadd.s32 %s412, 1
      %s414 = scalar_select %p411, %s412, %s413
      %p417 = pneg %p411
      %p418 = scmp.eq.s32.totalorder %s30, 1
      %p419 = por %p417, %p418
      %p420 = scmp.ne.s32.totalorder %s412, %s415
      %p421 = scmp.eq.s32.totalorder %s30, 0
      %p422 = por %p420, %p421
      %p423 = scmp.ne.s32.totalorder %s412, %s415
      %p424 = scmp.eq.s32.totalorder %s35, 1
      %p425 = por %p423, %p424
      %p426 = scmp.ne.s32.totalorder %s415, %s416
      %p427 = scmp.eq.s32.totalorder %s35, 0
      %p428 = por %p426, %p427
      %p429 = scmp.ne.s32.totalorder %s415, %s416
      %p430 = scmp.eq.s32.totalorder %s36, 1
      %p431 = por %p429, %p430
      %p433 = scmp.ne.s32.totalorder %s416, %s432
      %p434 = scmp.eq.s32.totalorder %s36, 0
      %p435 = por %p433, %p434
      %p436 = scmp.le.s32.totalorder 1, %s30
      %p437 = scmp.lt.s32.totalorder %s30, 3
      %p438 = pnand %p436, %p437
      %p439 = pneg %p438
      // Predicated region
      $region9: #{forward.7} parent=5 // pred_check
        _
      $region10: #{forward.7} parent=5 // pred_check_branch
        %441 = sbr.rel (%p438) target = $region12
      $region11: #{forward.7} parent=5 // pred_region
        %s442 = ssub.s32 %s30, 1
        // Predicated region
        $region13: #{forward.7} parent=11 // pred_check
          %p443 = pneg %p152
        $region14: #{forward.7} parent=11 // pred_check_branch
          %445 = sbr.rel (%p443) target = $region16
        $region15: #{forward.7} parent=11 // pred_region
          %p446 = scmp.lt.s32.totalorder %s40, 0
          %s447 = scalar_select %p446, %s40, 0
          %s448 = smul.addr %s447, 8
          %s449 = scalar_lea.vmem %s3, %s448
        $region16: #{forward.7} parent=11 // pred_fallthru
          _
        // Predicated region
        $region17: #{forward.7} parent=11 // pred_check
          %p450 = pneg %p178
        $region18: #{forward.7} parent=11 // pred_check_branch
          %452 = sbr.rel (%p450) target = $region20
        $region19: #{forward.7} parent=11 // pred_region
          %p453 = scmp.lt.s32.totalorder %s40, 0
          %s454 = scalar_select %p453, %s40, 0
          %s455 = smul.addr %s454, 8
          %s456 = scalar_lea.vmem %s4, %s455
        $region20: #{forward.7} parent=11 // pred_fallthru
          _
        // Predicated region
        $region21: #{forward.7} parent=11 // pred_check
          %p457 = pneg %p204
        $region22: #{forward.7} parent=11 // pred_check_branch
          %459 = sbr.rel (%p457) target = $region24
        $region23: #{forward.7} parent=11 // pred_region
          %p460 = scmp.lt.s32.totalorder %s40, 0
          %s461 = scalar_select %p460, %s40, 0
          %s462 = smul.addr %s461, 8
          %s463 = scalar_lea.vmem %s5, %s462
        $region24: #{forward.7} parent=11 // pred_fallthru
          _
        // Predicated region
        $region25: #{forward.7} parent=11 // pred_check
          %p464 = pneg %p225
        $region26: #{forward.7} parent=11 // pred_check_branch
          %466 = sbr.rel (%p464) target = $region28
        $region27: #{forward.7} parent=11 // pred_region
          _
        $region28: #{forward.7} parent=11 // pred_fallthru
          _
        // Predicated region
        $region29: #{forward.7} parent=11 // pred_check
          %p467 = pneg %p246
        $region30: #{forward.7} parent=11 // pred_check_branch
          %469 = sbr.rel (%p467) target = $region32
        $region31: #{forward.7} parent=11 // pred_region
          _
        $region32: #{forward.7} parent=11 // pred_fallthru
          _
        // Predicated region
        $region33: #{forward.7} parent=11 // pred_check
          %p470 = pneg %p267
        $region34: #{forward.7} parent=11 // pred_check_branch
          %472 = sbr.rel (%p470) target = $region36
        $region35: #{forward.7} parent=11 // pred_region
          _
        $region36: #{forward.7} parent=11 // pred_fallthru
          _
        // Predicated region
        $region37: #{forward.7} parent=11 // pred_check
          %p473 = pneg %p288
        $region38: #{forward.7} parent=11 // pred_check_branch
          %475 = sbr.rel (%p473) target = $region40
        $region39: #{forward.7} parent=11 // pred_region
          _
        $region40: #{forward.7} parent=11 // pred_fallthru
          _
      $region12: #{forward.7} parent=5 // pred_fallthru
        _
      %p476 = scmp.lt.s32.totalorder %s30, 2
      // Predicated region
      $region41: #{forward.7} parent=5 // pred_check
        %p477 = pneg %p476
      $region42: #{forward.7} parent=5 // pred_check_branch
        %479 = sbr.rel (%p477) target = $region44
      $region43: #{forward.7} parent=5 // pred_region
        // Predicated region
        $region45: #{forward.7} parent=43 // pred_check
          %p480 = pneg %p64
        $region46: #{forward.7} parent=43 // pred_check_branch
          %482 = sbr.rel (%p480) target = $region48
        $region47: #{forward.7} parent=43 // pred_region
          %p483 = scmp.lt.s32.totalorder %s37, 1
          %s484 = scalar_select %p483, %s37, 1
          %p485 = scmp.lt.s32.totalorder %s38, 0
          %s486 = scalar_select %p485, %s38, 0
          %s487 = sadd.s32 %s486, %s484
          %s488 = smul.addr %s487, 8
          %s489 = scalar_lea.vmem %s0, %s488
        $region48: #{forward.7} parent=43 // pred_fallthru
          _
        // Predicated region
        $region49: #{forward.7} parent=43 // pred_check
          %p490 = pneg %p92
        $region50: #{forward.7} parent=43 // pred_check_branch
          %492 = sbr.rel (%p490) target = $region52
        $region51: #{forward.7} parent=43 // pred_region
          %p493 = scmp.lt.s32.totalorder %s37, 1
          %s494 = scalar_select %p493, %s37, 1
          %p495 = scmp.lt.s32.totalorder %s38, 0
          %s496 = scalar_select %p495, %s38, 0
          %s497 = sadd.s32 %s496, %s494
          %s498 = smul.addr %s497, 8
          %s499 = scalar_lea.vmem %s1, %s498
        $region52: #{forward.7} parent=43 // pred_fallthru
          _
        // Predicated region
        $region53: #{forward.7} parent=43 // pred_check
          %p500 = pneg %p120
        $region54: #{forward.7} parent=43 // pred_check_branch
          %502 = sbr.rel (%p500) target = $region56
        $region55: #{forward.7} parent=43 // pred_region
          %p503 = scmp.lt.s32.totalorder %s37, 1
          %s504 = scalar_select %p503, %s37, 1
          %p505 = scmp.lt.s32.totalorder %s38, 0
          %s506 = scalar_select %p505, %s38, 0
          %s507 = sadd.s32 %s506, %s504
          %s508 = smul.addr %s507, 8
          %s509 = scalar_lea.vmem %s2, %s508
        $region56: #{forward.7} parent=43 // pred_fallthru
          _
      $region44: #{forward.7} parent=5 // pred_fallthru
        _
      %p510 = scmp.le.s32.totalorder 1, %s30
      %p511 = scmp.lt.s32.totalorder %s30, 3
      %p512 = pnand %p510, %p511
      %p513 = pneg %p512
      // Predicated region
      $region57: #{forward.7} parent=5 // pred_check
        _
      $region58: #{forward.7} parent=5 // pred_check_branch
        %515 = sbr.rel (%p512) target = $region60
      $region59: #{forward.7} parent=5 // pred_region
        %s516 = ssub.s32 %s30, 1
        %p517 = scmp.lt.s32.totalorder %s39, 1
        %s518 = scalar_select %p517, %s39, 1
        %p519 = scmp.lt.s32.totalorder %s40, 0
        %s520 = scalar_select %p519, %s40, 0
        %s521 = sadd.s32 %s520, %s518
        %s522 = smul.addr %s521, 8
        %s523 = scalar_lea.vmem %s0, %s522
        %p524 = pneg %p70
        %p525 = pneg %p67
        %p526 = scmp.lt.s32.totalorder %s39, 1
        %s527 = scalar_select %p526, %s39, 1
        %p528 = scmp.lt.s32.totalorder %s40, 0
        %s529 = scalar_select %p528, %s40, 0
        %s530 = sadd.s32 %s529, %s527
        %s531 = smul.addr %s530, 8
        %s532 = scalar_lea.vmem %s1, %s531
        %p533 = pneg %p98
        %p534 = pneg %p95
        %p535 = scmp.lt.s32.totalorder %s39, 1
        %s536 = scalar_select %p535, %s39, 1
        %p537 = scmp.lt.s32.totalorder %s40, 0
        %s538 = scalar_select %p537, %s40, 0
        %s539 = sadd.s32 %s538, %s536
        %s540 = smul.addr %s539, 8
        %s541 = scalar_lea.vmem %s2, %s540
        %p542 = pneg %p126
        %p543 = pneg %p123
        %p544 = scmp.lt.s32.totalorder %s40, 0
        %s545 = scalar_select %p544, %s40, 0
        %s546 = smul.addr %s545, 8
        %s547 = scalar_lea.vmem %s3, %s546
        %p548 = pneg %p152
        %p549 = pneg %p149
        %p550 = scmp.lt.s32.totalorder %s40, 0
        %s551 = scalar_select %p550, %s40, 0
        %s552 = smul.addr %s551, 8
        %s553 = scalar_lea.vmem %s4, %s552
        %p554 = pneg %p178
        %p555 = pneg %p175
        %p556 = scmp.lt.s32.totalorder %s40, 0
        %s557 = scalar_select %p556, %s40, 0
        %s558 = smul.addr %s557, 8
        %s559 = scalar_lea.vmem %s5, %s558
        %p560 = pneg %p204
        %p561 = pneg %p201
        %p562 = pneg %p225
        %p563 = pneg %p222
        %p564 = pneg %p246
        %p565 = pneg %p243
        %p566 = pneg %p267
        %p567 = pneg %p264
        %p568 = pneg %p288
        %p569 = pneg %p285
        %p570 = pneg %p316
        %p571 = pneg %p313
        %s572 = sand.u32 %s303, 1
        %s573 = scalar_lea.sflag [#allocation3], %s572
        %s574 = sand.u32 %s303, 1
        %s575 = smul.addr %s574, 4
        %s576 = scalar_lea.vmem [#allocation2], %s575
        %p577 = pneg %p344
        %p578 = pneg %p341
        %s579 = sand.u32 %s35, 1
        %s580 = scalar_lea.sflag [#allocation5], %s579
        %s581 = sand.u32 %s331, 1
        %s582 = smul.addr %s581, 4
        %s583 = scalar_lea.vmem [#allocation4], %s582
        %p584 = pneg %p372
        %p585 = pneg %p369
        %s586 = sand.u32 %s35, 1
        %s587 = scalar_lea.sflag [#allocation5], %s586
        %s588 = sand.u32 %s359, 1
        %s589 = smul.addr %s588, 4
        %s590 = scalar_lea.vmem [#allocation6], %s589
        %p591 = pneg %p400
        %p592 = pneg %p397
        %s593 = sand.u32 %s387, 1
        %s594 = scalar_lea.sflag [#allocation8], %s593
        %s595 = sand.u32 %s387, 1
        %s596 = smul.addr %s595, 4
        %s597 = scalar_lea.vmem [#allocation7], %s596
        %p598 = pneg %p428
        %p599 = pneg %p425
        %p600 = scmp.lt.s32.totalorder %s39, 1
        %s601 = scalar_select %p600, %s39, 1
        %p602 = scmp.lt.s32.totalorder %s40, 0
        %s603 = scalar_select %p602, %s40, 0
        %s604 = sadd.s32 %s603, %s601
        %s605 = smul.addr %s604, 8
        %s606 = scalar_lea.vmem %s14, %s605
        %p607 = scmp.lt.s32.totalorder %s39, 1
        %s608 = scalar_select %p607, %s39, 1
        %p609 = scmp.lt.s32.totalorder %s40, 0
        %s610 = scalar_select %p609, %s40, 0
        %s611 = sadd.s32 %s610, %s608
        %s612 = smul.addr %s611, 8
        %s613 = scalar_lea.vmem %s0, %s612
        %p614 = scmp.lt.s32.totalorder %s39, 1
        %s615 = scalar_select %p614, %s39, 1
        %p616 = scmp.lt.s32.totalorder %s40, 0
        %s617 = scalar_select %p616, %s40, 0
        %s618 = sadd.s32 %s617, %s615
        %s619 = smul.addr %s618, 8
        %s620 = scalar_lea.vmem %s1, %s619
        %p621 = scmp.lt.s32.totalorder %s39, 1
        %s622 = scalar_select %p621, %s39, 1
        %p623 = scmp.lt.s32.totalorder %s40, 0
        %s624 = scalar_select %p623, %s40, 0
        %s625 = sadd.s32 %s624, %s622
        %s626 = smul.addr %s625, 8
        %s627 = scalar_lea.vmem %s2, %s626
        %p628 = scmp.lt.s32.totalorder %s40, 0
        %s629 = scalar_select %p628, %s40, 0
        %s630 = smul.addr %s629, 8
        %s631 = scalar_lea.vmem %s3, %s630
        %p632 = scmp.lt.s32.totalorder %s40, 0
        %s633 = scalar_select %p632, %s40, 0
        %s634 = smul.addr %s633, 8
        %s635 = scalar_lea.vmem %s4, %s634
        %p636 = scmp.lt.s32.totalorder %s40, 0
        %s637 = scalar_select %p636, %s40, 0
        %s638 = smul.addr %s637, 8
        %s639 = scalar_lea.vmem %s5, %s638
        %p640 = scmp.lt.s32.totalorder %s39, 1
        %s641 = scalar_select %p640, %s39, 1
        %p642 = scmp.lt.s32.totalorder %s40, 0
        %s643 = scalar_select %p642, %s40, 0
        %s644 = sadd.s32 %s643, %s641
        %s645 = smul.addr %s644, 8
        %s646 = scalar_lea.vmem %s14, %s645
        %v648 = vld [vmem:[%s613] sm:$0xff]
        %vm649 = vcmask 261120
        %v650 = vsel %vm649, %v648, 0.0
        %651 = vadd.xlane.f32.xlu0 %v650
        %v652 = vpop.xlane.xlu0 %651
        %v653 = vrcp.pop 32.0
        %v654 = vmul.f32 %v652, %v653
        %v655 = vsub.f32 %v648, %v654
        %v656 = vmul.f32 %v655, %v655
        %v657 = vsel %vm649, %v656, 0.0
        %658 = vadd.xlane.f32.xlu0 %v657
        %v659 = vpop.xlane.xlu0 %658
        %v660 = vmul.f32 %v659, %v653
        %v661 = vadd.f32 %v660, 1e-05
        %v662 = vrsqrt.pop %v661
        %v663 = vmul.f32 %v655, %v662
        %v664 = vld [vmem:[%s6] sm:$0x1]
        %v666 = vlaneseq
        %v667 = vshrl.u32 %v666, 7
        %v668 = vsub.s32 0, %v667
        %v669 = vrot.slane %v664, %v668
        %v671 = vmul.f32 %v663, %v669
        %v672 = vld [vmem:[%s7] sm:$0x1]
        %v674 = vlaneseq
        %v675 = vshrl.u32 %v674, 7
        %v676 = vsub.s32 0, %v675
        %v677 = vrot.slane %v672, %v676
        %v679 = vadd.f32 %v671, %v677
        %v680 = vpack.c.bf16 %v679, %v679
        %v681 = vld [vmem:[%s8] sm:$0xf]
        %v682 = vld [vmem:[%s8 + $0x4] sm:$0xf]
        %v683 = vld [vmem:[%s8 + $0x8] sm:$0xf]
        %v684 = vld [vmem:[%s8 + $0xc] sm:$0xf]
        %v689 = vunpack.c.l.b16 %v681
        %v690 = vunpack.c.l.b16 %v682
        %v691 = vunpack.c.l.b16 %v683
        %v692 = vunpack.c.l.b16 %v684
        %v693 = vpack.c.b16 %v690, %v689
        %v694 = vpack.c.b16 %v692, %v691
        %v698 = vsel %vm649, %v680, 0
        %700 = vmatprep.subr.bf16.mxu0 0
        %701 = vmatpush1.bf16.msra.mxu0 %v693
        %702 = vmatprep.subr.bf16.mxu0 0
        %703 = vmatpush1.bf16.msra.mxu0 %v694
        %704 = vmatprep.subr.bf16.mxu0 0
        %705 = vmatpush1.bf16.msra.mxu0 0
        %706 = vmatprep.subr.bf16.mxu0 0
        %707 = vmatpush1.bf16.msra.mxu0 0
        %708 = vmatprep.subr.bf16.mxu0 0
        %709 = vmatpush1.bf16.msra.mxu0 0
        %710 = vmatprep.subr.bf16.mxu0 0
        %711 = vmatpush1.bf16.msra.mxu0 0
        %712 = vmatprep.subr.bf16.mxu0 0
        %713 = vmatpush1.bf16.msra.mxu0 0
        %714 = vmatprep.subr.bf16.mxu0 0
        %715 = vmatpush1.bf16.msra.mxu0 0
        %716 = vmatprep.subr.bf16.mxu0 0
        %717 = vmatpush1.bf16.msra.mxu0 0
        %718 = vmatprep.subr.bf16.mxu0 0
        %719 = vmatpush1.bf16.msra.mxu0 0
        %720 = vmatprep.subr.bf16.mxu0 0
        %721 = vmatpush1.bf16.msra.mxu0 0
        %722 = vmatprep.subr.bf16.mxu0 0
        %723 = vmatpush1.bf16.msra.mxu0 0
        %724 = vmatprep.subr.bf16.mxu0 0
        %725 = vmatpush1.bf16.msra.mxu0 0
        %726 = vmatprep.subr.bf16.mxu0 0
        %727 = vmatpush1.bf16.msra.mxu0 0
        %728 = vmatprep.subr.bf16.mxu0 0
        %729 = vmatpush1.bf16.msra.mxu0 0
        %730 = vmatprep.subr.bf16.mxu0 0
        %731 = vmatpush1.bf16.msra.mxu0 0
        %732 = vmatprep.mubr.bf16.mxu0 0
        %733 = vmatmul.mubr.bf16.gmra.mrb[0].mxu0 %v698
        %v734 = vpop.f32.mrb[0].mxu0
        %v735 = vadd.f32 0.0, %v734
        %v736 = vpop.f32.mrb[0].mxu0
        %v737 = vpop.f32.mrb[0].mxu0
        %v738 = vpop.f32.mrb[0].mxu0
        %739 = vdwg.mxu0
        %v740 = vadd.f32 %v735, 0.54132485
        %vm741 = vcmp.gt.f32.partialorder %v740, 20.0
        %v742 = vmin.f32 %v740, 20.0
        %v743 = vmul.f32 %v742, 1.442695
        %v744 = vpow.pop %v743
        %v745 = vadd.f32 %v744, 1.0
        %v746 = vlog2.pop %v745
        %v747 = vmul.f32 %v746, 0.6931472
        %v748 = vsel %vm741, %v740, %v747
        %v749 = vld [vmem:[%s620] sm:$0xff]
        %751 = vrot.lane.b32.xlu0 %v749, 8
        %v752 = vpop.permute.xlu0 %751
        %v754 = vmul.f32 %v748, %v752
        %756 = vrot.lane.b32.xlu0 %v754, 120
        %v757 = vpop.permute.xlu0 %756
        %v759 = vadd.f32 %v735, %v757
        %v760 = vpack.c.bf16 %v759, %v759
        %v761 = vld [vmem:[%s627] sm:$0xff]
        %v762 = vpack.c.bf16 %v761, %v761
        %764 = vrot.lane.b32.xlu0 %v760, 32
        %v765 = vpop.permute.xlu0 %764
        %767 = vrot.lane.b32.xlu0 %v762, 40
        %v768 = vpop.permute.xlu0 %767
        %v770 = vsel %vm649, %v680, %v765
        %vm771 = vcmask 326656
        %v773 = vsel %vm771, %v770, %v768
        %v774 = vld [vmem:[%s9] sm:$0xff]
        %v775 = vld [vmem:[%s9 + $0x8] sm:$0xff]
        %v776 = vld [vmem:[%s9 + $0x10] sm:$0xff]
        %v777 = vld [vmem:[%s9 + $0x18] sm:$0xff]
        %v778 = vld [vmem:[%s9 + $0x20] sm:$0xff]
        %v779 = vld [vmem:[%s9 + $0x28] sm:$0xff]
        %v786 = vunpack.c.l.b16 %v774
        %v787 = vunpack.c.h.b16 %v774
        %v788 = vunpack.c.l.b16 %v775
        %v789 = vunpack.c.h.b16 %v775
        %v790 = vunpack.c.l.b16 %v776
        %v791 = vunpack.c.h.b16 %v776
        %v792 = vunpack.c.l.b16 %v777
        %v793 = vunpack.c.h.b16 %v777
        %v794 = vunpack.c.l.b16 %v778
        %v795 = vunpack.c.h.b16 %v778
        %v796 = vunpack.c.l.b16 %v779
        %v797 = vunpack.c.h.b16 %v779
        %v798 = vpack.c.b16 %v788, %v786
        %v799 = vpack.c.b16 %v789, %v787
        %v800 = vpack.c.b16 %v792, %v790
        %v801 = vpack.c.b16 %v793, %v791
        %v802 = vpack.c.b16 %v796, %v794
        %v803 = vpack.c.b16 %v797, %v795
        %vm810 = vcmask 392192
        %v811 = vsel %vm810, %v773, 0
        %813 = vmatprep.subr.bf16.mxu0 %v799
        %814 = vmatpush1.bf16.msra.mxu0 %v798
        %815 = vmatprep.subr.bf16.mxu0 %v801
        %816 = vmatpush1.bf16.msra.mxu0 %v800
        %817 = vmatprep.subr.bf16.mxu0 %v803
        %818 = vmatpush1.bf16.msra.mxu0 %v802
        %819 = vmatprep.subr.bf16.mxu0 0
        %820 = vmatpush1.bf16.msra.mxu0 0
        %821 = vmatprep.subr.bf16.mxu0 0
        %822 = vmatpush1.bf16.msra.mxu0 0
        %823 = vmatprep.subr.bf16.mxu0 0
        %824 = vmatpush1.bf16.msra.mxu0 0
        %825 = vmatprep.subr.bf16.mxu0 0
        %826 = vmatpush1.bf16.msra.mxu0 0
        %827 = vmatprep.subr.bf16.mxu0 0
        %828 = vmatpush1.bf16.msra.mxu0 0
        %829 = vmatprep.subr.bf16.mxu0 0
        %830 = vmatpush1.bf16.msra.mxu0 0
        %831 = vmatprep.subr.bf16.mxu0 0
        %832 = vmatpush1.bf16.msra.mxu0 0
        %833 = vmatprep.subr.bf16.mxu0 0
        %834 = vmatpush1.bf16.msra.mxu0 0
        %835 = vmatprep.subr.bf16.mxu0 0
        %836 = vmatpush1.bf16.msra.mxu0 0
        %837 = vmatprep.subr.bf16.mxu0 0
        %838 = vmatpush1.bf16.msra.mxu0 0
        %839 = vmatprep.subr.bf16.mxu0 0
        %840 = vmatpush1.bf16.msra.mxu0 0
        %841 = vmatprep.subr.bf16.mxu0 0
        %842 = vmatpush1.bf16.msra.mxu0 0
        %843 = vmatprep.subr.bf16.mxu0 0
        %844 = vmatpush1.bf16.msra.mxu0 0
        %845 = vmatprep.mubr.bf16.mxu0 0
        %846 = vmatmul.mubr.bf16.gmra.mrb[0].mxu0 %v811
        %v847 = vpop.f32.mrb[0].mxu0
        %v848 = vadd.f32 0.0, %v847
        %v849 = vpop.f32.mrb[0].mxu0
        %v850 = vadd.f32 0.0, %v849
        %v851 = vpop.f32.mrb[0].mxu0
        %v852 = vpop.f32.mrb[0].mxu0
        %853 = vdwg.mxu0
        %v854 = vld [vmem:[%s631] sm:$0xff]
        %v855 = vld [vmem:[%s635] sm:$0xff]
        %v856 = vld [vmem:[%s639] sm:$0xff]
        %v857 = vmul.f32 %v848, %v854
        %859 = vrot.lane.b32.xlu0 %v848, 120
        %v860 = vpop.permute.xlu0 %859
        %862 = vrot.lane.b32.xlu0 %v848, 56
        %v863 = vpop.permute.xlu0 %862
        %vm865 = vcmask 457728
        %v866 = vsel %vm865, %v860, %v863
        %v867 = vmul.f32 %v866, %v855
        %v868 = vadd.f32 %v857, %v867
        %869 = vrot.lane.b32.xlu0 %v848, 72
        %v870 = vpop.permute.xlu0 %869
        %872 = vrot.lane.b32.xlu0 %v848, 8
        %v873 = vpop.permute.xlu0 %872
        %vm875 = vcmask 64512
        %v876 = vsel %vm875, %v870, %v873
        %v877 = vmul.f32 %v876, %v856
        %v878 = vadd.f32 %v868, %v877
        %v879 = vpack.c.bf16 %v878, %v878
        %vm880 = vcmask 519168
        %881 = vst.msk [vmem:[%s576] sm:$0xf] %vm880, %v879
        %883 = vrot.lane.b32.xlu0 %v854, 64
        %v884 = vpop.permute.xlu0 %883
        %v886 = vmul.f32 %v848, %v884
        %v887 = vsel %vm865, %v863, %v860
        %v888 = vmul.f32 %v887, %v855
        %890 = vrot.lane.b32.xlu0 %v888, 64
        %v891 = vpop.permute.xlu0 %890
        %v893 = vadd.f32 %v886, %v891
        %v894 = vsel %vm875, %v873, %v870
        %v895 = vmul.f32 %v894, %v856
        %897 = vrot.lane.b32.xlu0 %v895, 64
        %v898 = vpop.permute.xlu0 %897
        %v900 = vadd.f32 %v893, %v898
        %v901 = vpack.c.bf16 %v900, %v900
        %v903 = vunpack.c.l.b16 %v901
        %v904 = vpack.c.b16 %v903, %v903
        %905 = vrot.lane.b32.xlu0 %v904, 64
        %v906 = vpop.permute.xlu0 %905
        %908 = vst.msk [vmem:[%s583] sm:$0xf] %vm880, %v906
        %v909 = vpack.c.bf16 %v850, %v850
        %910 = vst.msk [vmem:[%s590] sm:$0xf] %vm880, %v909
        %912 = vrot.lane.b32.xlu0 %v759, 32
        %v913 = vpop.permute.xlu0 %912
        %v915 = vsel %vm649, %v679, %v913
        %v916 = vpack.c.bf16 %v915, %v915
        %vm917 = vcmask 322560
        %918 = vst.msk [vmem:[%s597] sm:$0xf] %vm917, %v916
        %920 = vrot.lane.b32.xlu0 %v735, 8
        %v921 = vpop.permute.xlu0 %920
        %924 = vrot.lane.b32.xlu0 %v748, 8
        %v925 = vpop.permute.xlu0 %924
        %v927 = vsel %vm875, %v759, %v921
        %vm928 = vcmask 130048
        %v929 = vsel %vm928, %v927, %v925
        %vm930 = vcmask 195584
        %931 = vst.msk [vmem:[%s646] sm:$0xff] %vm930, %v929
        %s932 = sand.u32 %s303, 1
        %s933 = scalar_lea.sflag [#allocation3], %s932
        %s934 = sand.u32 %s303, 1
        %s935 = smul.addr %s934, 4
        %s936 = scalar_lea.vmem [#allocation2], %s935
        %s937 = sand.u32 %s35, 1
        %s938 = scalar_lea.sflag [#allocation5], %s937
        %s939 = sand.u32 %s331, 1
        %s940 = smul.addr %s939, 4
        %s941 = scalar_lea.vmem [#allocation4], %s940
        %s942 = sand.u32 %s35, 1
        %s943 = scalar_lea.sflag [#allocation5], %s942
        %s944 = sand.u32 %s359, 1
        %s945 = smul.addr %s944, 4
        %s946 = scalar_lea.vmem [#allocation6], %s945
        %s947 = sand.u32 %s387, 1
        %s948 = scalar_lea.sflag [#allocation8], %s947
        %s949 = sand.u32 %s387, 1
        %s950 = smul.addr %s949, 4
        %s951 = scalar_lea.vmem [#allocation7], %s950
        %p952 = scmp.lt.s32.totalorder %s39, 1
        %s953 = scalar_select %p952, %s39, 1
        %p954 = scmp.lt.s32.totalorder %s40, 0
        %s955 = scalar_select %p954, %s40, 0
        %s956 = sadd.s32 %s955, %s953
        %s957 = smul.addr %s956, 8
        %s958 = scalar_lea.vmem %s14, %s957
        // Predicated region
        $region61: #{forward.7} parent=59 // pred_check
          %p959 = pneg %p313
        $region62: #{forward.7} parent=59 // pred_check_branch
          %961 = sbr.rel (%p959) target = $region64
        $region63: #{forward.7} parent=59 // pred_region
          %s963 = ssub.s32 64, 64
          %964 = vsyncadd %s933, %s963
          %s965 = sadd.s32 %s40, %s39
          %s966 = smul.addr %s965, 64
          %s967 = scalar_lea.hbm %s10, %s966
          %s969 = sshll.u32 %s936, 4
          %s970 = int_to_ptr.vmem [resolvable:$true] %s969
          %972 = dma.vmem_to_hbm [thread:$0]  %s970, 64, %s967, %s933
        $region64: #{forward.7} parent=59 // pred_fallthru
          _
        // Predicated region
        $region65: #{forward.7} parent=59 // pred_check
          %p973 = pneg %p341
        $region66: #{forward.7} parent=59 // pred_check_branch
          %975 = sbr.rel (%p973) target = $region68
        $region67: #{forward.7} parent=59 // pred_region
          %s977 = ssub.s32 64, 64
          %978 = vsyncadd %s938, %s977
          %s979 = sadd.s32 %s40, %s39
          %s980 = smul.addr %s979, 64
          %s981 = scalar_lea.hbm %s11, %s980
          %s983 = sshll.u32 %s941, 4
          %s984 = int_to_ptr.vmem [resolvable:$true] %s983
          %986 = dma.vmem_to_hbm [thread:$0]  %s984, 64, %s981, %s938
        $region68: #{forward.7} parent=59 // pred_fallthru
          _
        // Predicated region
        $region69: #{forward.7} parent=59 // pred_check
          %p987 = pneg %p369
        $region70: #{forward.7} parent=59 // pred_check_branch
          %989 = sbr.rel (%p987) target = $region72
        $region71: #{forward.7} parent=59 // pred_region
          %s991 = ssub.s32 64, 64
          %992 = vsyncadd %s943, %s991
          %s993 = sadd.s32 %s40, %s39
          %s994 = smul.addr %s993, 64
          %s995 = scalar_lea.hbm %s12, %s994
          %s997 = sshll.u32 %s946, 4
          %s998 = int_to_ptr.vmem [resolvable:$true] %s997
          %1000 = dma.vmem_to_hbm [thread:$0]  %s998, 64, %s995, %s943
        $region72: #{forward.7} parent=59 // pred_fallthru
          _
        // Predicated region
        $region73: #{forward.7} parent=59 // pred_check
          %p1001 = pneg %p397
        $region74: #{forward.7} parent=59 // pred_check_branch
          %1003 = sbr.rel (%p1001) target = $region76
        $region75: #{forward.7} parent=59 // pred_region
          %s1005 = ssub.s32 64, 64
          %1006 = vsyncadd %s948, %s1005
          %s1007 = sadd.s32 %s40, %s39
          %s1008 = smul.addr %s1007, 64
          %s1009 = scalar_lea.hbm %s13, %s1008
          %s1011 = sshll.u32 %s951, 4
          %s1012 = int_to_ptr.vmem [resolvable:$true] %s1011
          %1014 = dma.vmem_to_hbm [thread:$0]  %s1012, 64, %s1009, %s948
        $region76: #{forward.7} parent=59 // pred_fallthru
          _
        // Predicated region
        $region77: #{forward.7} parent=59 // pred_check
          %p1015 = pneg %p425
        $region78: #{forward.7} parent=59 // pred_check_branch
          %1017 = sbr.rel (%p1015) target = $region80
        $region79: #{forward.7} parent=59 // pred_region
          _
        $region80: #{forward.7} parent=59 // pred_fallthru
          _
      $region60: #{forward.7} parent=5 // pred_fallthru
        _
      %p1018 = scmp.le.s32.totalorder 2, %s30
      // Predicated region
      $region81: #{forward.7} parent=5 // pred_check
        %p1019 = pneg %p1018
      $region82: #{forward.7} parent=5 // pred_check_branch
        %1021 = sbr.rel (%p1019) target = $region84
      $region83: #{forward.7} parent=5 // pred_region
        %s1022 = ssub.s32 %s30, 2
        // Predicated region
        $region85: #{forward.7} parent=83 // pred_check
          %p1023 = pneg %p319
        $region86: #{forward.7} parent=83 // pred_check_branch
          %1025 = sbr.rel (%p1023) target = $region88
        $region87: #{forward.7} parent=83 // pred_region
          %s1026 = sand.u32 %s304, 1
          %s1027 = scalar_lea.sflag [#allocation3], %s1026
          %s1028 = sand.u32 %s304, 1
          %s1029 = smul.addr %s1028, 4
          %s1030 = scalar_lea.vmem [#allocation2], %s1029
          %1031 = dma.done %s1027, 64
        $region88: #{forward.7} parent=83 // pred_fallthru
          _
        // Predicated region
        $region89: #{forward.7} parent=83 // pred_check
          %p1032 = pneg %p347
        $region90: #{forward.7} parent=83 // pred_check_branch
          %1034 = sbr.rel (%p1032) target = $region92
        $region91: #{forward.7} parent=83 // pred_region
          %s1035 = sand.u32 %s36, 1
          %s1036 = scalar_lea.sflag [#allocation5], %s1035
          %s1037 = sand.u32 %s332, 1
          %s1038 = smul.addr %s1037, 4
          %s1039 = scalar_lea.vmem [#allocation4], %s1038
          %1040 = dma.done %s1036, 64
        $region92: #{forward.7} parent=83 // pred_fallthru
          _
        // Predicated region
        $region93: #{forward.7} parent=83 // pred_check
          %p1041 = pneg %p375
        $region94: #{forward.7} parent=83 // pred_check_branch
          %1043 = sbr.rel (%p1041) target = $region96
        $region95: #{forward.7} parent=83 // pred_region
          %s1044 = sand.u32 %s36, 1
          %s1045 = scalar_lea.sflag [#allocation5], %s1044
          %s1046 = sand.u32 %s360, 1
          %s1047 = smul.addr %s1046, 4
          %s1048 = scalar_lea.vmem [#allocation6], %s1047
          %1049 = dma.done %s1045, 64
        $region96: #{forward.7} parent=83 // pred_fallthru
          _
        // Predicated region
        $region97: #{forward.7} parent=83 // pred_check
          %p1050 = pneg %p403
        $region98: #{forward.7} parent=83 // pred_check_branch
          %1052 = sbr.rel (%p1050) target = $region100
        $region99: #{forward.7} parent=83 // pred_region
          %s1053 = sand.u32 %s388, 1
          %s1054 = scalar_lea.sflag [#allocation8], %s1053
          %s1055 = sand.u32 %s388, 1
          %s1056 = smul.addr %s1055, 4
          %s1057 = scalar_lea.vmem [#allocation7], %s1056
          %1058 = dma.done %s1054, 64
        $region100: #{forward.7} parent=83 // pred_fallthru
          _
        // Predicated region
        $region101: #{forward.7} parent=83 // pred_check
          %p1059 = pneg %p431
        $region102: #{forward.7} parent=83 // pred_check_branch
          %1061 = sbr.rel (%p1059) target = $region104
        $region103: #{forward.7} parent=83 // pred_region
          %p1062 = scmp.lt.s32.totalorder %s41, 1
          %s1063 = scalar_select %p1062, %s41, 1
          %p1064 = scmp.lt.s32.totalorder %s42, 0
          %s1065 = scalar_select %p1064, %s42, 0
          %s1066 = sadd.s32 %s1065, %s1063
          %s1067 = smul.addr %s1066, 8
          %s1068 = scalar_lea.vmem %s14, %s1067
        $region104: #{forward.7} parent=83 // pred_fallthru
          _
      $region84: #{forward.7} parent=5 // pred_fallthru
        _
    $region6: #{forward.7} parent=1 // loop_footer
      %s34 = sadd.s32 1, %s30
    $region7: #{forward.7} parent=1 // loop_footer_branch
      %29 = sbr.rel target = $region3
    $region8: #{forward.7} parent=1 // loop_exit
      _
    %1069 = vsyncpa [#allocation3], 1
    %s1070 = scalar_lea.sflag [#allocation3], 1
    %1071 = vsyncpa %s1070, 1
    %1072 = vsyncpa [#allocation5], 1
    %s1073 = scalar_lea.sflag [#allocation5], 1
    %1074 = vsyncpa %s1073, 1
    %1075 = vsyncpa [#allocation8], 1
    %s1076 = scalar_lea.sflag [#allocation8], 1
    %1077 = vsyncpa %s1076, 1

// kernel: forward.6
$region0: #{forward.6}
  #allocation0 [shape = 'u32[]', space=smem, size = 0x4, offset = 0x4, fixed_abs, tag = 'smem constant byte address 0x4 - core index']
  #allocation1 [shape = 'u32[144,128]{1,0:T(1,128)}', space=vmem, size = 0x12000, scoped, tag = 'internal scratch']
  %s0 = inlined_call_operand.vmem [shape: bf16[2,8,40], index: 0, kind: input, shape index: {}]
  %s1 = inlined_call_operand.vmem [shape: bf16[2,8,64], index: 1, kind: input, shape index: {}]
  %s2 = inlined_call_operand.vmem [shape: f32[2,8,32], index: 2, kind: input, shape index: {}]
  %s3 = inlined_call_operand.vmem [shape: bf16[104,128], index: 3, kind: input, shape index: {}]
  %s4 = inlined_call_operand.vmem [shape: bf16[136,32], index: 4, kind: input, shape index: {}]
  %s5 = inlined_call_operand.vmem [shape: f32[2,8,32], index: 5, kind: output, shape index: {}]
  %s6 = sld [smem:[#allocation0]]
  $region53: #{forward.6} parent=0
    _
  %s8 = ssub.s32 1, %s6
  %s9 = scalar_select 0, %s8, %s6
  loop: start=0, step=1, limit=4
  $region2: #{forward.6} parent=0 // loop_pre_header
    _
  $region3: #{forward.6} parent=0 // loop_header
    %s11 = sphi 0, %s15
    %p12 = scmp.ge.s32.totalorder %s11, 4
    %s18 = sphi 0, %s30
    %s19 = sphi 0, %s26
    %s20 = sphi 0, %s18
    %s21 = sphi 0, %s19
    %s22 = sphi 0, %s20
    %s23 = sphi 0, %s21
    %s35 = sphi 0, %s37
    %s38 = sphi 0, %s35
    %s39 = sphi 0, %s38
    %s55 = sphi 0, %s39
    %s63 = sphi 0, %s65
    %s66 = sphi 0, %s63
    %s67 = sphi 0, %s66
    %s83 = sphi 0, %s67
    %s91 = sphi 0, %s93
    %s94 = sphi 0, %s91
    %s95 = sphi 0, %s94
    %s111 = sphi 0, %s95
    %s115 = sphi 0, %s115
    %s117 = sphi 0, %s115
    %s118 = sphi 0, %s117
    %s132 = sphi 0, %s118
    %s136 = sphi 0, %s136
    %s138 = sphi 0, %s136
    %s139 = sphi 0, %s138
    %s153 = sphi 0, %s139
    %s161 = sphi 0, %s163
    %s164 = sphi 0, %s161
    %s165 = sphi 0, %s164
    %s181 = sphi 0, %s165
  $region4: #{forward.6} parent=0 // loop_header_branch
    %14 = sbr.rel (%p12) target = $region8
  $region5: #{forward.6} parent=0 // loop_body
    %s16 = ssub.s32 %s11, 1
    %s17 = ssub.s32 %s11, 2
    %s24 = sadd.s32 1, %s19
    %p25 = scmp.ge.s32.totalorder %s24, 1
    %s26 = scalar_select %p25, 0, %s24
    %s27 = sadd.s32 1, %s18
    %s28 = scalar_select %p25, %s27, %s18
    %p29 = scmp.ge.s32.totalorder %s28, 2
    %s30 = scalar_select %p29, 0, %s28
    %s31 = ssub.s32 %s18, %s30
    %s32 = ssub.s32 %s19, %s26
    %s33 = sor.u32 %s31, %s32
    %p34 = scmp.eq.s32.totalorder %s33, 0
    %s36 = sadd.s32 %s35, 1
    %s37 = scalar_select %p34, %s35, %s36
    %p40 = pneg %p34
    %p41 = scmp.eq.s32.totalorder %s11, 1
    %p42 = por %p40, %p41
    %p43 = scmp.ne.s32.totalorder %s35, %s38
    %p44 = scmp.eq.s32.totalorder %s11, 0
    %p45 = por %p43, %p44
    %p46 = scmp.ne.s32.totalorder %s35, %s38
    %p47 = scmp.eq.s32.totalorder %s16, 1
    %p48 = por %p46, %p47
    %p49 = scmp.ne.s32.totalorder %s38, %s39
    %p50 = scmp.eq.s32.totalorder %s16, 0
    %p51 = por %p49, %p50
    %p52 = scmp.ne.s32.totalorder %s38, %s39
    %p53 = scmp.eq.s32.totalorder %s17, 1
    %p54 = por %p52, %p53
    %p56 = scmp.ne.s32.totalorder %s39, %s55
    %p57 = scmp.eq.s32.totalorder %s17, 0
    %p58 = por %p56, %p57
    %s59 = ssub.s32 %s18, %s30
    %s60 = ssub.s32 %s19, %s26
    %s61 = sor.u32 %s59, %s60
    %p62 = scmp.eq.s32.totalorder %s61, 0
    %s64 = sadd.s32 %s63, 1
    %s65 = scalar_select %p62, %s63, %s64
    %p68 = pneg %p62
    %p69 = scmp.eq.s32.totalorder %s11, 1
    %p70 = por %p68, %p69
    %p71 = scmp.ne.s32.totalorder %s63, %s66
    %p72 = scmp.eq.s32.totalorder %s11, 0
    %p73 = por %p71, %p72
    %p74 = scmp.ne.s32.totalorder %s63, %s66
    %p75 = scmp.eq.s32.totalorder %s16, 1
    %p76 = por %p74, %p75
    %p77 = scmp.ne.s32.totalorder %s66, %s67
    %p78 = scmp.eq.s32.totalorder %s16, 0
    %p79 = por %p77, %p78
    %p80 = scmp.ne.s32.totalorder %s66, %s67
    %p81 = scmp.eq.s32.totalorder %s17, 1
    %p82 = por %p80, %p81
    %p84 = scmp.ne.s32.totalorder %s67, %s83
    %p85 = scmp.eq.s32.totalorder %s17, 0
    %p86 = por %p84, %p85
    %s87 = ssub.s32 %s18, %s30
    %s88 = ssub.s32 %s19, %s26
    %s89 = sor.u32 %s87, %s88
    %p90 = scmp.eq.s32.totalorder %s89, 0
    %s92 = sadd.s32 %s91, 1
    %s93 = scalar_select %p90, %s91, %s92
    %p96 = pneg %p90
    %p97 = scmp.eq.s32.totalorder %s11, 1
    %p98 = por %p96, %p97
    %p99 = scmp.ne.s32.totalorder %s91, %s94
    %p100 = scmp.eq.s32.totalorder %s11, 0
    %p101 = por %p99, %p100
    %p102 = scmp.ne.s32.totalorder %s91, %s94
    %p103 = scmp.eq.s32.totalorder %s16, 1
    %p104 = por %p102, %p103
    %p105 = scmp.ne.s32.totalorder %s94, %s95
    %p106 = scmp.eq.s32.totalorder %s16, 0
    %p107 = por %p105, %p106
    %p108 = scmp.ne.s32.totalorder %s94, %s95
    %p109 = scmp.eq.s32.totalorder %s17, 1
    %p110 = por %p108, %p109
    %p112 = scmp.ne.s32.totalorder %s95, %s111
    %p113 = scmp.eq.s32.totalorder %s17, 0
    %p114 = por %p112, %p113
    %s116 = sadd.s32 %s115, 1
    %p119 = scmp.eq.s32.totalorder %s11, 1
    %p120 = scmp.ne.s32.totalorder %s115, %s117
    %p121 = scmp.eq.s32.totalorder %s11, 0
    %p122 = por %p120, %p121
    %p123 = scmp.ne.s32.totalorder %s115, %s117
    %p124 = scmp.eq.s32.totalorder %s16, 1
    %p125 = por %p123, %p124
    %p126 = scmp.ne.s32.totalorder %s117, %s118
    %p127 = scmp.eq.s32.totalorder %s16, 0
    %p128 = por %p126, %p127
    %p129 = scmp.ne.s32.totalorder %s117, %s118
    %p130 = scmp.eq.s32.totalorder %s17, 1
    %p131 = por %p129, %p130
    %p133 = scmp.ne.s32.totalorder %s118, %s132
    %p134 = scmp.eq.s32.totalorder %s17, 0
    %p135 = por %p133, %p134
    %s137 = sadd.s32 %s136, 1
    %p140 = scmp.eq.s32.totalorder %s11, 1
    %p141 = scmp.ne.s32.totalorder %s136, %s138
    %p142 = scmp.eq.s32.totalorder %s11, 0
    %p143 = por %p141, %p142
    %p144 = scmp.ne.s32.totalorder %s136, %s138
    %p145 = scmp.eq.s32.totalorder %s16, 1
    %p146 = por %p144, %p145
    %p147 = scmp.ne.s32.totalorder %s138, %s139
    %p148 = scmp.eq.s32.totalorder %s16, 0
    %p149 = por %p147, %p148
    %p150 = scmp.ne.s32.totalorder %s138, %s139
    %p151 = scmp.eq.s32.totalorder %s17, 1
    %p152 = por %p150, %p151
    %p154 = scmp.ne.s32.totalorder %s139, %s153
    %p155 = scmp.eq.s32.totalorder %s17, 0
    %p156 = por %p154, %p155
    %s157 = ssub.s32 %s18, %s30
    %s158 = ssub.s32 %s19, %s26
    %s159 = sor.u32 %s157, %s158
    %p160 = scmp.eq.s32.totalorder %s159, 0
    %s162 = sadd.s32 %s161, 1
    %s163 = scalar_select %p160, %s161, %s162
    %p166 = pneg %p160
    %p167 = scmp.eq.s32.totalorder %s11, 1
    %p168 = por %p166, %p167
    %p169 = scmp.ne.s32.totalorder %s161, %s164
    %p170 = scmp.eq.s32.totalorder %s11, 0
    %p171 = por %p169, %p170
    %p172 = scmp.ne.s32.totalorder %s161, %s164
    %p173 = scmp.eq.s32.totalorder %s16, 1
    %p174 = por %p172, %p173
    %p175 = scmp.ne.s32.totalorder %s164, %s165
    %p176 = scmp.eq.s32.totalorder %s16, 0
    %p177 = por %p175, %p176
    %p178 = scmp.ne.s32.totalorder %s164, %s165
    %p179 = scmp.eq.s32.totalorder %s17, 1
    %p180 = por %p178, %p179
    %p182 = scmp.ne.s32.totalorder %s165, %s181
    %p183 = scmp.eq.s32.totalorder %s17, 0
    %p184 = por %p182, %p183
    %p185 = scmp.le.s32.totalorder 1, %s11
    %p186 = scmp.lt.s32.totalorder %s11, 3
    %p187 = pnand %p185, %p186
    %p188 = pneg %p187
    // Predicated region
    $region9: #{forward.6} parent=5 // pred_check
      _
    $region10: #{forward.6} parent=5 // pred_check_branch
      %190 = sbr.rel (%p187) target = $region12
    $region11: #{forward.6} parent=5 // pred_region
      %s191 = ssub.s32 %s11, 1
      // Predicated region
      $region13: #{forward.6} parent=11 // pred_check
        %p192 = pneg %p128
      $region14: #{forward.6} parent=11 // pred_check_branch
        %194 = sbr.rel (%p192) target = $region16
      $region15: #{forward.6} parent=11 // pred_region
        _
      $region16: #{forward.6} parent=11 // pred_fallthru
        _
      // Predicated region
      $region17: #{forward.6} parent=11 // pred_check
        %p195 = pneg %p149
      $region18: #{forward.6} parent=11 // pred_check_branch
        %197 = sbr.rel (%p195) target = $region20
      $region19: #{forward.6} parent=11 // pred_region
        _
      $region20: #{forward.6} parent=11 // pred_fallthru
        _
    $region12: #{forward.6} parent=5 // pred_fallthru
      _
    %p198 = scmp.lt.s32.totalorder %s11, 2
    // Predicated region
    $region21: #{forward.6} parent=5 // pred_check
      %p199 = pneg %p198
    $region22: #{forward.6} parent=5 // pred_check_branch
      %201 = sbr.rel (%p199) target = $region24
    $region23: #{forward.6} parent=5 // pred_region
      // Predicated region
      $region25: #{forward.6} parent=23 // pred_check
        %p202 = pneg %p45
      $region26: #{forward.6} parent=23 // pred_check_branch
        %204 = sbr.rel (%p202) target = $region28
      $region27: #{forward.6} parent=23 // pred_region
        %p205 = scmp.lt.s32.totalorder %s18, 1
        %s206 = scalar_select %p205, %s18, 1
        %p207 = scmp.lt.s32.totalorder %s19, 0
        %s208 = scalar_select %p207, %s19, 0
        %s209 = sadd.s32 %s208, %s206
        %s210 = smul.addr %s209, 4
        %s211 = scalar_lea.vmem %s0, %s210
      $region28: #{forward.6} parent=23 // pred_fallthru
        _
      // Predicated region
      $region29: #{forward.6} parent=23 // pred_check
        %p212 = pneg %p73
      $region30: #{forward.6} parent=23 // pred_check_branch
        %214 = sbr.rel (%p212) target = $region32
      $region31: #{forward.6} parent=23 // pred_region
        %p215 = scmp.lt.s32.totalorder %s18, 1
        %s216 = scalar_select %p215, %s18, 1
        %p217 = scmp.lt.s32.totalorder %s19, 0
        %s218 = scalar_select %p217, %s19, 0
        %s219 = sadd.s32 %s218, %s216
        %s220 = smul.addr %s219, 4
        %s221 = scalar_lea.vmem %s1, %s220
      $region32: #{forward.6} parent=23 // pred_fallthru
        _
      // Predicated region
      $region33: #{forward.6} parent=23 // pred_check
        %p222 = pneg %p101
      $region34: #{forward.6} parent=23 // pred_check_branch
        %224 = sbr.rel (%p222) target = $region36
      $region35: #{forward.6} parent=23 // pred_region
        %p225 = scmp.lt.s32.totalorder %s18, 1
        %s226 = scalar_select %p225, %s18, 1
        %p227 = scmp.lt.s32.totalorder %s19, 0
        %s228 = scalar_select %p227, %s19, 0
        %s229 = sadd.s32 %s228, %s226
        %s230 = smul.addr %s229, 8
        %s231 = scalar_lea.vmem %s2, %s230
      $region36: #{forward.6} parent=23 // pred_fallthru
        _
    $region24: #{forward.6} parent=5 // pred_fallthru
      _
    %p232 = scmp.le.s32.totalorder 1, %s11
    %p233 = scmp.lt.s32.totalorder %s11, 3
    %p234 = pnand %p232, %p233
    %p235 = pneg %p234
    // Predicated region
    $region37: #{forward.6} parent=5 // pred_check
      _
    $region38: #{forward.6} parent=5 // pred_check_branch
      %237 = sbr.rel (%p234) target = $region40
    $region39: #{forward.6} parent=5 // pred_region
      %s238 = ssub.s32 %s11, 1
      %p239 = scmp.lt.s32.totalorder %s20, 1
      %s240 = scalar_select %p239, %s20, 1
      %p241 = scmp.lt.s32.totalorder %s21, 0
      %s242 = scalar_select %p241, %s21, 0
      %s243 = sadd.s32 %s242, %s240
      %s244 = smul.addr %s243, 4
      %s245 = scalar_lea.vmem %s0, %s244
      %p246 = pneg %p51
      %p247 = pneg %p48
      %p248 = scmp.lt.s32.totalorder %s20, 1
      %s249 = scalar_select %p248, %s20, 1
      %p250 = scmp.lt.s32.totalorder %s21, 0
      %s251 = scalar_select %p250, %s21, 0
      %s252 = sadd.s32 %s251, %s249
      %s253 = smul.addr %s252, 4
      %s254 = scalar_lea.vmem %s1, %s253
      %p255 = pneg %p79
      %p256 = pneg %p76
      %p257 = scmp.lt.s32.totalorder %s20, 1
      %s258 = scalar_select %p257, %s20, 1
      %p259 = scmp.lt.s32.totalorder %s21, 0
      %s260 = scalar_select %p259, %s21, 0
      %s261 = sadd.s32 %s260, %s258
      %s262 = smul.addr %s261, 8
      %s263 = scalar_lea.vmem %s2, %s262
      %p264 = pneg %p107
      %p265 = pneg %p104
      %p266 = pneg %p128
      %p267 = pneg %p125
      %p268 = pneg %p149
      %p269 = pneg %p146
      %p270 = pneg %p177
      %p271 = pneg %p174
      %p272 = scmp.lt.s32.totalorder %s20, 1
      %s273 = scalar_select %p272, %s20, 1
      %p274 = scmp.lt.s32.totalorder %s21, 0
      %s275 = scalar_select %p274, %s21, 0
      %s276 = sadd.s32 %s275, %s273
      %s277 = smul.addr %s276, 8
      %s278 = scalar_lea.vmem %s5, %s277
      %p279 = scmp.lt.s32.totalorder %s20, 1
      %s280 = scalar_select %p279, %s20, 1
      %p281 = scmp.lt.s32.totalorder %s21, 0
      %s282 = scalar_select %p281, %s21, 0
      %s283 = sadd.s32 %s282, %s280
      %s284 = smul.addr %s283, 4
      %s285 = scalar_lea.vmem %s0, %s284
      %p286 = scmp.lt.s32.totalorder %s20, 1
      %s287 = scalar_select %p286, %s20, 1
      %p288 = scmp.lt.s32.totalorder %s21, 0
      %s289 = scalar_select %p288, %s21, 0
      %s290 = sadd.s32 %s289, %s287
      %s291 = smul.addr %s290, 4
      %s292 = scalar_lea.vmem %s1, %s291
      %p293 = scmp.lt.s32.totalorder %s20, 1
      %s294 = scalar_select %p293, %s20, 1
      %p295 = scmp.lt.s32.totalorder %s21, 0
      %s296 = scalar_select %p295, %s21, 0
      %s297 = sadd.s32 %s296, %s294
      %s298 = smul.addr %s297, 8
      %s299 = scalar_lea.vmem %s2, %s298
      %p300 = scmp.lt.s32.totalorder %s20, 1
      %s301 = scalar_select %p300, %s20, 1
      %p302 = scmp.lt.s32.totalorder %s21, 0
      %s303 = scalar_select %p302, %s21, 0
      %s304 = sadd.s32 %s303, %s301
      %s305 = smul.addr %s304, 8
      %s306 = scalar_lea.vmem %s5, %s305
      %v308 = vld [vmem:[%s285] sm:$0xf]
      %v309 = vld [vmem:[%s292] sm:$0xf]
      %v311 = vunpack.c.l.b16 %v309
      %v312 = vpack.c.b16 %v311, %v311
      %313 = vrot.lane.b32.xlu0 %v312, 40
      %v314 = vpop.permute.xlu0 %313
      %vm315 = vcmask 326656
      %v318 = vsel %vm315, %v308, %v314
      %v319 = vld [vmem:[%s3] sm:$0xf]
      %v320 = vld [vmem:[%s3 + $0x4] sm:$0xf]
      %v321 = vld [vmem:[%s3 + $0x8] sm:$0xf]
      %v322 = vld [vmem:[%s3 + $0xc] sm:$0xf]
      %v323 = vld [vmem:[%s3 + $0x10] sm:$0xf]
      %v324 = vld [vmem:[%s3 + $0x14] sm:$0xf]
      %v325 = vld [vmem:[%s3 + $0x18] sm:$0xf]
      %v326 = vld [vmem:[%s3 + $0x1c] sm:$0xf]
      %v327 = vld [vmem:[%s3 + $0x20] sm:$0xf]
      %v328 = vld [vmem:[%s3 + $0x24] sm:$0xf]
      %v329 = vld [vmem:[%s3 + $0x28] sm:$0xf]
      %v330 = vld [vmem:[%s3 + $0x2c] sm:$0xf]
      %v331 = vld [vmem:[%s3 + $0x30] sm:$0xf]
      %v345 = vunpack.c.l.b16 %v319
      %v346 = vunpack.c.l.b16 %v320
      %v347 = vunpack.c.l.b16 %v321
      %v348 = vunpack.c.l.b16 %v322
      %v349 = vunpack.c.l.b16 %v323
      %v350 = vunpack.c.l.b16 %v324
      %v351 = vunpack.c.l.b16 %v325
      %v352 = vunpack.c.l.b16 %v326
      %v353 = vunpack.c.l.b16 %v327
      %v354 = vunpack.c.l.b16 %v328
      %v355 = vunpack.c.l.b16 %v329
      %v356 = vunpack.c.l.b16 %v330
      %v357 = vunpack.c.l.b16 %v331
      %v358 = vpack.c.b16 %v346, %v345
      %v359 = vpack.c.b16 %v348, %v347
      %v360 = vpack.c.b16 %v350, %v349
      %v361 = vpack.c.b16 %v352, %v351
      %v362 = vpack.c.b16 %v354, %v353
      %v363 = vpack.c.b16 %v356, %v355
      %v364 = vpack.c.b16 %v357, %v357
      %vm371 = vcmask 850944
      %v372 = vsel %vm371, %v318, 0
      %vm374 = vcmask 1043456
      %v376 = vsel %vm374, %v364, 0
      %378 = vmatprep.subr.bf16.mxu0 0
      %379 = vmatpush1.bf16.msra.mxu0 %v358
      %380 = vmatprep.subr.bf16.mxu0 0
      %381 = vmatpush1.bf16.msra.mxu0 %v359
      %382 = vmatprep.subr.bf16.mxu0 0
      %383 = vmatpush1.bf16.msra.mxu0 %v360
      %384 = vmatprep.subr.bf16.mxu0 0
      %385 = vmatpush1.bf16.msra.mxu0 %v361
      %386 = vmatprep.subr.bf16.mxu0 0
      %387 = vmatpush1.bf16.msra.mxu0 %v362
      %388 = vmatprep.subr.bf16.mxu0 0
      %389 = vmatpush1.bf16.msra.mxu0 %v363
      %390 = vmatprep.subr.bf16.mxu0 0
      %391 = vmatpush1.bf16.msra.mxu0 %v376
      %392 = vmatprep.subr.bf16.mxu0 0
      %393 = vmatpush1.bf16.msra.mxu0 0
      %394 = vmatprep.subr.bf16.mxu0 0
      %395 = vmatpush1.bf16.msra.mxu0 0
      %396 = vmatprep.subr.bf16.mxu0 0
      %397 = vmatpush1.bf16.msra.mxu0 0
      %398 = vmatprep.subr.bf16.mxu0 0
      %399 = vmatpush1.bf16.msra.mxu0 0
      %400 = vmatprep.subr.bf16.mxu0 0
      %401 = vmatpush1.bf16.msra.mxu0 0
      %402 = vmatprep.subr.bf16.mxu0 0
      %403 = vmatpush1.bf16.msra.mxu0 0
      %404 = vmatprep.subr.bf16.mxu0 0
      %405 = vmatpush1.bf16.msra.mxu0 0
      %406 = vmatprep.subr.bf16.mxu0 0
      %407 = vmatpush1.bf16.msra.mxu0 0
      %408 = vmatprep.subr.bf16.mxu0 0
      %409 = vmatpush1.bf16.msra.mxu0 0
      %410 = vmatprep.mubr.bf16.mxu0 0
      %411 = vmatmul.mubr.bf16.gmra.mrb[0].mxu0 %v372
      %v412 = vpop.f32.mrb[0].mxu0
      %v413 = vadd.f32 0.0, %v412
      %v414 = vpop.f32.mrb[0].mxu0
      %v415 = vpop.f32.mrb[0].mxu0
      %v416 = vpop.f32.mrb[0].mxu0
      %417 = vdwg.mxu0
      %v418 = vxor.u32 %v413, 2147483648
      %v419 = vmul.f32 %v418, 1.442695
      %v420 = vpow.pop %v419
      %v421 = vadd.f32 %v420, 1.0
      %v422 = vrcp.pop %v421
      %v423 = vmul.f32 1.0, %v422
      %v424 = vmul.f32 %v413, %v423
      %426 = vrot.lane.b32.xlu0 %v413, 64
      %v427 = vpop.permute.xlu0 %426
      %v429 = vmul.f32 %v424, %v427
      %v430 = vpack.c.bf16 %v429, %v429
      %v432 = vunpack.c.l.b16 %v308
      %v433 = vpack.c.b16 %v432, %v432
      %434 = vrot.lane.b32.xlu0 %v433, 96
      %v435 = vpop.permute.xlu0 %434
      %436 = vrot.lane.b32.xlu0 %v312, 8
      %v437 = vpop.permute.xlu0 %436
      %439 = vrot.lane.b32.xlu0 %v430, 72
      %v440 = vpop.permute.xlu0 %439
      %vm441 = vcmask 64512
      %v444 = vsel %vm441, %v435, %v437
      %vm445 = vcmask 588800
      %v447 = vsel %vm445, %v444, %v440
      %v449 = vld [vmem:[%s4] sm:$0xf]
      %v450 = vld [vmem:[%s4 + $0x4] sm:$0xf]
      %v451 = vld [vmem:[%s4 + $0x8] sm:$0xf]
      %v452 = vld [vmem:[%s4 + $0xc] sm:$0xf]
      %v453 = vld [vmem:[%s4 + $0x10] sm:$0xf]
      %v454 = vld [vmem:[%s4 + $0x14] sm:$0xf]
      %v455 = vld [vmem:[%s4 + $0x18] sm:$0xf]
      %v456 = vld [vmem:[%s4 + $0x1c] sm:$0xf]
      %v457 = vld [vmem:[%s4 + $0x20] sm:$0xf]
      %v458 = vld [vmem:[%s4 + $0x24] sm:$0xf]
      %v459 = vld [vmem:[%s4 + $0x28] sm:$0xf]
      %v460 = vld [vmem:[%s4 + $0x2c] sm:$0xf]
      %v461 = vld [vmem:[%s4 + $0x30] sm:$0xf]
      %v462 = vld [vmem:[%s4 + $0x34] sm:$0xf]
      %v463 = vld [vmem:[%s4 + $0x38] sm:$0xf]
      %v464 = vld [vmem:[%s4 + $0x3c] sm:$0xf]
      %v465 = vld [vmem:[%s4 + $0x40] sm:$0xf]
      %v483 = vunpack.c.l.b16 %v449
      %v484 = vunpack.c.l.b16 %v450
      %v485 = vunpack.c.l.b16 %v451
      %v486 = vunpack.c.l.b16 %v452
      %v487 = vunpack.c.l.b16 %v453
      %v488 = vunpack.c.l.b16 %v454
      %v489 = vunpack.c.l.b16 %v455
      %v490 = vunpack.c.l.b16 %v456
      %v491 = vunpack.c.l.b16 %v457
      %v492 = vunpack.c.l.b16 %v458
      %v493 = vunpack.c.l.b16 %v459
      %v494 = vunpack.c.l.b16 %v460
      %v495 = vunpack.c.l.b16 %v461
      %v496 = vunpack.c.l.b16 %v462
      %v497 = vunpack.c.l.b16 %v463
      %v498 = vunpack.c.l.b16 %v464
      %v499 = vunpack.c.l.b16 %v465
      %v500 = vpack.c.b16 %v484, %v483
      %v501 = vpack.c.b16 %v486, %v485
      %v502 = vpack.c.b16 %v488, %v487
      %v503 = vpack.c.b16 %v490, %v489
      %v504 = vpack.c.b16 %v492, %v491
      %v505 = vpack.c.b16 %v494, %v493
      %v506 = vpack.c.b16 %v496, %v495
      %v507 = vpack.c.b16 %v498, %v497
      %v508 = vpack.c.b16 %v499, %v499
      %v517 = vsel %vm441, %v440, 0
      %v520 = vsel %vm374, %v508, 0
      %522 = vmatprep.subr.bf16.mxu0 0
      %523 = vmatpush1.bf16.msra.mxu0 %v500
      %524 = vmatprep.subr.bf16.mxu0 0
      %525 = vmatpush1.bf16.msra.mxu0 %v501
      %526 = vmatprep.subr.bf16.mxu0 0
      %527 = vmatpush1.bf16.msra.mxu0 %v502
      %528 = vmatprep.subr.bf16.mxu0 0
      %529 = vmatpush1.bf16.msra.mxu0 %v503
      %530 = vmatprep.subr.bf16.mxu0 0
      %531 = vmatpush1.bf16.msra.mxu0 %v504
      %532 = vmatprep.subr.bf16.mxu0 0
      %533 = vmatpush1.bf16.msra.mxu0 %v505
      %534 = vmatprep.subr.bf16.mxu0 0
      %535 = vmatpush1.bf16.msra.mxu0 %v506
      %536 = vmatprep.subr.bf16.mxu0 0
      %537 = vmatpush1.bf16.msra.mxu0 %v507
      %538 = vmatprep.subr.bf16.mxu0 0
      %539 = vmatpush1.bf16.msra.mxu0 %v520
      %540 = vmatprep.subr.bf16.mxu0 0
      %541 = vmatpush1.bf16.msra.mxu0 0
      %542 = vmatprep.subr.bf16.mxu0 0
      %543 = vmatpush1.bf16.msra.mxu0 0
      %544 = vmatprep.subr.bf16.mxu0 0
      %545 = vmatpush1.bf16.msra.mxu0 0
      %546 = vmatprep.subr.bf16.mxu0 0
      %547 = vmatpush1.bf16.msra.mxu0 0
      %548 = vmatprep.subr.bf16.mxu0 0
      %549 = vmatpush1.bf16.msra.mxu0 0
      %550 = vmatprep.subr.bf16.mxu0 0
      %551 = vmatpush1.bf16.msra.mxu0 0
      %552 = vmatprep.subr.bf16.mxu0 0
      %553 = vmatpush1.bf16.msra.mxu0 0
      %554 = vmatprep.mubr.bf16.mxu0 %v517
      %555 = vmatmul.mubr.bf16.gmra.mrb[0].mxu0 %v447
      %v556 = vpop.f32.mrb[0].mxu0
      %v557 = vadd.f32 0.0, %v556
      %v558 = vpop.f32.mrb[0].mxu0
      %v559 = vpop.f32.mrb[0].mxu0
      %v560 = vpop.f32.mrb[0].mxu0
      %561 = vdwg.mxu0
      %v562 = vld [vmem:[%s299] sm:$0xff]
      %v563 = vadd.f32 %v562, %v557
      %vm564 = vcmask 261120
      %565 = vst.msk [vmem:[%s306] sm:$0xff] %vm564, %v563
      %p566 = scmp.lt.s32.totalorder %s20, 1
      %s567 = scalar_select %p566, %s20, 1
      %p568 = scmp.lt.s32.totalorder %s21, 0
      %s569 = scalar_select %p568, %s21, 0
      %s570 = sadd.s32 %s569, %s567
      %s571 = smul.addr %s570, 8
      %s572 = scalar_lea.vmem %s5, %s571
      // Predicated region
      $region41: #{forward.6} parent=39 // pred_check
        %p573 = pneg %p174
      $region42: #{forward.6} parent=39 // pred_check_branch
        %575 = sbr.rel (%p573) target = $region44
      $region43: #{forward.6} parent=39 // pred_region
        _
      $region44: #{forward.6} parent=39 // pred_fallthru
        _
    $region40: #{forward.6} parent=5 // pred_fallthru
      _
    %p576 = scmp.le.s32.totalorder 2, %s11
    // Predicated region
    $region45: #{forward.6} parent=5 // pred_check
      %p577 = pneg %p576
    $region46: #{forward.6} parent=5 // pred_check_branch
      %579 = sbr.rel (%p577) target = $region48
    $region47: #{forward.6} parent=5 // pred_region
      %s580 = ssub.s32 %s11, 2
      // Predicated region
      $region49: #{forward.6} parent=47 // pred_check
        %p581 = pneg %p180
      $region50: #{forward.6} parent=47 // pred_check_branch
        %583 = sbr.rel (%p581) target = $region52
      $region51: #{forward.6} parent=47 // pred_region
        %p584 = scmp.lt.s32.totalorder %s22, 1
        %s585 = scalar_select %p584, %s22, 1
        %p586 = scmp.lt.s32.totalorder %s23, 0
        %s587 = scalar_select %p586, %s23, 0
        %s588 = sadd.s32 %s587, %s585
        %s589 = smul.addr %s588, 8
        %s590 = scalar_lea.vmem %s5, %s589
      $region52: #{forward.6} parent=47 // pred_fallthru
        _
    $region48: #{forward.6} parent=5 // pred_fallthru
      _
  $region6: #{forward.6} parent=0 // loop_footer
    %s15 = sadd.s32 1, %s11
  $region7: #{forward.6} parent=0 // loop_footer_branch
    %10 = sbr.rel target = $region3
  $region8: #{forward.6} parent=0 // loop_exit
    _

// kernel: forward.5
$region0: #{forward.5}
  #allocation0 [shape = 'u32[]', space=smem, size = 0x4, offset = 0x4, fixed_abs, tag = 'smem constant byte address 0x4 - core index']
  #allocation1 [shape = 'u32[144,128]{1,0:T(1,128)}', space=vmem, size = 0x12000, scoped, tag = 'internal scratch']
  #allocation2 [shape = 'f32[4,8,1]{2,1,0:T(8,128)}', space=vmem, size = 0x4000, scoped, tag = 'scratch operand']
  #allocation3 [shape = 'f32[4,8,1]{2,1,0:T(8,128)}', space=vmem, size = 0x4000, scoped, tag = 'scratch operand']
  #allocation4 [shape = 'f32[4,8,16]{2,1,0:T(8,128)}', space=vmem, size = 0x4000, scoped, tag = 'scratch operand']
  %s0 = inlined_call_operand.vmem [shape: bf16[2,8,64], index: 0, kind: input, shape index: {}]
  %s1 = inlined_call_operand.vmem [shape: bf16[2,8,64], index: 1, kind: input, shape index: {}]
  %s2 = inlined_call_operand.vmem [shape: bf16[2,8,64], index: 2, kind: input, shape index: {}]
  %s3 = inlined_call_operand.vmem [shape: bf16[4,4,16], index: 3, kind: input, shape index: {}]
  %s4 = inlined_call_operand.vmem [shape: bf16[4,4,16], index: 4, kind: input, shape index: {}]
  %s5 = inlined_call_operand.vmem [shape: bf16[2,8,64], index: 5, kind: output, shape index: {}]
  %s6 = sld [smem:[#allocation0]]
  $region61: #{forward.5} parent=0
    _
  %s8 = ssub.s32 1, %s6
  %s9 = scalar_select 0, %s8, %s6
  loop: start=0, step=1, limit=4
  $region2: #{forward.5} parent=0 // loop_pre_header
    _
  $region3: #{forward.5} parent=0 // loop_header
    %s11 = sphi 0, %s15
    %p12 = scmp.ge.s32.totalorder %s11, 4
    %s18 = sphi 0, %s37
    %s19 = sphi 0, %s33
    %s20 = sphi 0, %s29
    %s21 = sphi 0, %s18
    %s22 = sphi 0, %s19
    %s23 = sphi 0, %s20
    %s24 = sphi 0, %s21
    %s25 = sphi 0, %s22
    %s26 = sphi 0, %s23
    %s42 = sphi 0, %s44
    %s45 = sphi 0, %s42
    %s46 = sphi 0, %s45
    %s62 = sphi 0, %s46
    %s70 = sphi 0, %s72
    %s73 = sphi 0, %s70
    %s74 = sphi 0, %s73
    %s90 = sphi 0, %s74
    %s98 = sphi 0, %s100
    %s101 = sphi 0, %s98
    %s102 = sphi 0, %s101
    %s118 = sphi 0, %s102
    %s122 = sphi 0, %s122
    %s124 = sphi 0, %s122
    %s125 = sphi 0, %s124
    %s139 = sphi 0, %s125
    %s143 = sphi 0, %s143
    %s145 = sphi 0, %s143
    %s146 = sphi 0, %s145
    %s160 = sphi 0, %s146
    %s168 = sphi 0, %s170
    %s171 = sphi 0, %s168
    %s172 = sphi 0, %s171
    %s188 = sphi 0, %s172
  $region4: #{forward.5} parent=0 // loop_header_branch
    %14 = sbr.rel (%p12) target = $region8
  $region5: #{forward.5} parent=0 // loop_body
    %s16 = ssub.s32 %s11, 1
    %s17 = ssub.s32 %s11, 2
    %s27 = sadd.s32 1, %s20
    %p28 = scmp.ge.s32.totalorder %s27, 1
    %s29 = scalar_select %p28, 0, %s27
    %s30 = sadd.s32 1, %s19
    %s31 = scalar_select %p28, %s30, %s19
    %p32 = scmp.ge.s32.totalorder %s31, 1
    %s33 = scalar_select %p32, 0, %s31
    %s34 = sadd.s32 1, %s18
    %s35 = scalar_select %p32, %s34, %s18
    %p36 = scmp.ge.s32.totalorder %s35, 2
    %s37 = scalar_select %p36, 0, %s35
    %s38 = ssub.s32 %s18, %s37
    %s39 = ssub.s32 %s19, %s33
    %s40 = sor.u32 %s38, %s39
    %p41 = scmp.eq.s32.totalorder %s40, 0
    %s43 = sadd.s32 %s42, 1
    %s44 = scalar_select %p41, %s42, %s43
    %p47 = pneg %p41
    %p48 = scmp.eq.s32.totalorder %s11, 1
    %p49 = por %p47, %p48
    %p50 = scmp.ne.s32.totalorder %s42, %s45
    %p51 = scmp.eq.s32.totalorder %s11, 0
    %p52 = por %p50, %p51
    %p53 = scmp.ne.s32.totalorder %s42, %s45
    %p54 = scmp.eq.s32.totalorder %s16, 1
    %p55 = por %p53, %p54
    %p56 = scmp.ne.s32.totalorder %s45, %s46
    %p57 = scmp.eq.s32.totalorder %s16, 0
    %p58 = por %p56, %p57
    %p59 = scmp.ne.s32.totalorder %s45, %s46
    %p60 = scmp.eq.s32.totalorder %s17, 1
    %p61 = por %p59, %p60
    %p63 = scmp.ne.s32.totalorder %s46, %s62
    %p64 = scmp.eq.s32.totalorder %s17, 0
    %p65 = por %p63, %p64
    %s66 = ssub.s32 %s18, %s37
    %s67 = ssub.s32 %s20, %s29
    %s68 = sor.u32 %s66, %s67
    %p69 = scmp.eq.s32.totalorder %s68, 0
    %s71 = sadd.s32 %s70, 1
    %s72 = scalar_select %p69, %s70, %s71
    %p75 = pneg %p69
    %p76 = scmp.eq.s32.totalorder %s11, 1
    %p77 = por %p75, %p76
    %p78 = scmp.ne.s32.totalorder %s70, %s73
    %p79 = scmp.eq.s32.totalorder %s11, 0
    %p80 = por %p78, %p79
    %p81 = scmp.ne.s32.totalorder %s70, %s73
    %p82 = scmp.eq.s32.totalorder %s16, 1
    %p83 = por %p81, %p82
    %p84 = scmp.ne.s32.totalorder %s73, %s74
    %p85 = scmp.eq.s32.totalorder %s16, 0
    %p86 = por %p84, %p85
    %p87 = scmp.ne.s32.totalorder %s73, %s74
    %p88 = scmp.eq.s32.totalorder %s17, 1
    %p89 = por %p87, %p88
    %p91 = scmp.ne.s32.totalorder %s74, %s90
    %p92 = scmp.eq.s32.totalorder %s17, 0
    %p93 = por %p91, %p92
    %s94 = ssub.s32 %s18, %s37
    %s95 = ssub.s32 %s20, %s29
    %s96 = sor.u32 %s94, %s95
    %p97 = scmp.eq.s32.totalorder %s96, 0
    %s99 = sadd.s32 %s98, 1
    %s100 = scalar_select %p97, %s98, %s99
    %p103 = pneg %p97
    %p104 = scmp.eq.s32.totalorder %s11, 1
    %p105 = por %p103, %p104
    %p106 = scmp.ne.s32.totalorder %s98, %s101
    %p107 = scmp.eq.s32.totalorder %s11, 0
    %p108 = por %p106, %p107
    %p109 = scmp.ne.s32.totalorder %s98, %s101
    %p110 = scmp.eq.s32.totalorder %s16, 1
    %p111 = por %p109, %p110
    %p112 = scmp.ne.s32.totalorder %s101, %s102
    %p113 = scmp.eq.s32.totalorder %s16, 0
    %p114 = por %p112, %p113
    %p115 = scmp.ne.s32.totalorder %s101, %s102
    %p116 = scmp.eq.s32.totalorder %s17, 1
    %p117 = por %p115, %p116
    %p119 = scmp.ne.s32.totalorder %s102, %s118
    %p120 = scmp.eq.s32.totalorder %s17, 0
    %p121 = por %p119, %p120
    %s123 = sadd.s32 %s122, 1
    %p126 = scmp.eq.s32.totalorder %s11, 1
    %p127 = scmp.ne.s32.totalorder %s122, %s124
    %p128 = scmp.eq.s32.totalorder %s11, 0
    %p129 = por %p127, %p128
    %p130 = scmp.ne.s32.totalorder %s122, %s124
    %p131 = scmp.eq.s32.totalorder %s16, 1
    %p132 = por %p130, %p131
    %p133 = scmp.ne.s32.totalorder %s124, %s125
    %p134 = scmp.eq.s32.totalorder %s16, 0
    %p135 = por %p133, %p134
    %p136 = scmp.ne.s32.totalorder %s124, %s125
    %p137 = scmp.eq.s32.totalorder %s17, 1
    %p138 = por %p136, %p137
    %p140 = scmp.ne.s32.totalorder %s125, %s139
    %p141 = scmp.eq.s32.totalorder %s17, 0
    %p142 = por %p140, %p141
    %s144 = sadd.s32 %s143, 1
    %p147 = scmp.eq.s32.totalorder %s11, 1
    %p148 = scmp.ne.s32.totalorder %s143, %s145
    %p149 = scmp.eq.s32.totalorder %s11, 0
    %p150 = por %p148, %p149
    %p151 = scmp.ne.s32.totalorder %s143, %s145
    %p152 = scmp.eq.s32.totalorder %s16, 1
    %p153 = por %p151, %p152
    %p154 = scmp.ne.s32.totalorder %s145, %s146
    %p155 = scmp.eq.s32.totalorder %s16, 0
    %p156 = por %p154, %p155
    %p157 = scmp.ne.s32.totalorder %s145, %s146
    %p158 = scmp.eq.s32.totalorder %s17, 1
    %p159 = por %p157, %p158
    %p161 = scmp.ne.s32.totalorder %s146, %s160
    %p162 = scmp.eq.s32.totalorder %s17, 0
    %p163 = por %p161, %p162
    %s164 = ssub.s32 %s18, %s37
    %s165 = ssub.s32 %s19, %s33
    %s166 = sor.u32 %s164, %s165
    %p167 = scmp.eq.s32.totalorder %s166, 0
    %s169 = sadd.s32 %s168, 1
    %s170 = scalar_select %p167, %s168, %s169
    %p173 = pneg %p167
    %p174 = scmp.eq.s32.totalorder %s11, 1
    %p175 = por %p173, %p174
    %p176 = scmp.ne.s32.totalorder %s168, %s171
    %p177 = scmp.eq.s32.totalorder %s11, 0
    %p178 = por %p176, %p177
    %p179 = scmp.ne.s32.totalorder %s168, %s171
    %p180 = scmp.eq.s32.totalorder %s16, 1
    %p181 = por %p179, %p180
    %p182 = scmp.ne.s32.totalorder %s171, %s172
    %p183 = scmp.eq.s32.totalorder %s16, 0
    %p184 = por %p182, %p183
    %p185 = scmp.ne.s32.totalorder %s171, %s172
    %p186 = scmp.eq.s32.totalorder %s17, 1
    %p187 = por %p185, %p186
    %p189 = scmp.ne.s32.totalorder %s172, %s188
    %p190 = scmp.eq.s32.totalorder %s17, 0
    %p191 = por %p189, %p190
    %p192 = scmp.le.s32.totalorder 1, %s11
    %p193 = scmp.lt.s32.totalorder %s11, 3
    %p194 = pnand %p192, %p193
    %p195 = pneg %p194
    // Predicated region
    $region9: #{forward.5} parent=5 // pred_check
      _
    $region10: #{forward.5} parent=5 // pred_check_branch
      %197 = sbr.rel (%p194) target = $region12
    $region11: #{forward.5} parent=5 // pred_region
      %s198 = ssub.s32 %s11, 1
      // Predicated region
      $region13: #{forward.5} parent=11 // pred_check
        %p199 = pneg %p135
      $region14: #{forward.5} parent=11 // pred_check_branch
        %201 = sbr.rel (%p199) target = $region16
      $region15: #{forward.5} parent=11 // pred_region
        _
      $region16: #{forward.5} parent=11 // pred_fallthru
        _
      // Predicated region
      $region17: #{forward.5} parent=11 // pred_check
        %p202 = pneg %p156
      $region18: #{forward.5} parent=11 // pred_check_branch
        %204 = sbr.rel (%p202) target = $region20
      $region19: #{forward.5} parent=11 // pred_region
        _
      $region20: #{forward.5} parent=11 // pred_fallthru
        _
    $region12: #{forward.5} parent=5 // pred_fallthru
      _
    %p205 = scmp.lt.s32.totalorder %s11, 2
    // Predicated region
    $region21: #{forward.5} parent=5 // pred_check
      %p206 = pneg %p205
    $region22: #{forward.5} parent=5 // pred_check_branch
      %208 = sbr.rel (%p206) target = $region24
    $region23: #{forward.5} parent=5 // pred_region
      // Predicated region
      $region25: #{forward.5} parent=23 // pred_check
        %p209 = pneg %p52
      $region26: #{forward.5} parent=23 // pred_check_branch
        %211 = sbr.rel (%p209) target = $region28
      $region27: #{forward.5} parent=23 // pred_region
        %p212 = scmp.lt.s32.totalorder %s18, 1
        %s213 = scalar_select %p212, %s18, 1
        %p214 = scmp.lt.s32.totalorder %s19, 0
        %s215 = scalar_select %p214, %s19, 0
        %s216 = sadd.s32 %s215, %s213
        %s217 = smul.addr %s216, 4
        %s218 = scalar_lea.vmem %s0, %s217
      $region28: #{forward.5} parent=23 // pred_fallthru
        _
      // Predicated region
      $region29: #{forward.5} parent=23 // pred_check
        %p219 = pneg %p80
      $region30: #{forward.5} parent=23 // pred_check_branch
        %221 = sbr.rel (%p219) target = $region32
      $region31: #{forward.5} parent=23 // pred_region
        %p222 = scmp.lt.s32.totalorder %s18, 1
        %s223 = scalar_select %p222, %s18, 1
        %p224 = scmp.lt.s32.totalorder %s20, 0
        %s225 = scalar_select %p224, %s20, 0
        %s226 = sadd.s32 %s225, %s223
        %s227 = smul.addr %s226, 4
        %s228 = scalar_lea.vmem %s1, %s227
      $region32: #{forward.5} parent=23 // pred_fallthru
        _
      // Predicated region
      $region33: #{forward.5} parent=23 // pred_check
        %p229 = pneg %p108
      $region34: #{forward.5} parent=23 // pred_check_branch
        %231 = sbr.rel (%p229) target = $region36
      $region35: #{forward.5} parent=23 // pred_region
        %p232 = scmp.lt.s32.totalorder %s18, 1
        %s233 = scalar_select %p232, %s18, 1
        %p234 = scmp.lt.s32.totalorder %s20, 0
        %s235 = scalar_select %p234, %s20, 0
        %s236 = sadd.s32 %s235, %s233
        %s237 = smul.addr %s236, 4
        %s238 = scalar_lea.vmem %s2, %s237
      $region36: #{forward.5} parent=23 // pred_fallthru
        _
    $region24: #{forward.5} parent=5 // pred_fallthru
      _
    %p239 = scmp.le.s32.totalorder 1, %s11
    %p240 = scmp.lt.s32.totalorder %s11, 3
    %p241 = pnand %p239, %p240
    %p242 = pneg %p241
    // Predicated region
    $region37: #{forward.5} parent=5 // pred_check
      _
    $region38: #{forward.5} parent=5 // pred_check_branch
      %244 = sbr.rel (%p241) target = $region40
    $region39: #{forward.5} parent=5 // pred_region
      %s245 = ssub.s32 %s11, 1
      %p246 = scmp.lt.s32.totalorder %s21, 1
      %s247 = scalar_select %p246, %s21, 1
      %p248 = scmp.lt.s32.totalorder %s22, 0
      %s249 = scalar_select %p248, %s22, 0
      %s250 = sadd.s32 %s249, %s247
      %s251 = smul.addr %s250, 4
      %s252 = scalar_lea.vmem %s0, %s251
      %p253 = pneg %p58
      %p254 = pneg %p55
      %p255 = scmp.lt.s32.totalorder %s21, 1
      %s256 = scalar_select %p255, %s21, 1
      %p257 = scmp.lt.s32.totalorder %s23, 0
      %s258 = scalar_select %p257, %s23, 0
      %s259 = sadd.s32 %s258, %s256
      %s260 = smul.addr %s259, 4
      %s261 = scalar_lea.vmem %s1, %s260
      %p262 = pneg %p86
      %p263 = pneg %p83
      %p264 = scmp.lt.s32.totalorder %s21, 1
      %s265 = scalar_select %p264, %s21, 1
      %p266 = scmp.lt.s32.totalorder %s23, 0
      %s267 = scalar_select %p266, %s23, 0
      %s268 = sadd.s32 %s267, %s265
      %s269 = smul.addr %s268, 4
      %s270 = scalar_lea.vmem %s2, %s269
      %p271 = pneg %p114
      %p272 = pneg %p111
      %p273 = pneg %p135
      %p274 = pneg %p132
      %p275 = pneg %p156
      %p276 = pneg %p153
      %p277 = pneg %p184
      %p278 = pneg %p181
      %p279 = scmp.lt.s32.totalorder %s21, 1
      %s280 = scalar_select %p279, %s21, 1
      %p281 = scmp.lt.s32.totalorder %s22, 0
      %s282 = scalar_select %p281, %s22, 0
      %s283 = sadd.s32 %s282, %s280
      %s284 = smul.addr %s283, 4
      %s285 = scalar_lea.vmem %s5, %s284
      %p286 = scmp.lt.s32.totalorder %s21, 1
      %s287 = scalar_select %p286, %s21, 1
      %p288 = scmp.lt.s32.totalorder %s22, 0
      %s289 = scalar_select %p288, %s22, 0
      %s290 = sadd.s32 %s289, %s287
      %s291 = smul.addr %s290, 4
      %s292 = scalar_lea.vmem %s0, %s291
      %p293 = scmp.lt.s32.totalorder %s21, 1
      %s294 = scalar_select %p293, %s21, 1
      %p295 = scmp.lt.s32.totalorder %s23, 0
      %s296 = scalar_select %p295, %s23, 0
      %s297 = sadd.s32 %s296, %s294
      %s298 = smul.addr %s297, 4
      %s299 = scalar_lea.vmem %s1, %s298
      %p300 = scmp.lt.s32.totalorder %s21, 1
      %s301 = scalar_select %p300, %s21, 1
      %p302 = scmp.lt.s32.totalorder %s23, 0
      %s303 = scalar_select %p302, %s23, 0
      %s304 = sadd.s32 %s303, %s301
      %s305 = smul.addr %s304, 4
      %s306 = scalar_lea.vmem %s2, %s305
      %p307 = scmp.lt.s32.totalorder %s21, 1
      %s308 = scalar_select %p307, %s21, 1
      %p309 = scmp.lt.s32.totalorder %s22, 0
      %s310 = scalar_select %p309, %s22, 0
      %s311 = sadd.s32 %s310, %s308
      %s312 = smul.addr %s311, 4
      %s313 = scalar_lea.vmem %s5, %s312
      %v315 = vld [vmem:[%s292] sm:$0xf]
      %v316 = vld [vmem:[%s299] sm:$0xf]
      %v317 = vld [vmem:[%s306] sm:$0xf]
      %p318 = scmp.eq.s32.totalorder %s23, 0
      // Predicated region
      $region41: #{forward.5} parent=39 // pred_check
        %p319 = pneg %p318
      $region42: #{forward.5} parent=39 // pred_check_branch
        %321 = sbr.rel (%p319) target = $region44
      $region43: #{forward.5} parent=39 // pred_region
        %v322 = vld [vmem:[%s3] sm:$0x3]
        %vm323 = vcmask 130048
        %v325 = vsel %vm323, %v315, 0
        %v328 = vsel %vm323, %v322, 0
        %330 = vmatprep.subr.bf16.mxu0 0
        %331 = vmatpush1.bf16.xpose.msra.mxu0 %v328
        %332 = vmatprep.subr.bf16.mxu0 0
        %333 = vmatpush1.bf16.xpose.msra.mxu0 0
        %334 = vmatprep.subr.bf16.mxu0 0
        %335 = vmatpush1.bf16.xpose.msra.mxu0 0
        %336 = vmatprep.subr.bf16.mxu0 0
        %337 = vmatpush1.bf16.xpose.msra.mxu0 0
        %338 = vmatprep.subr.bf16.mxu0 0
        %339 = vmatpush1.bf16.xpose.msra.mxu0 0
        %340 = vmatprep.subr.bf16.mxu0 0
        %341 = vmatpush1.bf16.xpose.msra.mxu0 0
        %342 = vmatprep.subr.bf16.mxu0 0
        %343 = vmatpush1.bf16.xpose.msra.mxu0 0
        %344 = vmatprep.subr.bf16.mxu0 0
        %345 = vmatpush1.bf16.xpose.msra.mxu0 0
        %346 = vmatprep.subr.bf16.mxu0 0
        %347 = vmatpush1.bf16.xpose.msra.mxu0 0
        %348 = vmatprep.subr.bf16.mxu0 0
        %349 = vmatpush1.bf16.xpose.msra.mxu0 0
        %350 = vmatprep.subr.bf16.mxu0 0
        %351 = vmatpush1.bf16.xpose.msra.mxu0 0
        %352 = vmatprep.subr.bf16.mxu0 0
        %353 = vmatpush1.bf16.xpose.msra.mxu0 0
        %354 = vmatprep.subr.bf16.mxu0 0
        %355 = vmatpush1.bf16.xpose.msra.mxu0 0
        %356 = vmatprep.subr.bf16.mxu0 0
        %357 = vmatpush1.bf16.xpose.msra.mxu0 0
        %358 = vmatprep.subr.bf16.mxu0 0
        %359 = vmatpush1.bf16.xpose.msra.mxu0 0
        %360 = vmatprep.subr.bf16.mxu0 0
        %361 = vmatpush1.bf16.xpose.msra.mxu0 0
        %362 = vmatprep.mubr.bf16.mxu0 0
        %363 = vmatmul.mubr.bf16.gmra.mrb[0].mxu0 %v325
        %v364 = vpop.f32.mrb[0].mxu0
        %v365 = vadd.f32 0.0, %v364
        %v366 = vpop.f32.mrb[0].mxu0
        %v367 = vpop.f32.mrb[0].mxu0
        %v368 = vpop.f32.mrb[0].mxu0
        %369 = vdwg.mxu0
        %v370 = vmul.f32 %v365, 0.25
        %vm371 = vcmask 31744
        %v372 = vsel %vm371, %v370, -inf
        %373 = vmax.xlane.f32.xlu0 %v372
        %v374 = vpop.xlane.xlu0 %373
        %v375 = vsub.f32 %v370, %v374
        %v376 = vmul.f32 %v375, 1.442695
        %v377 = vpow.pop %v376
        %vm378 = vcmask 7168
        %379 = vst.msk [vmem:[#allocation2] sm:$0xff] %vm378, %v374
        %v380 = vsel %vm371, %v377, 0.0
        %381 = vadd.xlane.f32.xlu0 %v380
        %v382 = vpop.xlane.xlu0 %381
        %383 = vst.msk [vmem:[#allocation3] sm:$0xff] %vm378, %v382
        %v384 = vpack.c.bf16 %v377, %v377
        %v385 = vld [vmem:[%s4] sm:$0x3]
        %v387 = vsel %vm371, %v384, 0
        %vm389 = vcmask 1041408
        %v391 = vsel %vm389, %v385, 0
        %393 = vmatprep.subr.bf16.mxu0 0
        %394 = vmatpush1.bf16.msra.mxu0 %v391
        %395 = vmatprep.subr.bf16.mxu0 0
        %396 = vmatpush1.bf16.msra.mxu0 0
        %397 = vmatprep.subr.bf16.mxu0 0
        %398 = vmatpush1.bf16.msra.mxu0 0
        %399 = vmatprep.subr.bf16.mxu0 0
        %400 = vmatpush1.bf16.msra.mxu0 0
        %401 = vmatprep.subr.bf16.mxu0 0
        %402 = vmatpush1.bf16.msra.mxu0 0
        %403 = vmatprep.subr.bf16.mxu0 0
        %404 = vmatpush1.bf16.msra.mxu0 0
        %405 = vmatprep.subr.bf16.mxu0 0
        %406 = vmatpush1.bf16.msra.mxu0 0
        %407 = vmatprep.subr.bf16.mxu0 0
        %408 = vmatpush1.bf16.msra.mxu0 0
        %409 = vmatprep.subr.bf16.mxu0 0
        %410 = vmatpush1.bf16.msra.mxu0 0
        %411 = vmatprep.subr.bf16.mxu0 0
        %412 = vmatpush1.bf16.msra.mxu0 0
        %413 = vmatprep.subr.bf16.mxu0 0
        %414 = vmatpush1.bf16.msra.mxu0 0
        %415 = vmatprep.subr.bf16.mxu0 0
        %416 = vmatpush1.bf16.msra.mxu0 0
        %417 = vmatprep.subr.bf16.mxu0 0
        %418 = vmatpush1.bf16.msra.mxu0 0
        %419 = vmatprep.subr.bf16.mxu0 0
        %420 = vmatpush1.bf16.msra.mxu0 0
        %421 = vmatprep.subr.bf16.mxu0 0
        %422 = vmatpush1.bf16.msra.mxu0 0
        %423 = vmatprep.subr.bf16.mxu0 0
        %424 = vmatpush1.bf16.msra.mxu0 0
        %425 = vmatprep.mubr.bf16.mxu0 0
        %426 = vmatmul.mubr.bf16.gmra.mrb[0].mxu0 %v387
        %v427 = vpop.f32.mrb[0].mxu0
        %v428 = vadd.f32 0.0, %v427
        %v429 = vpop.f32.mrb[0].mxu0
        %v430 = vpop.f32.mrb[0].mxu0
        %v431 = vpop.f32.mrb[0].mxu0
        %432 = vdwg.mxu0
        %433 = vst.msk [vmem:[#allocation4] sm:$0xff] %vm323, %v428
        %s434 = scalar_lea.vmem %s3, 2
        %v435 = vld [vmem:[%s434] sm:$0x3]
        %v437 = vunpack.c.l.b16 %v315
        %v438 = vpack.c.b16 %v437, %v437
        %439 = vrot.lane.b32.xlu0 %v438, 112
        %v440 = vpop.permute.xlu0 %439
        %v442 = vsel %vm323, %v440, 0
        %v445 = vsel %vm323, %v435, 0
        %447 = vmatprep.subr.bf16.mxu0 0
        %448 = vmatpush1.bf16.xpose.msra.mxu0 %v445
        %449 = vmatprep.subr.bf16.mxu0 0
        %450 = vmatpush1.bf16.xpose.msra.mxu0 0
        %451 = vmatprep.subr.bf16.mxu0 0
        %452 = vmatpush1.bf16.xpose.msra.mxu0 0
        %453 = vmatprep.subr.bf16.mxu0 0
        %454 = vmatpush1.bf16.xpose.msra.mxu0 0
        %455 = vmatprep.subr.bf16.mxu0 0
        %456 = vmatpush1.bf16.xpose.msra.mxu0 0
        %457 = vmatprep.subr.bf16.mxu0 0
        %458 = vmatpush1.bf16.xpose.msra.mxu0 0
        %459 = vmatprep.subr.bf16.mxu0 0
        %460 = vmatpush1.bf16.xpose.msra.mxu0 0
        %461 = vmatprep.subr.bf16.mxu0 0
        %462 = vmatpush1.bf16.xpose.msra.mxu0 0
        %463 = vmatprep.subr.bf16.mxu0 0
        %464 = vmatpush1.bf16.xpose.msra.mxu0 0
        %465 = vmatprep.subr.bf16.mxu0 0
        %466 = vmatpush1.bf16.xpose.msra.mxu0 0
        %467 = vmatprep.subr.bf16.mxu0 0
        %468 = vmatpush1.bf16.xpose.msra.mxu0 0
        %469 = vmatprep.subr.bf16.mxu0 0
        %470 = vmatpush1.bf16.xpose.msra.mxu0 0
        %471 = vmatprep.subr.bf16.mxu0 0
        %472 = vmatpush1.bf16.xpose.msra.mxu0 0
        %473 = vmatprep.subr.bf16.mxu0 0
        %474 = vmatpush1.bf16.xpose.msra.mxu0 0
        %475 = vmatprep.subr.bf16.mxu0 0
        %476 = vmatpush1.bf16.xpose.msra.mxu0 0
        %477 = vmatprep.subr.bf16.mxu0 0
        %478 = vmatpush1.bf16.xpose.msra.mxu0 0
        %479 = vmatprep.mubr.bf16.mxu0 0
        %480 = vmatmul.mubr.bf16.gmra.mrb[0].mxu0 %v442
        %v481 = vpop.f32.mrb[0].mxu0
        %v482 = vadd.f32 0.0, %v481
        %v483 = vpop.f32.mrb[0].mxu0
        %v484 = vpop.f32.mrb[0].mxu0
        %v485 = vpop.f32.mrb[0].mxu0
        %486 = vdwg.mxu0
        %v487 = vmul.f32 %v482, 0.25
        %v488 = vsel %vm371, %v487, -inf
        %489 = vmax.xlane.f32.xlu0 %v488
        %v490 = vpop.xlane.xlu0 %489
        %v491 = vsub.f32 %v487, %v490
        %v492 = vmul.f32 %v491, 1.442695
        %v493 = vpow.pop %v492
        %s494 = scalar_lea.vmem [#allocation2], 8
        %495 = vst.msk [vmem:[%s494] sm:$0xff] %vm378, %v490
        %v496 = vsel %vm371, %v493, 0.0
        %497 = vadd.xlane.f32.xlu0 %v496
        %v498 = vpop.xlane.xlu0 %497
        %s499 = scalar_lea.vmem [#allocation3], 8
        %500 = vst.msk [vmem:[%s499] sm:$0xff] %vm378, %v498
        %v501 = vpack.c.bf16 %v493, %v493
        %s502 = scalar_lea.vmem %s4, 2
        %v503 = vld [vmem:[%s502] sm:$0x3]
        %v505 = vsel %vm371, %v501, 0
        %v508 = vsel %vm389, %v503, 0
        %510 = vmatprep.subr.bf16.mxu0 0
        %511 = vmatpush1.bf16.msra.mxu0 %v508
        %512 = vmatprep.subr.bf16.mxu0 0
        %513 = vmatpush1.bf16.msra.mxu0 0
        %514 = vmatprep.subr.bf16.mxu0 0
        %515 = vmatpush1.bf16.msra.mxu0 0
        %516 = vmatprep.subr.bf16.mxu0 0
        %517 = vmatpush1.bf16.msra.mxu0 0
        %518 = vmatprep.subr.bf16.mxu0 0
        %519 = vmatpush1.bf16.msra.mxu0 0
        %520 = vmatprep.subr.bf16.mxu0 0
        %521 = vmatpush1.bf16.msra.mxu0 0
        %522 = vmatprep.subr.bf16.mxu0 0
        %523 = vmatpush1.bf16.msra.mxu0 0
        %524 = vmatprep.subr.bf16.mxu0 0
        %525 = vmatpush1.bf16.msra.mxu0 0
        %526 = vmatprep.subr.bf16.mxu0 0
        %527 = vmatpush1.bf16.msra.mxu0 0
        %528 = vmatprep.subr.bf16.mxu0 0
        %529 = vmatpush1.bf16.msra.mxu0 0
        %530 = vmatprep.subr.bf16.mxu0 0
        %531 = vmatpush1.bf16.msra.mxu0 0
        %532 = vmatprep.subr.bf16.mxu0 0
        %533 = vmatpush1.bf16.msra.mxu0 0
        %534 = vmatprep.subr.bf16.mxu0 0
        %535 = vmatpush1.bf16.msra.mxu0 0
        %536 = vmatprep.subr.bf16.mxu0 0
        %537 = vmatpush1.bf16.msra.mxu0 0
        %538 = vmatprep.subr.bf16.mxu0 0
        %539 = vmatpush1.bf16.msra.mxu0 0
        %540 = vmatprep.subr.bf16.mxu0 0
        %541 = vmatpush1.bf16.msra.mxu0 0
        %542 = vmatprep.mubr.bf16.mxu0 0
        %543 = vmatmul.mubr.bf16.gmra.mrb[0].mxu0 %v505
        %v544 = vpop.f32.mrb[0].mxu0
        %v545 = vadd.f32 0.0, %v544
        %v546 = vpop.f32.mrb[0].mxu0
        %v547 = vpop.f32.mrb[0].mxu0
        %v548 = vpop.f32.mrb[0].mxu0
        %549 = vdwg.mxu0
        %s550 = scalar_lea.vmem [#allocation4], 8
        %551 = vst.msk [vmem:[%s550] sm:$0xff] %vm323, %v545
        %s552 = scalar_lea.vmem %s3, 4
        %v553 = vld [vmem:[%s552] sm:$0x3]
        %554 = vrot.lane.b32.xlu0 %v438, 96
        %v555 = vpop.permute.xlu0 %554
        %v557 = vsel %vm323, %v555, 0
        %v560 = vsel %vm323, %v553, 0
        %562 = vmatprep.subr.bf16.mxu0 0
        %563 = vmatpush1.bf16.xpose.msra.mxu0 %v560
        %564 = vmatprep.subr.bf16.mxu0 0
        %565 = vmatpush1.bf16.xpose.msra.mxu0 0
        %566 = vmatprep.subr.bf16.mxu0 0
        %567 = vmatpush1.bf16.xpose.msra.mxu0 0
        %568 = vmatprep.subr.bf16.mxu0 0
        %569 = vmatpush1.bf16.xpose.msra.mxu0 0
        %570 = vmatprep.subr.bf16.mxu0 0
        %571 = vmatpush1.bf16.xpose.msra.mxu0 0
        %572 = vmatprep.subr.bf16.mxu0 0
        %573 = vmatpush1.bf16.xpose.msra.mxu0 0
        %574 = vmatprep.subr.bf16.mxu0 0
        %575 = vmatpush1.bf16.xpose.msra.mxu0 0
        %576 = vmatprep.subr.bf16.mxu0 0
        %577 = vmatpush1.bf16.xpose.msra.mxu0 0
        %578 = vmatprep.subr.bf16.mxu0 0
        %579 = vmatpush1.bf16.xpose.msra.mxu0 0
        %580 = vmatprep.subr.bf16.mxu0 0
        %581 = vmatpush1.bf16.xpose.msra.mxu0 0
        %582 = vmatprep.subr.bf16.mxu0 0
        %583 = vmatpush1.bf16.xpose.msra.mxu0 0
        %584 = vmatprep.subr.bf16.mxu0 0
        %585 = vmatpush1.bf16.xpose.msra.mxu0 0
        %586 = vmatprep.subr.bf16.mxu0 0
        %587 = vmatpush1.bf16.xpose.msra.mxu0 0
        %588 = vmatprep.subr.bf16.mxu0 0
        %589 = vmatpush1.bf16.xpose.msra.mxu0 0
        %590 = vmatprep.subr.bf16.mxu0 0
        %591 = vmatpush1.bf16.xpose.msra.mxu0 0
        %592 = vmatprep.subr.bf16.mxu0 0
        %593 = vmatpush1.bf16.xpose.msra.mxu0 0
        %594 = vmatprep.mubr.bf16.mxu0 0
        %595 = vmatmul.mubr.bf16.gmra.mrb[0].mxu0 %v557
        %v596 = vpop.f32.mrb[0].mxu0
        %v597 = vadd.f32 0.0, %v596
        %v598 = vpop.f32.mrb[0].mxu0
        %v599 = vpop.f32.mrb[0].mxu0
        %v600 = vpop.f32.mrb[0].mxu0
        %601 = vdwg.mxu0
        %v602 = vmul.f32 %v597, 0.25
        %v603 = vsel %vm371, %v602, -inf
        %604 = vmax.xlane.f32.xlu0 %v603
        %v605 = vpop.xlane.xlu0 %604
        %v606 = vsub.f32 %v602, %v605
        %v607 = vmul.f32 %v606, 1.442695
        %v608 = vpow.pop %v607
        %s609 = scalar_lea.vmem [#allocation2], 16
        %610 = vst.msk [vmem:[%s609] sm:$0xff] %vm378, %v605
        %v611 = vsel %vm371, %v608, 0.0
        %612 = vadd.xlane.f32.xlu0 %v611
        %v613 = vpop.xlane.xlu0 %612
        %s614 = scalar_lea.vmem [#allocation3], 16
        %615 = vst.msk [vmem:[%s614] sm:$0xff] %vm378, %v613
        %v616 = vpack.c.bf16 %v608, %v608
        %s617 = scalar_lea.vmem %s4, 4
        %v618 = vld [vmem:[%s617] sm:$0x3]
        %v620 = vsel %vm371, %v616, 0
        %v623 = vsel %vm389, %v618, 0
        %625 = vmatprep.subr.bf16.mxu0 0
        %626 = vmatpush1.bf16.msra.mxu0 %v623
        %627 = vmatprep.subr.bf16.mxu0 0
        %628 = vmatpush1.bf16.msra.mxu0 0
        %629 = vmatprep.subr.bf16.mxu0 0
        %630 = vmatpush1.bf16.msra.mxu0 0
        %631 = vmatprep.subr.bf16.mxu0 0
        %632 = vmatpush1.bf16.msra.mxu0 0
        %633 = vmatprep.subr.bf16.mxu0 0
        %634 = vmatpush1.bf16.msra.mxu0 0
        %635 = vmatprep.subr.bf16.mxu0 0
        %636 = vmatpush1.bf16.msra.mxu0 0
        %637 = vmatprep.subr.bf16.mxu0 0
        %638 = vmatpush1.bf16.msra.mxu0 0
        %639 = vmatprep.subr.bf16.mxu0 0
        %640 = vmatpush1.bf16.msra.mxu0 0
        %641 = vmatprep.subr.bf16.mxu0 0
        %642 = vmatpush1.bf16.msra.mxu0 0
        %643 = vmatprep.subr.bf16.mxu0 0
        %644 = vmatpush1.bf16.msra.mxu0 0
        %645 = vmatprep.subr.bf16.mxu0 0
        %646 = vmatpush1.bf16.msra.mxu0 0
        %647 = vmatprep.subr.bf16.mxu0 0
        %648 = vmatpush1.bf16.msra.mxu0 0
        %649 = vmatprep.subr.bf16.mxu0 0
        %650 = vmatpush1.bf16.msra.mxu0 0
        %651 = vmatprep.subr.bf16.mxu0 0
        %652 = vmatpush1.bf16.msra.mxu0 0
        %653 = vmatprep.subr.bf16.mxu0 0
        %654 = vmatpush1.bf16.msra.mxu0 0
        %655 = vmatprep.subr.bf16.mxu0 0
        %656 = vmatpush1.bf16.msra.mxu0 0
        %657 = vmatprep.mubr.bf16.mxu0 0
        %658 = vmatmul.mubr.bf16.gmra.mrb[0].mxu0 %v620
        %v659 = vpop.f32.mrb[0].mxu0
        %v660 = vadd.f32 0.0, %v659
        %v661 = vpop.f32.mrb[0].mxu0
        %v662 = vpop.f32.mrb[0].mxu0
        %v663 = vpop.f32.mrb[0].mxu0
        %664 = vdwg.mxu0
        %s665 = scalar_lea.vmem [#allocation4], 16
        %666 = vst.msk [vmem:[%s665] sm:$0xff] %vm323, %v660
        %s667 = scalar_lea.vmem %s3, 6
        %v668 = vld [vmem:[%s667] sm:$0x3]
        %669 = vrot.lane.b32.xlu0 %v438, 80
        %v670 = vpop.permute.xlu0 %669
        %v672 = vsel %vm323, %v670, 0
        %v675 = vsel %vm323, %v668, 0
        %677 = vmatprep.subr.bf16.mxu0 0
        %678 = vmatpush1.bf16.xpose.msra.mxu0 %v675
        %679 = vmatprep.subr.bf16.mxu0 0
        %680 = vmatpush1.bf16.xpose.msra.mxu0 0
        %681 = vmatprep.subr.bf16.mxu0 0
        %682 = vmatpush1.bf16.xpose.msra.mxu0 0
        %683 = vmatprep.subr.bf16.mxu0 0
        %684 = vmatpush1.bf16.xpose.msra.mxu0 0
        %685 = vmatprep.subr.bf16.mxu0 0
        %686 = vmatpush1.bf16.xpose.msra.mxu0 0
        %687 = vmatprep.subr.bf16.mxu0 0
        %688 = vmatpush1.bf16.xpose.msra.mxu0 0
        %689 = vmatprep.subr.bf16.mxu0 0
        %690 = vmatpush1.bf16.xpose.msra.mxu0 0
        %691 = vmatprep.subr.bf16.mxu0 0
        %692 = vmatpush1.bf16.xpose.msra.mxu0 0
        %693 = vmatprep.subr.bf16.mxu0 0
        %694 = vmatpush1.bf16.xpose.msra.mxu0 0
        %695 = vmatprep.subr.bf16.mxu0 0
        %696 = vmatpush1.bf16.xpose.msra.mxu0 0
        %697 = vmatprep.subr.bf16.mxu0 0
        %698 = vmatpush1.bf16.xpose.msra.mxu0 0
        %699 = vmatprep.subr.bf16.mxu0 0
        %700 = vmatpush1.bf16.xpose.msra.mxu0 0
        %701 = vmatprep.subr.bf16.mxu0 0
        %702 = vmatpush1.bf16.xpose.msra.mxu0 0
        %703 = vmatprep.subr.bf16.mxu0 0
        %704 = vmatpush1.bf16.xpose.msra.mxu0 0
        %705 = vmatprep.subr.bf16.mxu0 0
        %706 = vmatpush1.bf16.xpose.msra.mxu0 0
        %707 = vmatprep.subr.bf16.mxu0 0
        %708 = vmatpush1.bf16.xpose.msra.mxu0 0
        %709 = vmatprep.mubr.bf16.mxu0 0
        %710 = vmatmul.mubr.bf16.gmra.mrb[0].mxu0 %v672
        %v711 = vpop.f32.mrb[0].mxu0
        %v712 = vadd.f32 0.0, %v711
        %v713 = vpop.f32.mrb[0].mxu0
        %v714 = vpop.f32.mrb[0].mxu0
        %v715 = vpop.f32.mrb[0].mxu0
        %716 = vdwg.mxu0
        %v717 = vmul.f32 %v712, 0.25
        %v718 = vsel %vm371, %v717, -inf
        %719 = vmax.xlane.f32.xlu0 %v718
        %v720 = vpop.xlane.xlu0 %719
        %v721 = vsub.f32 %v717, %v720
        %v722 = vmul.f32 %v721, 1.442695
        %v723 = vpow.pop %v722
        %s724 = scalar_lea.vmem [#allocation2], 24
        %725 = vst.msk [vmem:[%s724] sm:$0xff] %vm378, %v720
        %v726 = vsel %vm371, %v723, 0.0
        %727 = vadd.xlane.f32.xlu0 %v726
        %v728 = vpop.xlane.xlu0 %727
        %s729 = scalar_lea.vmem [#allocation3], 24
        %730 = vst.msk [vmem:[%s729] sm:$0xff] %vm378, %v728
        %v731 = vpack.c.bf16 %v723, %v723
        %s732 = scalar_lea.vmem %s4, 6
        %v733 = vld [vmem:[%s732] sm:$0x3]
        %v735 = vsel %vm371, %v731, 0
        %v738 = vsel %vm389, %v733, 0
        %740 = vmatprep.subr.bf16.mxu0 0
        %741 = vmatpush1.bf16.msra.mxu0 %v738
        %742 = vmatprep.subr.bf16.mxu0 0
        %743 = vmatpush1.bf16.msra.mxu0 0
        %744 = vmatprep.subr.bf16.mxu0 0
        %745 = vmatpush1.bf16.msra.mxu0 0
        %746 = vmatprep.subr.bf16.mxu0 0
        %747 = vmatpush1.bf16.msra.mxu0 0
        %748 = vmatprep.subr.bf16.mxu0 0
        %749 = vmatpush1.bf16.msra.mxu0 0
        %750 = vmatprep.subr.bf16.mxu0 0
        %751 = vmatpush1.bf16.msra.mxu0 0
        %752 = vmatprep.subr.bf16.mxu0 0
        %753 = vmatpush1.bf16.msra.mxu0 0
        %754 = vmatprep.subr.bf16.mxu0 0
        %755 = vmatpush1.bf16.msra.mxu0 0
        %756 = vmatprep.subr.bf16.mxu0 0
        %757 = vmatpush1.bf16.msra.mxu0 0
        %758 = vmatprep.subr.bf16.mxu0 0
        %759 = vmatpush1.bf16.msra.mxu0 0
        %760 = vmatprep.subr.bf16.mxu0 0
        %761 = vmatpush1.bf16.msra.mxu0 0
        %762 = vmatprep.subr.bf16.mxu0 0
        %763 = vmatpush1.bf16.msra.mxu0 0
        %764 = vmatprep.subr.bf16.mxu0 0
        %765 = vmatpush1.bf16.msra.mxu0 0
        %766 = vmatprep.subr.bf16.mxu0 0
        %767 = vmatpush1.bf16.msra.mxu0 0
        %768 = vmatprep.subr.bf16.mxu0 0
        %769 = vmatpush1.bf16.msra.mxu0 0
        %770 = vmatprep.subr.bf16.mxu0 0
        %771 = vmatpush1.bf16.msra.mxu0 0
        %772 = vmatprep.mubr.bf16.mxu0 0
        %773 = vmatmul.mubr.bf16.gmra.mrb[0].mxu0 %v735
        %v774 = vpop.f32.mrb[0].mxu0
        %v775 = vadd.f32 0.0, %v774
        %v776 = vpop.f32.mrb[0].mxu0
        %v777 = vpop.f32.mrb[0].mxu0
        %v778 = vpop.f32.mrb[0].mxu0
        %779 = vdwg.mxu0
        %s780 = scalar_lea.vmem [#allocation4], 24
        %781 = vst.msk [vmem:[%s780] sm:$0xff] %vm323, %v775
      $region44: #{forward.5} parent=39 // pred_fallthru
        _
      %v782 = vlaneseq
      %v783 = vshrl.u32 %v782, 7
      %s784 = smul.u32 %s22, 8
      %v785 = vstv %s784
      %v786 = vadd.s32 %v783, %v785
      %v787 = vlaneseq
      %v788 = vand.u32 %v787, 127
      %s789 = smul.u32 %s23, 8
      %v790 = vstv %s789
      %v791 = vadd.s32 %v788, %v790
      %vm792 = vcmp.ge.s32.totalorder %v791, %v786
      %vm793 = vcmask 130048
      %v795 = vsel %vm793, %v315, 0
      %v798 = vsel %vm793, %v316, 0
      %800 = vmatprep.subr.bf16.mxu0 0
      %801 = vmatpush1.bf16.xpose.msra.mxu0 %v798
      %802 = vmatprep.subr.bf16.mxu0 0
      %803 = vmatpush1.bf16.xpose.msra.mxu0 0
      %804 = vmatprep.subr.bf16.mxu0 0
      %805 = vmatpush1.bf16.xpose.msra.mxu0 0
      %806 = vmatprep.subr.bf16.mxu0 0
      %807 = vmatpush1.bf16.xpose.msra.mxu0 0
      %808 = vmatprep.subr.bf16.mxu0 0
      %809 = vmatpush1.bf16.xpose.msra.mxu0 0
      %810 = vmatprep.subr.bf16.mxu0 0
      %811 = vmatpush1.bf16.xpose.msra.mxu0 0
      %812 = vmatprep.subr.bf16.mxu0 0
      %813 = vmatpush1.bf16.xpose.msra.mxu0 0
      %814 = vmatprep.subr.bf16.mxu0 0
      %815 = vmatpush1.bf16.xpose.msra.mxu0 0
      %816 = vmatprep.subr.bf16.mxu0 0
      %817 = vmatpush1.bf16.xpose.msra.mxu0 0
      %818 = vmatprep.subr.bf16.mxu0 0
      %819 = vmatpush1.bf16.xpose.msra.mxu0 0
      %820 = vmatprep.subr.bf16.mxu0 0
      %821 = vmatpush1.bf16.xpose.msra.mxu0 0
      %822 = vmatprep.subr.bf16.mxu0 0
      %823 = vmatpush1.bf16.xpose.msra.mxu0 0
      %824 = vmatprep.subr.bf16.mxu0 0
      %825 = vmatpush1.bf16.xpose.msra.mxu0 0
      %826 = vmatprep.subr.bf16.mxu0 0
      %827 = vmatpush1.bf16.xpose.msra.mxu0 0
      %828 = vmatprep.subr.bf16.mxu0 0
      %829 = vmatpush1.bf16.xpose.msra.mxu0 0
      %830 = vmatprep.subr.bf16.mxu0 0
      %831 = vmatpush1.bf16.xpose.msra.mxu0 0
      %832 = vmatprep.mubr.bf16.mxu0 0
      %833 = vmatmul.mubr.bf16.gmra.mrb[0].mxu0 %v795
      %v834 = vpop.f32.mrb[0].mxu0
      %v835 = vadd.f32 0.0, %v834
      %v836 = vpop.f32.mrb[0].mxu0
      %v837 = vpop.f32.mrb[0].mxu0
      %v838 = vpop.f32.mrb[0].mxu0
      %839 = vdwg.mxu0
      %v840 = vmul.f32 %v835, 0.25
      %v841 = vsel %vm792, -1e+30, %v840
      %v842 = vld [vmem:[#allocation2] sm:$0xff]
      %vm843 = vcmask 64512
      %v844 = vsel %vm843, %v841, -inf
      %845 = vmax.xlane.f32.xlu0 %v844
      %v846 = vpop.xlane.xlu0 %845
      %v847 = vmax.f32 %v842, %v846
      %v848 = vsub.f32 %v842, %v847
      %v849 = vmul.f32 %v848, 1.442695
      %v850 = vpow.pop %v849
      %852 = vset.pattern.permute.xlu0 0
      %853 = vperm.xlu0 %852, %v847
      %v854 = vpop.permute.xlu0 %853
      %v856 = vsub.f32 %v841, %v854
      %v857 = vmul.f32 %v856, 1.442695
      %v858 = vpow.pop %v857
      %v859 = vld [vmem:[#allocation3] sm:$0xff]
      %v860 = vmul.f32 %v850, %v859
      %v861 = vsel %vm843, %v858, 0.0
      %862 = vadd.xlane.f32.xlu0 %v861
      %v863 = vpop.xlane.xlu0 %862
      %v864 = vadd.f32 %v860, %v863
      %vm865 = vcmask 7168
      %866 = vst.msk [vmem:[#allocation3] sm:$0xff] %vm865, %v864
      %v867 = vld [vmem:[#allocation4] sm:$0xff]
      %869 = vset.pattern.permute.xlu0 0
      %870 = vperm.xlu0 %869, %v850
      %v871 = vpop.permute.xlu0 %870
      %v873 = vmul.f32 %v871, %v867
      %v874 = vpack.c.bf16 %v858, %v858
      %v876 = vsel %vm843, %v874, 0
      %vm878 = vcmask 1043456
      %v880 = vsel %vm878, %v317, 0
      %882 = vmatprep.subr.bf16.mxu0 0
      %883 = vmatpush1.bf16.msra.mxu0 %v880
      %884 = vmatprep.subr.bf16.mxu0 0
      %885 = vmatpush1.bf16.msra.mxu0 0
      %886 = vmatprep.subr.bf16.mxu0 0
      %887 = vmatpush1.bf16.msra.mxu0 0
      %888 = vmatprep.subr.bf16.mxu0 0
      %889 = vmatpush1.bf16.msra.mxu0 0
      %890 = vmatprep.subr.bf16.mxu0 0
      %891 = vmatpush1.bf16.msra.mxu0 0
      %892 = vmatprep.subr.bf16.mxu0 0
      %893 = vmatpush1.bf16.msra.mxu0 0
      %894 = vmatprep.subr.bf16.mxu0 0
      %895 = vmatpush1.bf16.msra.mxu0 0
      %896 = vmatprep.subr.bf16.mxu0 0
      %897 = vmatpush1.bf16.msra.mxu0 0
      %898 = vmatprep.subr.bf16.mxu0 0
      %899 = vmatpush1.bf16.msra.mxu0 0
      %900 = vmatprep.subr.bf16.mxu0 0
      %901 = vmatpush1.bf16.msra.mxu0 0
      %902 = vmatprep.subr.bf16.mxu0 0
      %903 = vmatpush1.bf16.msra.mxu0 0
      %904 = vmatprep.subr.bf16.mxu0 0
      %905 = vmatpush1.bf16.msra.mxu0 0
      %906 = vmatprep.subr.bf16.mxu0 0
      %907 = vmatpush1.bf16.msra.mxu0 0
      %908 = vmatprep.subr.bf16.mxu0 0
      %909 = vmatpush1.bf16.msra.mxu0 0
      %910 = vmatprep.subr.bf16.mxu0 0
      %911 = vmatpush1.bf16.msra.mxu0 0
      %912 = vmatprep.subr.bf16.mxu0 0
      %913 = vmatpush1.bf16.msra.mxu0 0
      %914 = vmatprep.mubr.bf16.mxu0 0
      %915 = vmatmul.mubr.bf16.gmra.mrb[0].mxu0 %v876
      %v916 = vpop.f32.mrb[0].mxu0
      %v917 = vadd.f32 0.0, %v916
      %v918 = vpop.f32.mrb[0].mxu0
      %v919 = vpop.f32.mrb[0].mxu0
      %v920 = vpop.f32.mrb[0].mxu0
      %921 = vdwg.mxu0
      %v922 = vadd.f32 %v873, %v917
      %923 = vst.msk [vmem:[#allocation4] sm:$0xff] %vm793, %v922
      %924 = vst.msk [vmem:[#allocation2] sm:$0xff] %vm865, %v847
      %v926 = vunpack.c.l.b16 %v315
      %v927 = vpack.c.b16 %v926, %v926
      %928 = vrot.lane.b32.xlu0 %v927, 112
      %v929 = vpop.permute.xlu0 %928
      %v931 = vunpack.c.l.b16 %v316
      %v932 = vpack.c.b16 %v931, %v931
      %933 = vrot.lane.b32.xlu0 %v932, 112
      %v934 = vpop.permute.xlu0 %933
      %v936 = vsel %vm793, %v929, 0
      %v939 = vsel %vm793, %v934, 0
      %941 = vmatprep.subr.bf16.mxu0 0
      %942 = vmatpush1.bf16.xpose.msra.mxu0 %v939
      %943 = vmatprep.subr.bf16.mxu0 0
      %944 = vmatpush1.bf16.xpose.msra.mxu0 0
      %945 = vmatprep.subr.bf16.mxu0 0
      %946 = vmatpush1.bf16.xpose.msra.mxu0 0
      %947 = vmatprep.subr.bf16.mxu0 0
      %948 = vmatpush1.bf16.xpose.msra.mxu0 0
      %949 = vmatprep.subr.bf16.mxu0 0
      %950 = vmatpush1.bf16.xpose.msra.mxu0 0
      %951 = vmatprep.subr.bf16.mxu0 0
      %952 = vmatpush1.bf16.xpose.msra.mxu0 0
      %953 = vmatprep.subr.bf16.mxu0 0
      %954 = vmatpush1.bf16.xpose.msra.mxu0 0
      %955 = vmatprep.subr.bf16.mxu0 0
      %956 = vmatpush1.bf16.xpose.msra.mxu0 0
      %957 = vmatprep.subr.bf16.mxu0 0
      %958 = vmatpush1.bf16.xpose.msra.mxu0 0
      %959 = vmatprep.subr.bf16.mxu0 0
      %960 = vmatpush1.bf16.xpose.msra.mxu0 0
      %961 = vmatprep.subr.bf16.mxu0 0
      %962 = vmatpush1.bf16.xpose.msra.mxu0 0
      %963 = vmatprep.subr.bf16.mxu0 0
      %964 = vmatpush1.bf16.xpose.msra.mxu0 0
      %965 = vmatprep.subr.bf16.mxu0 0
      %966 = vmatpush1.bf16.xpose.msra.mxu0 0
      %967 = vmatprep.subr.bf16.mxu0 0
      %968 = vmatpush1.bf16.xpose.msra.mxu0 0
      %969 = vmatprep.subr.bf16.mxu0 0
      %970 = vmatpush1.bf16.xpose.msra.mxu0 0
      %971 = vmatprep.subr.bf16.mxu0 0
      %972 = vmatpush1.bf16.xpose.msra.mxu0 0
      %973 = vmatprep.mubr.bf16.mxu0 0
      %974 = vmatmul.mubr.bf16.gmra.mrb[0].mxu0 %v936
      %v975 = vpop.f32.mrb[0].mxu0
      %v976 = vadd.f32 0.0, %v975
      %v977 = vpop.f32.mrb[0].mxu0
      %v978 = vpop.f32.mrb[0].mxu0
      %v979 = vpop.f32.mrb[0].mxu0
      %980 = vdwg.mxu0
      %v981 = vmul.f32 %v976, 0.25
      %v982 = vsel %vm792, -1e+30, %v981
      %s983 = scalar_lea.vmem [#allocation2], 8
      %v984 = vld [vmem:[%s983] sm:$0xff]
      %v985 = vsel %vm843, %v982, -inf
      %986 = vmax.xlane.f32.xlu0 %v985
      %v987 = vpop.xlane.xlu0 %986
      %v988 = vmax.f32 %v984, %v987
      %v989 = vsub.f32 %v984, %v988
      %v990 = vmul.f32 %v989, 1.442695
      %v991 = vpow.pop %v990
      %993 = vset.pattern.permute.xlu0 0
      %994 = vperm.xlu0 %993, %v988
      %v995 = vpop.permute.xlu0 %994
      %v997 = vsub.f32 %v982, %v995
      %v998 = vmul.f32 %v997, 1.442695
      %v999 = vpow.pop %v998
      %s1000 = scalar_lea.vmem [#allocation3], 8
      %v1001 = vld [vmem:[%s1000] sm:$0xff]
      %v1002 = vmul.f32 %v991, %v1001
      %v1003 = vsel %vm843, %v999, 0.0
      %1004 = vadd.xlane.f32.xlu0 %v1003
      %v1005 = vpop.xlane.xlu0 %1004
      %v1006 = vadd.f32 %v1002, %v1005
      %1007 = vst.msk [vmem:[%s1000] sm:$0xff] %vm865, %v1006
      %s1008 = scalar_lea.vmem [#allocation4], 8
      %v1009 = vld [vmem:[%s1008] sm:$0xff]
      %1011 = vset.pattern.permute.xlu0 0
      %1012 = vperm.xlu0 %1011, %v991
      %v1013 = vpop.permute.xlu0 %1012
      %v1015 = vmul.f32 %v1013, %v1009
      %v1016 = vpack.c.bf16 %v999, %v999
      %v1018 = vunpack.c.l.b16 %v317
      %v1019 = vpack.c.b16 %v1018, %v1018
      %1020 = vrot.lane.b32.xlu0 %v1019, 112
      %v1021 = vpop.permute.xlu0 %1020
      %v1023 = vsel %vm843, %v1016, 0
      %v1026 = vsel %vm878, %v1021, 0
      %1028 = vmatprep.subr.bf16.mxu0 0
      %1029 = vmatpush1.bf16.msra.mxu0 %v1026
      %1030 = vmatprep.subr.bf16.mxu0 0
      %1031 = vmatpush1.bf16.msra.mxu0 0
      %1032 = vmatprep.subr.bf16.mxu0 0
      %1033 = vmatpush1.bf16.msra.mxu0 0
      %1034 = vmatprep.subr.bf16.mxu0 0
      %1035 = vmatpush1.bf16.msra.mxu0 0
      %1036 = vmatprep.subr.bf16.mxu0 0
      %1037 = vmatpush1.bf16.msra.mxu0 0
      %1038 = vmatprep.subr.bf16.mxu0 0
      %1039 = vmatpush1.bf16.msra.mxu0 0
      %1040 = vmatprep.subr.bf16.mxu0 0
      %1041 = vmatpush1.bf16.msra.mxu0 0
      %1042 = vmatprep.subr.bf16.mxu0 0
      %1043 = vmatpush1.bf16.msra.mxu0 0
      %1044 = vmatprep.subr.bf16.mxu0 0
      %1045 = vmatpush1.bf16.msra.mxu0 0
      %1046 = vmatprep.subr.bf16.mxu0 0
      %1047 = vmatpush1.bf16.msra.mxu0 0
      %1048 = vmatprep.subr.bf16.mxu0 0
      %1049 = vmatpush1.bf16.msra.mxu0 0
      %1050 = vmatprep.subr.bf16.mxu0 0
      %1051 = vmatpush1.bf16.msra.mxu0 0
      %1052 = vmatprep.subr.bf16.mxu0 0
      %1053 = vmatpush1.bf16.msra.mxu0 0
      %1054 = vmatprep.subr.bf16.mxu0 0
      %1055 = vmatpush1.bf16.msra.mxu0 0
      %1056 = vmatprep.subr.bf16.mxu0 0
      %1057 = vmatpush1.bf16.msra.mxu0 0
      %1058 = vmatprep.subr.bf16.mxu0 0
      %1059 = vmatpush1.bf16.msra.mxu0 0
      %1060 = vmatprep.mubr.bf16.mxu0 0
      %1061 = vmatmul.mubr.bf16.gmra.mrb[0].mxu0 %v1023
      %v1062 = vpop.f32.mrb[0].mxu0
      %v1063 = vadd.f32 0.0, %v1062
      %v1064 = vpop.f32.mrb[0].mxu0
      %v1065 = vpop.f32.mrb[0].mxu0
      %v1066 = vpop.f32.mrb[0].mxu0
      %1067 = vdwg.mxu0
      %v1068 = vadd.f32 %v1015, %v1063
      %1069 = vst.msk [vmem:[%s1008] sm:$0xff] %vm793, %v1068
      %1070 = vst.msk [vmem:[%s983] sm:$0xff] %vm865, %v988
      %1071 = vrot.lane.b32.xlu0 %v927, 96
      %v1072 = vpop.permute.xlu0 %1071
      %1073 = vrot.lane.b32.xlu0 %v932, 96
      %v1074 = vpop.permute.xlu0 %1073
      %v1076 = vsel %vm793, %v1072, 0
      %v1079 = vsel %vm793, %v1074, 0
      %1081 = vmatprep.subr.bf16.mxu0 0
      %1082 = vmatpush1.bf16.xpose.msra.mxu0 %v1079
      %1083 = vmatprep.subr.bf16.mxu0 0
      %1084 = vmatpush1.bf16.xpose.msra.mxu0 0
      %1085 = vmatprep.subr.bf16.mxu0 0
      %1086 = vmatpush1.bf16.xpose.msra.mxu0 0
      %1087 = vmatprep.subr.bf16.mxu0 0
      %1088 = vmatpush1.bf16.xpose.msra.mxu0 0
      %1089 = vmatprep.subr.bf16.mxu0 0
      %1090 = vmatpush1.bf16.xpose.msra.mxu0 0
      %1091 = vmatprep.subr.bf16.mxu0 0
      %1092 = vmatpush1.bf16.xpose.msra.mxu0 0
      %1093 = vmatprep.subr.bf16.mxu0 0
      %1094 = vmatpush1.bf16.xpose.msra.mxu0 0
      %1095 = vmatprep.subr.bf16.mxu0 0
      %1096 = vmatpush1.bf16.xpose.msra.mxu0 0
      %1097 = vmatprep.subr.bf16.mxu0 0
      %1098 = vmatpush1.bf16.xpose.msra.mxu0 0
      %1099 = vmatprep.subr.bf16.mxu0 0
      %1100 = vmatpush1.bf16.xpose.msra.mxu0 0
      %1101 = vmatprep.subr.bf16.mxu0 0
      %1102 = vmatpush1.bf16.xpose.msra.mxu0 0
      %1103 = vmatprep.subr.bf16.mxu0 0
      %1104 = vmatpush1.bf16.xpose.msra.mxu0 0
      %1105 = vmatprep.subr.bf16.mxu0 0
      %1106 = vmatpush1.bf16.xpose.msra.mxu0 0
      %1107 = vmatprep.subr.bf16.mxu0 0
      %1108 = vmatpush1.bf16.xpose.msra.mxu0 0
      %1109 = vmatprep.subr.bf16.mxu0 0
      %1110 = vmatpush1.bf16.xpose.msra.mxu0 0
      %1111 = vmatprep.subr.bf16.mxu0 0
      %1112 = vmatpush1.bf16.xpose.msra.mxu0 0
      %1113 = vmatprep.mubr.bf16.mxu0 0
      %1114 = vmatmul.mubr.bf16.gmra.mrb[0].mxu0 %v1076
      %v1115 = vpop.f32.mrb[0].mxu0
      %v1116 = vadd.f32 0.0, %v1115
      %v1117 = vpop.f32.mrb[0].mxu0
      %v1118 = vpop.f32.mrb[0].mxu0
      %v1119 = vpop.f32.mrb[0].mxu0
      %1120 = vdwg.mxu0
      %v1121 = vmul.f32 %v1116, 0.25
      %s1122 = scalar_lea.vmem [#allocation2], 16
      %v1123 = vld [vmem:[%s1122] sm:$0xff]
      %v1124 = vsel %vm843, %v1121, -inf
      %1125 = vmax.xlane.f32.xlu0 %v1124
      %v1126 = vpop.xlane.xlu0 %1125
      %v1127 = vmax.f32 %v1123, %v1126
      %v1128 = vsub.f32 %v1123, %v1127
      %v1129 = vmul.f32 %v1128, 1.442695
      %v1130 = vpow.pop %v1129
      %1132 = vset.pattern.permute.xlu0 0
      %1133 = vperm.xlu0 %1132, %v1127
      %v1134 = vpop.permute.xlu0 %1133
      %v1136 = vsub.f32 %v1121, %v1134
      %v1137 = vmul.f32 %v1136, 1.442695
      %v1138 = vpow.pop %v1137
      %s1139 = scalar_lea.vmem [#allocation3], 16
      %v1140 = vld [vmem:[%s1139] sm:$0xff]
      %v1141 = vmul.f32 %v1130, %v1140
      %v1142 = vsel %vm843, %v1138, 0.0
      %1143 = vadd.xlane.f32.xlu0 %v1142
      %v1144 = vpop.xlane.xlu0 %1143
      %v1145 = vadd.f32 %v1141, %v1144
      %1146 = vst.msk [vmem:[%s1139] sm:$0xff] %vm865, %v1145
      %s1147 = scalar_lea.vmem [#allocation4], 16
      %v1148 = vld [vmem:[%s1147] sm:$0xff]
      %1150 = vset.pattern.permute.xlu0 0
      %1151 = vperm.xlu0 %1150, %v1130
      %v1152 = vpop.permute.xlu0 %1151
      %v1154 = vmul.f32 %v1152, %v1148
      %v1155 = vpack.c.bf16 %v1138, %v1138
      %1156 = vrot.lane.b32.xlu0 %v1019, 96
      %v1157 = vpop.permute.xlu0 %1156
      %v1159 = vsel %vm843, %v1155, 0
      %v1162 = vsel %vm878, %v1157, 0
      %1164 = vmatprep.subr.bf16.mxu0 0
      %1165 = vmatpush1.bf16.msra.mxu0 %v1162
      %1166 = vmatprep.subr.bf16.mxu0 0
      %1167 = vmatpush1.bf16.msra.mxu0 0
      %1168 = vmatprep.subr.bf16.mxu0 0
      %1169 = vmatpush1.bf16.msra.mxu0 0
      %1170 = vmatprep.subr.bf16.mxu0 0
      %1171 = vmatpush1.bf16.msra.mxu0 0
      %1172 = vmatprep.subr.bf16.mxu0 0
      %1173 = vmatpush1.bf16.msra.mxu0 0
      %1174 = vmatprep.subr.bf16.mxu0 0
      %1175 = vmatpush1.bf16.msra.mxu0 0
      %1176 = vmatprep.subr.bf16.mxu0 0
      %1177 = vmatpush1.bf16.msra.mxu0 0
      %1178 = vmatprep.subr.bf16.mxu0 0
      %1179 = vmatpush1.bf16.msra.mxu0 0
      %1180 = vmatprep.subr.bf16.mxu0 0
      %1181 = vmatpush1.bf16.msra.mxu0 0
      %1182 = vmatprep.subr.bf16.mxu0 0
      %1183 = vmatpush1.bf16.msra.mxu0 0
      %1184 = vmatprep.subr.bf16.mxu0 0
      %1185 = vmatpush1.bf16.msra.mxu0 0
      %1186 = vmatprep.subr.bf16.mxu0 0
      %1187 = vmatpush1.bf16.msra.mxu0 0
      %1188 = vmatprep.subr.bf16.mxu0 0
      %1189 = vmatpush1.bf16.msra.mxu0 0
      %1190 = vmatprep.subr.bf16.mxu0 0
      %1191 = vmatpush1.bf16.msra.mxu0 0
      %1192 = vmatprep.subr.bf16.mxu0 0
      %1193 = vmatpush1.bf16.msra.mxu0 0
      %1194 = vmatprep.subr.bf16.mxu0 0
      %1195 = vmatpush1.bf16.msra.mxu0 0
      %1196 = vmatprep.mubr.bf16.mxu0 0
      %1197 = vmatmul.mubr.bf16.gmra.mrb[0].mxu0 %v1159
      %v1198 = vpop.f32.mrb[0].mxu0
      %v1199 = vadd.f32 0.0, %v1198
      %v1200 = vpop.f32.mrb[0].mxu0
      %v1201 = vpop.f32.mrb[0].mxu0
      %v1202 = vpop.f32.mrb[0].mxu0
      %1203 = vdwg.mxu0
      %v1204 = vadd.f32 %v1154, %v1199
      %1205 = vst.msk [vmem:[%s1147] sm:$0xff] %vm793, %v1204
      %1206 = vst.msk [vmem:[%s1122] sm:$0xff] %vm865, %v1127
      %1207 = vrot.lane.b32.xlu0 %v927, 80
      %v1208 = vpop.permute.xlu0 %1207
      %1209 = vrot.lane.b32.xlu0 %v932, 80
      %v1210 = vpop.permute.xlu0 %1209
      %v1212 = vsel %vm793, %v1208, 0
      %v1215 = vsel %vm793, %v1210, 0
      %1217 = vmatprep.subr.bf16.mxu0 0
      %1218 = vmatpush1.bf16.xpose.msra.mxu0 %v1215
      %1219 = vmatprep.subr.bf16.mxu0 0
      %1220 = vmatpush1.bf16.xpose.msra.mxu0 0
      %1221 = vmatprep.subr.bf16.mxu0 0
      %1222 = vmatpush1.bf16.xpose.msra.mxu0 0
      %1223 = vmatprep.subr.bf16.mxu0 0
      %1224 = vmatpush1.bf16.xpose.msra.mxu0 0
      %1225 = vmatprep.subr.bf16.mxu0 0
      %1226 = vmatpush1.bf16.xpose.msra.mxu0 0
      %1227 = vmatprep.subr.bf16.mxu0 0
      %1228 = vmatpush1.bf16.xpose.msra.mxu0 0
      %1229 = vmatprep.subr.bf16.mxu0 0
      %1230 = vmatpush1.bf16.xpose.msra.mxu0 0
      %1231 = vmatprep.subr.bf16.mxu0 0
      %1232 = vmatpush1.bf16.xpose.msra.mxu0 0
      %1233 = vmatprep.subr.bf16.mxu0 0
      %1234 = vmatpush1.bf16.xpose.msra.mxu0 0
      %1235 = vmatprep.subr.bf16.mxu0 0
      %1236 = vmatpush1.bf16.xpose.msra.mxu0 0
      %1237 = vmatprep.subr.bf16.mxu0 0
      %1238 = vmatpush1.bf16.xpose.msra.mxu0 0
      %1239 = vmatprep.subr.bf16.mxu0 0
      %1240 = vmatpush1.bf16.xpose.msra.mxu0 0
      %1241 = vmatprep.subr.bf16.mxu0 0
      %1242 = vmatpush1.bf16.xpose.msra.mxu0 0
      %1243 = vmatprep.subr.bf16.mxu0 0
      %1244 = vmatpush1.bf16.xpose.msra.mxu0 0
      %1245 = vmatprep.subr.bf16.mxu0 0
      %1246 = vmatpush1.bf16.xpose.msra.mxu0 0
      %1247 = vmatprep.subr.bf16.mxu0 0
      %1248 = vmatpush1.bf16.xpose.msra.mxu0 0
      %1249 = vmatprep.mubr.bf16.mxu0 0
      %1250 = vmatmul.mubr.bf16.gmra.mrb[0].mxu0 %v1212
      %v1251 = vpop.f32.mrb[0].mxu0
      %v1252 = vadd.f32 0.0, %v1251
      %v1253 = vpop.f32.mrb[0].mxu0
      %v1254 = vpop.f32.mrb[0].mxu0
      %v1255 = vpop.f32.mrb[0].mxu0
      %1256 = vdwg.mxu0
      %v1257 = vmul.f32 %v1252, 0.25
      %s1258 = scalar_lea.vmem [#allocation2], 24
      %v1259 = vld [vmem:[%s1258] sm:$0xff]
      %v1260 = vsel %vm843, %v1257, -inf
      %1261 = vmax.xlane.f32.xlu0 %v1260
      %v1262 = vpop.xlane.xlu0 %1261
      %v1263 = vmax.f32 %v1259, %v1262
      %v1264 = vsub.f32 %v1259, %v1263
      %v1265 = vmul.f32 %v1264, 1.442695
      %v1266 = vpow.pop %v1265
      %1268 = vset.pattern.permute.xlu0 0
      %1269 = vperm.xlu0 %1268, %v1263
      %v1270 = vpop.permute.xlu0 %1269
      %v1272 = vsub.f32 %v1257, %v1270
      %v1273 = vmul.f32 %v1272, 1.442695
      %v1274 = vpow.pop %v1273
      %s1275 = scalar_lea.vmem [#allocation3], 24
      %v1276 = vld [vmem:[%s1275] sm:$0xff]
      %v1277 = vmul.f32 %v1266, %v1276
      %v1278 = vsel %vm843, %v1274, 0.0
      %1279 = vadd.xlane.f32.xlu0 %v1278
      %v1280 = vpop.xlane.xlu0 %1279
      %v1281 = vadd.f32 %v1277, %v1280
      %1282 = vst.msk [vmem:[%s1275] sm:$0xff] %vm865, %v1281
      %s1283 = scalar_lea.vmem [#allocation4], 24
      %v1284 = vld [vmem:[%s1283] sm:$0xff]
      %1286 = vset.pattern.permute.xlu0 0
      %1287 = vperm.xlu0 %1286, %v1266
      %v1288 = vpop.permute.xlu0 %1287
      %v1290 = vmul.f32 %v1288, %v1284
      %v1291 = vpack.c.bf16 %v1274, %v1274
      %1292 = vrot.lane.b32.xlu0 %v1019, 80
      %v1293 = vpop.permute.xlu0 %1292
      %v1295 = vsel %vm843, %v1291, 0
      %v1298 = vsel %vm878, %v1293, 0
      %1300 = vmatprep.subr.bf16.mxu0 0
      %1301 = vmatpush1.bf16.msra.mxu0 %v1298
      %1302 = vmatprep.subr.bf16.mxu0 0
      %1303 = vmatpush1.bf16.msra.mxu0 0
      %1304 = vmatprep.subr.bf16.mxu0 0
      %1305 = vmatpush1.bf16.msra.mxu0 0
      %1306 = vmatprep.subr.bf16.mxu0 0
      %1307 = vmatpush1.bf16.msra.mxu0 0
      %1308 = vmatprep.subr.bf16.mxu0 0
      %1309 = vmatpush1.bf16.msra.mxu0 0
      %1310 = vmatprep.subr.bf16.mxu0 0
      %1311 = vmatpush1.bf16.msra.mxu0 0
      %1312 = vmatprep.subr.bf16.mxu0 0
      %1313 = vmatpush1.bf16.msra.mxu0 0
      %1314 = vmatprep.subr.bf16.mxu0 0
      %1315 = vmatpush1.bf16.msra.mxu0 0
      %1316 = vmatprep.subr.bf16.mxu0 0
      %1317 = vmatpush1.bf16.msra.mxu0 0
      %1318 = vmatprep.subr.bf16.mxu0 0
      %1319 = vmatpush1.bf16.msra.mxu0 0
      %1320 = vmatprep.subr.bf16.mxu0 0
      %1321 = vmatpush1.bf16.msra.mxu0 0
      %1322 = vmatprep.subr.bf16.mxu0 0
      %1323 = vmatpush1.bf16.msra.mxu0 0
      %1324 = vmatprep.subr.bf16.mxu0 0
      %1325 = vmatpush1.bf16.msra.mxu0 0
      %1326 = vmatprep.subr.bf16.mxu0 0
      %1327 = vmatpush1.bf16.msra.mxu0 0
      %1328 = vmatprep.subr.bf16.mxu0 0
      %1329 = vmatpush1.bf16.msra.mxu0 0
      %1330 = vmatprep.subr.bf16.mxu0 0
      %1331 = vmatpush1.bf16.msra.mxu0 0
      %1332 = vmatprep.mubr.bf16.mxu0 0
      %1333 = vmatmul.mubr.bf16.gmra.mrb[0].mxu0 %v1295
      %v1334 = vpop.f32.mrb[0].mxu0
      %v1335 = vadd.f32 0.0, %v1334
      %v1336 = vpop.f32.mrb[0].mxu0
      %v1337 = vpop.f32.mrb[0].mxu0
      %v1338 = vpop.f32.mrb[0].mxu0
      %1339 = vdwg.mxu0
      %v1340 = vadd.f32 %v1290, %v1335
      %1341 = vst.msk [vmem:[%s1283] sm:$0xff] %vm793, %v1340
      %1342 = vst.msk [vmem:[%s1258] sm:$0xff] %vm865, %v1263
      // Predicated region
      $region45: #{forward.5} parent=39 // pred_check
        %p1343 = pneg %p318
      $region46: #{forward.5} parent=39 // pred_check_branch
        %1345 = sbr.rel (%p1343) target = $region48
      $region47: #{forward.5} parent=39 // pred_region
        %v1346 = vld [vmem:[#allocation4] sm:$0xff]
        %v1347 = vld [vmem:[#allocation3] sm:$0xff]
        %v1348 = vrcp.pop %v1347
        %1350 = vset.pattern.permute.xlu0 0
        %1351 = vperm.xlu0 %1350, %v1348
        %v1352 = vpop.permute.xlu0 %1351
        %v1354 = vmul.f32 %v1346, %v1352
        %v1355 = vld [vmem:[%s1008] sm:$0xff]
        %v1356 = vld [vmem:[%s1000] sm:$0xff]
        %v1357 = vrcp.pop %v1356
        %1359 = vset.pattern.permute.xlu0 0
        %1360 = vperm.xlu0 %1359, %v1357
        %v1361 = vpop.permute.xlu0 %1360
        %v1363 = vmul.f32 %v1355, %v1361
        %v1364 = vld [vmem:[%s1147] sm:$0xff]
        %v1365 = vld [vmem:[%s1139] sm:$0xff]
        %v1366 = vrcp.pop %v1365
        %1368 = vset.pattern.permute.xlu0 0
        %1369 = vperm.xlu0 %1368, %v1366
        %v1370 = vpop.permute.xlu0 %1369
        %v1372 = vmul.f32 %v1364, %v1370
        %v1373 = vld [vmem:[%s1283] sm:$0xff]
        %v1374 = vld [vmem:[%s1275] sm:$0xff]
        %v1375 = vrcp.pop %v1374
        %1377 = vset.pattern.permute.xlu0 0
        %1378 = vperm.xlu0 %1377, %v1375
        %v1379 = vpop.permute.xlu0 %1378
        %v1381 = vmul.f32 %v1373, %v1379
        %1383 = vrot.lane.b32.xlu0 %v1363, 16
        %v1384 = vpop.permute.xlu0 %1383
        %1387 = vrot.lane.b32.xlu0 %v1372, 32
        %v1388 = vpop.permute.xlu0 %1387
        %1391 = vrot.lane.b32.xlu0 %v1381, 48
        %v1392 = vpop.permute.xlu0 %1391
        %v1394 = vsel %vm793, %v1354, %v1384
        %vm1395 = vcmask 261120
        %v1396 = vsel %vm1395, %v1394, %v1388
        %vm1397 = vcmask 392192
        %v1398 = vsel %vm1397, %v1396, %v1392
        %v1399 = vpack.c.bf16 %v1398, %v1398
        %vm1400 = vcmask 519168
        %1401 = vst.msk [vmem:[%s313] sm:$0xf] %vm1400, %v1399
      $region48: #{forward.5} parent=39 // pred_fallthru
        _
      %p1402 = scmp.lt.s32.totalorder %s21, 1
      %s1403 = scalar_select %p1402, %s21, 1
      %p1404 = scmp.lt.s32.totalorder %s22, 0
      %s1405 = scalar_select %p1404, %s22, 0
      %s1406 = sadd.s32 %s1405, %s1403
      %s1407 = smul.addr %s1406, 4
      %s1408 = scalar_lea.vmem %s5, %s1407
      // Predicated region
      $region49: #{forward.5} parent=39 // pred_check
        %p1409 = pneg %p181
      $region50: #{forward.5} parent=39 // pred_check_branch
        %1411 = sbr.rel (%p1409) target = $region52
      $region51: #{forward.5} parent=39 // pred_region
        _
      $region52: #{forward.5} parent=39 // pred_fallthru
        _
    $region40: #{forward.5} parent=5 // pred_fallthru
      _
    %p1412 = scmp.le.s32.totalorder 2, %s11
    // Predicated region
    $region53: #{forward.5} parent=5 // pred_check
      %p1413 = pneg %p1412
    $region54: #{forward.5} parent=5 // pred_check_branch
      %1415 = sbr.rel (%p1413) target = $region56
    $region55: #{forward.5} parent=5 // pred_region
      %s1416 = ssub.s32 %s11, 2
      // Predicated region
      $region57: #{forward.5} parent=55 // pred_check
        %p1417 = pneg %p187
      $region58: #{forward.5} parent=55 // pred_check_branch
        %1419 = sbr.rel (%p1417) target = $region60
      $region59: #{forward.5} parent=55 // pred_region
        %p1420 = scmp.lt.s32.totalorder %s24, 1
        %s1421 = scalar_select %p1420, %s24, 1
        %p1422 = scmp.lt.s32.totalorder %s25, 0
        %s1423 = scalar_select %p1422, %s25, 0
        %s1424 = sadd.s32 %s1423, %s1421
        %s1425 = smul.addr %s1424, 4
        %s1426 = scalar_lea.vmem %s5, %s1425
      $region60: #{forward.5} parent=55 // pred_fallthru
        _
    $region56: #{forward.5} parent=5 // pred_fallthru
      _
  $region6: #{forward.5} parent=0 // loop_footer
    %s15 = sadd.s32 1, %s11
  $region7: #{forward.5} parent=0 // loop_footer_branch
    %10 = sbr.rel target = $region3
  $region8: #{forward.5} parent=0 // loop_exit
    _

</llo_original>
